<compile_context>
chip_gen: v7x
topology: tpu7x:2x2x1
jax: 0.10.0
libtpu: 0.0.40
codegen_flags: <defaults>
</compile_context>

<pallas_src>
import functools

import jax
import jax.numpy as jnp
from jax.experimental import pallas as pl
from jax.experimental.pallas import tpu as pltpu


def _round_up(x, m):
    return (x + m - 1) // m * m


def _unet_conv2_kernel(x_c_ref, x_t_ref, x_b_ref, w1_ref, w2_ref, aff_ref,
                       o_ref, xp_ref, y1_ref,
                       *, TH, W, Wp, Cin, cin_p, cout_p):
    bf16 = jnp.bfloat16
    ht = pl.program_id(1)
    last = pl.num_programs(1) - 1

    # ---- assemble zero-padded conv1 input tile: (TH+4, Wp, cin_p) ----------
    # Right-pad-only layout: valid data at columns 0..W-1, zeros at W..Wp-1.
    if Cin < cin_p:
        # Small-Cin path: one full zero fill also provides the zero lanes
        # >= Cin (MXU K padding) and the boundary halo rows.
        xp_ref[...] = jnp.zeros((TH + 4, Wp, cin_p), bf16)
    else:
        xp_ref[:, W:Wp, :] = jnp.zeros((TH + 4, Wp - W, cin_p), bf16)

        @pl.when(ht == 0)
        def _():
            xp_ref[0:2, 0:W, :] = jnp.zeros((2, W, cin_p), bf16)

        @pl.when(ht == last)
        def _():
            xp_ref[TH + 2:TH + 4, 0:W, :] = jnp.zeros((2, W, cin_p), bf16)

    xp_ref[2:TH + 2, 0:W, 0:Cin] = x_c_ref[0]

    @pl.when(ht > 0)
    def _():
        xp_ref[0:2, 0:W, 0:Cin] = x_t_ref[0]

    @pl.when(ht < last)
    def _():
        xp_ref[TH + 2:TH + 4, 0:W, 0:Cin] = x_b_ref[0]

    # ---- 3x3 conv: 3 matmuls (N = 3*cout_p) + XLU rolls for the dx shift ----
    def conv3x3(xin_ref, w_ref, rows_out, cin):
        """Returns (rows_out*Wp, cout_p) f32 conv result in the padded layout.

        xin_ref : (rows_out + 2, Wp, cin) bf16, zero in columns W..Wp-1.
        w_ref   : (3, cin, 3*cout_p) bf16; w_ref[dy][:, dx*cout_p:(dx+1)*cout_p]
                  is the (dy, dx) tap.
        Flat identity (q row-major over (rows_out, Wp)):
            out[q] = T1[q] + T0[q-1] + T2[q+1],
            T_dx[q] = sum_dy xin_flat[q + dy*Wp] @ w[dy, dx]
        The +/-1 shifts are circular rolls: the wrapped row of T0 is provably
        zero (it only reads the last W-pad column), and the wrapped row of T2
        lands in a discarded pad column.
        """
        R = rows_out * Wp
        X = xin_ref[...].reshape((rows_out + 2) * Wp, cin)
        y = jnp.dot(X[0:R, :], w_ref[0], preferred_element_type=jnp.float32)
        y = y + jnp.dot(X[Wp:Wp + R, :], w_ref[1],
                        preferred_element_type=jnp.float32)
        y = y + jnp.dot(X[2 * Wp:2 * Wp + R, :], w_ref[2],
                        preferred_element_type=jnp.float32)
        t0 = y[:, 0:cout_p]
        t1 = y[:, cout_p:2 * cout_p]
        t2 = y[:, 2 * cout_p:3 * cout_p]
        return (t1
                + pltpu.roll(t0, shift=1, axis=0)          # out[q] += T0[q-1]
                + pltpu.roll(t2, shift=R - 1, axis=0))      # out[q] += T2[q+1]

    # ---- stage 1: conv1 + BN1 + ReLU -> padded-width bf16 intermediate ------
    h1 = conv3x3(xp_ref, w1_ref, TH + 2, cin_p)
    h1 = jnp.maximum(h1 * aff_ref[0:1, :] + aff_ref[1:2, :], 0.0)
    y1_ref[...] = h1.astype(bf16).reshape(TH + 2, Wp, cout_p)
    # conv2's zero padding: W-pad columns + image-boundary halo rows.
    y1_ref[:, W:Wp, :] = jnp.zeros((TH + 2, Wp - W, cout_p), bf16)

    @pl.when(ht == 0)
    def _():
        y1_ref[0:1, :, :] = jnp.zeros((1, Wp, cout_p), bf16)

    @pl.when(ht == last)
    def _():
        y1_ref[TH + 1:TH + 2, :, :] = jnp.zeros((1, Wp, cout_p), bf16)

    # ---- stage 2: conv2 + BN2 + ReLU -> bf16 output tile ---------------------
    h2 = conv3x3(y1_ref, w2_ref, TH, cout_p)
    h2 = jnp.maximum(h2 * aff_ref[2:3, :] + aff_ref[3:4, :], 0.0)
    z = h2.astype(o_ref.dtype).reshape(TH, Wp, cout_p)
    o_ref[0] = z[:, 0:W, :]


def _vmem_capacity_bytes():
    try:
        return int(pltpu.get_tpu_info().vmem_capacity_bytes)
    except Exception:
        return 64 * 1024 * 1024  # conservative fallback (v7x: 64 MiB per core)


def _estimate_vmem_bytes(th, W, Wp, cin_p, cout_p):
    bf, f4 = 2, 4
    # Double-buffered pipeline blocks (center tile, two 2-row halos, output).
    # Small-Cin blocks still occupy ~cin_p lanes of VMEM due to tiled layout.
    io = 2 * (th * W * cin_p * bf + 2 * (2 * W * cin_p * bf)
              + th * W * cout_p * bf)
    weights = 2 * 3 * (cin_p + cout_p) * 3 * cout_p * bf + 2 * 4 * cout_p * f4
    scratch = (th + 4) * Wp * cin_p * bf + (th + 2) * Wp * cout_p * bf
    r1 = (th + 2) * Wp
    temps = ((th + 4) * Wp * cin_p * bf        # stage-1 LHS load
             + r1 * 3 * cout_p * f4            # (R1, 3*cout_p) f32 MXU result
             + 3 * r1 * cout_p * f4)           # rolled taps / combine temps
    return io + weights + scratch + temps


def _choose_row_tile(N, H, W, Wp, cin_p, cout_p, row_tile, budget):
    if row_tile is not None:
        th = int(row_tile)
        if H % th != 0 or (th % 2 != 0 and th != H):
            raise ValueError("row_tile must divide H and be even (or equal H)")
        return th
    cands = [d for d in range(H, 0, -1) if H % d == 0 and (d % 2 == 0 or d == H)]
    fitting = [d for d in cands
               if _estimate_vmem_bytes(d, W, Wp, cin_p, cout_p) <= budget]
    if not fitting:
        return cands[-1]
    if N % 2 == 1:
        # v7x megacore balance: prefer an even total grid when N is odd.
        balanced = [d for d in fitting if (N * (H // d)) % 2 == 0]
        if balanced:
            return balanced[0]
    return fitting[0]


def fold_bn(conv_bias, gamma, beta, running_mean, running_var, eps=1e-5):
    """Fold eval-mode BatchNorm2d (and conv bias) into per-channel scale/bias."""
    scale = gamma / jnp.sqrt(running_var + eps)
    bias = (conv_bias - running_mean) * scale + beta
    return scale, bias


def unet_conv2_forward(x_nchw, params, *, row_tile=None):
    """unetConv2.forward (is_batchnorm=True, eval-mode BN): conv1 -> conv2."""
    N, Cin, H, W = x_nchw.shape
    Cout = params["w1"].shape[-1]
    assert params["w1"].shape[:3] == (3, 3, Cin)
    assert H >= 2, "kernel assumes at least 2 image rows"

    cin_p = _round_up(Cin, 128)        # MXU K / lane width inside VMEM only
    cout_p = _round_up(Cout, 128)      # lane-dense output channels
    Wp = _round_up(W + 2, 8)           # padded width (>= W+1 zero pad columns)

    vmem_cap = _vmem_capacity_bytes()
    vmem_limit = min(int(vmem_cap * 3 // 4), 96 * 1024 * 1024)
    budget = (vmem_limit * 11) // 20   # ~0.55x scoped limit (estimate is conservative)
    TH = _choose_row_tile(N, H, W, Wp, cin_p, cout_p, row_tile, budget)
    num_ht = H // TH
    th2 = max(TH // 2, 1)
    max_hb = max(H // 2 - 1, 0)

    # Glue: NCHW -> NHWC bf16.  Channels are NOT padded in HBM (real Cin).
    x = jnp.transpose(x_nchw, (0, 2, 3, 1)).astype(jnp.bfloat16)

    # Weights: HWIO -> (dy, cin_p, 3*cout_p) with the three dx taps
    # concatenated along N (one wide MXU matmul per dy).
    def prep_w(w, ci, ci_p):
        w = jnp.pad(w, ((0, 0), (0, 0), (0, ci_p - ci), (0, cout_p - Cout)))
        w = jnp.transpose(w, (0, 2, 1, 3)).reshape(3, ci_p, 3 * cout_p)
        return w.astype(jnp.bfloat16)

    w1 = prep_w(params["w1"], Cin, cin_p)
    w2 = prep_w(params["w2"], Cout, cout_p)

    s1, b1 = fold_bn(params["b1"], params["g1"], params["beta1"], params["m1"], params["v1"])
    s2, b2 = fold_bn(params["b2"], params["g2"], params["beta2"], params["m2"], params["v2"])
    padc = lambda v: jnp.pad(v, (0, cout_p - Cout))
    affine = jnp.stack([padc(s1), padc(b1), padc(s2), padc(b2)]).astype(jnp.float32)

    kernel = functools.partial(_unet_conv2_kernel, TH=TH, W=W, Wp=Wp,
                               Cin=Cin, cin_p=cin_p, cout_p=cout_p)

    out = pl.pallas_call(
        kernel,
        out_shape=jax.ShapeDtypeStruct((N, H, W, cout_p), jnp.bfloat16),
        grid=(N, num_ht),
        in_specs=[
            # center input tile (real Cin channels)
            pl.BlockSpec((1, TH, W, Cin), lambda n, t: (n, t, 0, 0)),
            # 2-row top halo (last 2 rows of previous tile; clamped, gated by pl.when)
            pl.BlockSpec((1, 2, W, Cin),
                         lambda n, t: (n, jnp.clip(t * th2 - 1, 0, max_hb), 0, 0)),
            # 2-row bottom halo (first 2 rows of next tile)
            pl.BlockSpec((1, 2, W, Cin),
                         lambda n, t: (n, jnp.clip((t + 1) * th2, 0, max_hb), 0, 0)),
            # weights / folded-BN affine: constant block index -> fetched once
            pl.BlockSpec((3, cin_p, 3 * cout_p), lambda n, t: (0, 0, 0)),
            pl.BlockSpec((3, cout_p, 3 * cout_p), lambda n, t: (0, 0, 0)),
            pl.BlockSpec((4, cout_p), lambda n, t: (0, 0)),
        ],
        out_specs=pl.BlockSpec((1, TH, W, cout_p), lambda n, t: (n, t, 0, 0)),
        scratch_shapes=[
            pltpu.VMEM((TH + 4, Wp, cin_p), jnp.bfloat16),   # padded conv1 input
            pltpu.VMEM((TH + 2, Wp, cout_p), jnp.bfloat16),  # conv1 out (conv2 in)
        ],
        compiler_params=pltpu.CompilerParams(
            dimension_semantics=("parallel", "parallel"),
            vmem_limit_bytes=vmem_limit,
        ),
    )(x, x, x, w1, w2, affine)

    out = out[..., :Cout].astype(jnp.float32)
    return jnp.transpose(out, (0, 3, 1, 2))       # NHWC -> NCHW


def _reference_forward(x_nchw, params):
    """Pure-JAX reference (lax conv, f32) for correctness check."""
    def block(x_nhwc, w, s, b):
        y = jax.lax.conv_general_dilated(
            x_nhwc, w, window_strides=(1, 1), padding="SAME",
            dimension_numbers=("NHWC", "HWIO", "NHWC"))
        return jnp.maximum(y * s[None, None, None, :] + b[None, None, None, :], 0.0)
    x = jnp.transpose(x_nchw, (0, 2, 3, 1))
    s1, b1 = fold_bn(params["b1"], params["g1"], params["beta1"], params["m1"], params["v1"])
    s2, b2 = fold_bn(params["b2"], params["g2"], params["beta2"], params["m2"], params["v2"])
    y = block(x, params["w1"], s1, b1)
    y = block(y, params["w2"], s2, b2)
    return jnp.transpose(y, (0, 3, 1, 2))


def init_params(key, in_size, out_size):
    ks = jax.random.split(key, 12)
    return {
        # conv1: Conv2d(in_size, out_size, 3, 1, 1) -> HWIO weights
        "w1": jax.random.normal(ks[0], (3, 3, in_size, out_size), jnp.float32) * 0.1,
        "b1": jax.random.normal(ks[1], (out_size,), jnp.float32) * 0.1,
        "g1": 1.0 + 0.1 * jax.random.normal(ks[2], (out_size,), jnp.float32),
        "beta1": 0.1 * jax.random.normal(ks[3], (out_size,), jnp.float32),
        "m1": 0.1 * jax.random.normal(ks[4], (out_size,), jnp.float32),
        "v1": 0.5 + jnp.abs(jax.random.normal(ks[5], (out_size,), jnp.float32)),
        # conv2: Conv2d(out_size, out_size, 3, 1, 1)
        "w2": jax.random.normal(ks[6], (3, 3, out_size, out_size), jnp.float32) * 0.1,
        "b2": jax.random.normal(ks[7], (out_size,), jnp.float32) * 0.1,
        "g2": 1.0 + 0.1 * jax.random.normal(ks[8], (out_size,), jnp.float32),
        "beta2": 0.1 * jax.random.normal(ks[9], (out_size,), jnp.float32),
        "m2": 0.1 * jax.random.normal(ks[10], (out_size,), jnp.float32),
        "v2": 0.5 + jnp.abs(jax.random.normal(ks[11], (out_size,), jnp.float32)),
    }


if __name__ == "__main__":
    key = jax.random.PRNGKey(0)
    k_x, k_p = jax.random.split(key)

    in_size, out_size = 4, 8
    N, H, W = 2, 16, 16
    x = jax.random.normal(k_x, (N, in_size, H, W), jnp.float32)   # PyTorch NCHW
    params = init_params(k_p, in_size, out_size)

    ref = _reference_forward(x, params)

    # row_tile=8 exercises the H-halo path (2 tiles/image); None uses auto tiling.
    for rt in (8, None):
        out = jax.block_until_ready(unet_conv2_forward(x, params, row_tile=rt))
        assert out.shape == (N, out_size, H, W)
        # bf16 activations/weights/output with f32 accumulation -> loosened tolerance.
        assert jnp.allclose(out, ref, atol=5e-2, rtol=5e-2), \
            f"mismatch vs reference (row_tile={rt})"

    print("KERNEL_OK")
</pallas_src>

<mosaic_0001>
module attributes {stable_mosaic.version = 11 : i64} {
  func.func @_unet_conv2_kernel(%arg0: i32, %arg1: i32, %arg2: memref<1x8x16x4xbf16, #tpu.memory_space<vmem>>, %arg3: memref<1x2x16x4xbf16, #tpu.memory_space<vmem>>, %arg4: memref<1x2x16x4xbf16, #tpu.memory_space<vmem>>, %arg5: memref<3x128x384xbf16, #tpu.memory_space<vmem>>, %arg6: memref<3x128x384xbf16, #tpu.memory_space<vmem>>, %arg7: memref<4x128xf32, #tpu.memory_space<vmem>>, %arg8: memref<1x8x16x128xbf16, #tpu.memory_space<vmem>>, %arg9: memref<12x24x128xbf16, #tpu.memory_space<vmem>>, %arg10: memref<10x24x128xbf16, #tpu.memory_space<vmem>>) attributes {dimension_semantics = [#tpu.dimension_semantics<parallel>, #tpu.dimension_semantics<parallel>], iteration_bounds = array<i64: 2, 2>, scalar_prefetch = 0 : i64, scratch_operands = 2 : i64, tpu.core_type = #tpu.core_type<tc>, window_params = [{transform_indices = @transform_0, window_bounds = array<i64: 1, 8, 16, 4>}, {transform_indices = @transform_1, window_bounds = array<i64: 1, 2, 16, 4>}, {transform_indices = @transform_2, window_bounds = array<i64: 1, 2, 16, 4>}, {pipeline_mode = #tpu.pipeline_mode<synchronous>, transform_indices = @transform_3, window_bounds = array<i64: 3, 128, 384>}, {pipeline_mode = #tpu.pipeline_mode<synchronous>, transform_indices = @transform_4, window_bounds = array<i64: 3, 128, 384>}, {pipeline_mode = #tpu.pipeline_mode<synchronous>, transform_indices = @transform_5, window_bounds = array<i64: 4, 128>}, {transform_indices = @transform_6, window_bounds = array<i64: 1, 8, 16, 128>}]} {
    %cst = arith.constant 0.000000e+00 : bf16
    %0 = vector.broadcast %cst : bf16 to vector<12x24x128xbf16>
    %c0 = arith.constant 0 : index
    %c0_0 = arith.constant 0 : index
    %c0_1 = arith.constant 0 : index
    %1 = vector.load %arg9[%c0, %c0_0, %c0_1] : memref<12x24x128xbf16, #tpu.memory_space<vmem>>, vector<12x24x128xbf16>
    tpu.vector_store %arg9[%c0, %c0_0, %c0_1], %0 {strides = array<i32>} : memref<12x24x128xbf16, #tpu.memory_space<vmem>>, vector<12x24x128xbf16>,
    %c0_2 = arith.constant 0 : index
    %c0_3 = arith.constant 0 : index
    %c0_4 = arith.constant 0 : index
    %c0_5 = arith.constant 0 : index
    %2 = vector.load %arg2[%c0_2, %c0_3, %c0_4, %c0_5] : memref<1x8x16x4xbf16, #tpu.memory_space<vmem>>, vector<1x8x16x4xbf16>
    %3 = vector.shape_cast %2 : vector<1x8x16x4xbf16> to vector<8x16x4xbf16>
    %c2 = arith.constant 2 : index
    %c0_6 = arith.constant 0 : index
    %c0_7 = arith.constant 0 : index
    %4 = vector.load %arg9[%c2, %c0_6, %c0_7] : memref<12x24x128xbf16, #tpu.memory_space<vmem>>, vector<8x16x4xbf16>
    tpu.vector_store %arg9[%c2, %c0_6, %c0_7], %3 {strides = array<i32>} : memref<12x24x128xbf16, #tpu.memory_space<vmem>>, vector<8x16x4xbf16>,
    %c0_i32 = arith.constant 0 : i32
    %5 = arith.cmpi sgt, %arg1, %c0_i32 : i32
    %6 = arith.extui %5 : i1 to i32
    %c0_i32_8 = arith.constant 0 : i32
    %7 = arith.cmpi ne, %6, %c0_i32_8 : i32
    scf.if %7 {
      %c0_64 = arith.constant 0 : index
      %c0_65 = arith.constant 0 : index
      %c0_66 = arith.constant 0 : index
      %c0_67 = arith.constant 0 : index
      %90 = vector.load %arg3[%c0_64, %c0_65, %c0_66, %c0_67] : memref<1x2x16x4xbf16, #tpu.memory_space<vmem>>, vector<1x2x16x4xbf16>
      %91 = vector.shape_cast %90 : vector<1x2x16x4xbf16> to vector<2x16x4xbf16>
      %c0_68 = arith.constant 0 : index
      %c0_69 = arith.constant 0 : index
      %c0_70 = arith.constant 0 : index
      %92 = vector.load %arg9[%c0_68, %c0_69, %c0_70] : memref<12x24x128xbf16, #tpu.memory_space<vmem>>, vector<2x16x4xbf16>
      tpu.vector_store %arg9[%c0_68, %c0_69, %c0_70], %91 {strides = array<i32>} : memref<12x24x128xbf16, #tpu.memory_space<vmem>>, vector<2x16x4xbf16>,
    } else {
    }
    %c1_i32 = arith.constant 1 : i32
    %8 = arith.cmpi slt, %arg1, %c1_i32 : i32
    %9 = arith.extui %8 : i1 to i32
    %c0_i32_9 = arith.constant 0 : i32
    %10 = arith.cmpi ne, %9, %c0_i32_9 : i32
    scf.if %10 {
      %c0_64 = arith.constant 0 : index
      %c0_65 = arith.constant 0 : index
      %c0_66 = arith.constant 0 : index
      %c0_67 = arith.constant 0 : index
      %90 = vector.load %arg4[%c0_64, %c0_65, %c0_66, %c0_67] : memref<1x2x16x4xbf16, #tpu.memory_space<vmem>>, vector<1x2x16x4xbf16>
      %91 = vector.shape_cast %90 : vector<1x2x16x4xbf16> to vector<2x16x4xbf16>
      %c10 = arith.constant 10 : index
      %c0_68 = arith.constant 0 : index
      %c0_69 = arith.constant 0 : index
      %92 = vector.load %arg9[%c10, %c0_68, %c0_69] : memref<12x24x128xbf16, #tpu.memory_space<vmem>>, vector<2x16x4xbf16>
      tpu.vector_store %arg9[%c10, %c0_68, %c0_69], %91 {strides = array<i32>} : memref<12x24x128xbf16, #tpu.memory_space<vmem>>, vector<2x16x4xbf16>,
    } else {
    }
    %c0_10 = arith.constant 0 : index
    %c0_11 = arith.constant 0 : index
    %c0_12 = arith.constant 0 : index
    %11 = vector.load %arg9[%c0_10, %c0_11, %c0_12] : memref<12x24x128xbf16, #tpu.memory_space<vmem>>, vector<12x24x128xbf16>
    %12 = vector.shape_cast %11 : vector<12x24x128xbf16> to vector<288x128xbf16>
    %13 = vector.extract_strided_slice %12 {offsets = [0, 0], sizes = [240, 128], strides = [1, 1]} : vector<288x128xbf16> to vector<240x128xbf16>
    %c0_13 = arith.constant 0 : index
    %c0_14 = arith.constant 0 : index
    %c0_15 = arith.constant 0 : index
    %14 = vector.load %arg5[%c0_13, %c0_14, %c0_15] : memref<3x128x384xbf16, #tpu.memory_space<vmem>>, vector<1x128x384xbf16>
    %15 = vector.shape_cast %14 : vector<1x128x384xbf16> to vector<128x384xbf16>
    %cst_16 = arith.constant dense<0.000000e+00> : vector<240x384xf32>
    %16 = tpu.matmul %13, %15, %cst_16 {dimension_numbers = #tpu.dot_dimension_numbers<[1], [0], [0], [1], [0, 0, 1, 1], [], []>} : vector<240x128xbf16>, vector<128x384xbf16>, vector<240x384xf32> -> vector<240x384xf32>
    %17 = vector.extract_strided_slice %12 {offsets = [24, 0], sizes = [240, 128], strides = [1, 1]} : vector<288x128xbf16> to vector<240x128xbf16>
    %c1 = arith.constant 1 : index
    %c0_17 = arith.constant 0 : index
    %c0_18 = arith.constant 0 : index
    %18 = vector.load %arg5[%c1, %c0_17, %c0_18] : memref<3x128x384xbf16, #tpu.memory_space<vmem>>, vector<1x128x384xbf16>
    %19 = vector.shape_cast %18 : vector<1x128x384xbf16> to vector<128x384xbf16>
    %cst_19 = arith.constant dense<0.000000e+00> : vector<240x384xf32>
    %20 = tpu.matmul %17, %19, %cst_19 {dimension_numbers = #tpu.dot_dimension_numbers<[1], [0], [0], [1], [0, 0, 1, 1], [], []>} : vector<240x128xbf16>, vector<128x384xbf16>, vector<240x384xf32> -> vector<240x384xf32>
    %21 = arith.addf %16, %20 : vector<240x384xf32>
    %22 = vector.extract_strided_slice %12 {offsets = [48, 0], sizes = [240, 128], strides = [1, 1]} : vector<288x128xbf16> to vector<240x128xbf16>
    %c2_20 = arith.constant 2 : index
    %c0_21 = arith.constant 0 : index
    %c0_22 = arith.constant 0 : index
    %23 = vector.load %arg5[%c2_20, %c0_21, %c0_22] : memref<3x128x384xbf16, #tpu.memory_space<vmem>>, vector<1x128x384xbf16>
    %24 = vector.shape_cast %23 : vector<1x128x384xbf16> to vector<128x384xbf16>
    %cst_23 = arith.constant dense<0.000000e+00> : vector<240x384xf32>
    %25 = tpu.matmul %22, %24, %cst_23 {dimension_numbers = #tpu.dot_dimension_numbers<[1], [0], [0], [1], [0, 0, 1, 1], [], []>} : vector<240x128xbf16>, vector<128x384xbf16>, vector<240x384xf32> -> vector<240x384xf32>
    %26 = arith.addf %21, %25 : vector<240x384xf32>
    %27 = vector.extract_strided_slice %26 {offsets = [0, 0], sizes = [240, 128], strides = [1, 1]} : vector<240x384xf32> to vector<240x128xf32>
    %28 = vector.extract_strided_slice %26 {offsets = [0, 128], sizes = [240, 128], strides = [1, 1]} : vector<240x384xf32> to vector<240x128xf32>
    %29 = vector.extract_strided_slice %26 {offsets = [0, 256], sizes = [240, 128], strides = [1, 1]} : vector<240x384xf32> to vector<240x128xf32>
    %c1_i32_24 = arith.constant 1 : i32
    %30 = tpu.dynamic_rotate %27 by %c1_i32_24 dim 0 : vector<240x128xf32>, i32 -> vector<240x128xf32>
    %31 = arith.addf %28, %30 : vector<240x128xf32>
    %c239_i32 = arith.constant 239 : i32
    %32 = tpu.dynamic_rotate %29 by %c239_i32 dim 0 : vector<240x128xf32>, i32 -> vector<240x128xf32>
    %33 = arith.addf %31, %32 : vector<240x128xf32>
    %c0_25 = arith.constant 0 : index
    %c0_26 = arith.constant 0 : index
    %34 = vector.load %arg7[%c0_25, %c0_26] : memref<4x128xf32, #tpu.memory_space<vmem>>, vector<1x128xf32>
    %35 = vector.broadcast %34 : vector<1x128xf32> to vector<240x128xf32>
    %36 = arith.mulf %33, %35 : vector<240x128xf32>
    %c1_27 = arith.constant 1 : index
    %c0_28 = arith.constant 0 : index
    %37 = vector.load %arg7[%c1_27, %c0_28] : memref<4x128xf32, #tpu.memory_space<vmem>>, vector<1x128xf32>
    %38 = vector.broadcast %37 : vector<1x128xf32> to vector<240x128xf32>
    %39 = arith.addf %36, %38 : vector<240x128xf32>
    %cst_29 = arith.constant 0.000000e+00 : f32
    %40 = vector.broadcast %cst_29 : f32 to vector<240x128xf32>
    %41 = arith.maximumf %39, %40 : vector<240x128xf32>
    %42 = arith.truncf %41 : vector<240x128xf32> to vector<240x128xbf16>
    %43 = vector.shape_cast %42 : vector<240x128xbf16> to vector<10x24x128xbf16>
    %c0_30 = arith.constant 0 : index
    %c0_31 = arith.constant 0 : index
    %c0_32 = arith.constant 0 : index
    %44 = vector.load %arg10[%c0_30, %c0_31, %c0_32] : memref<10x24x128xbf16, #tpu.memory_space<vmem>>, vector<10x24x128xbf16>
    tpu.vector_store %arg10[%c0_30, %c0_31, %c0_32], %43 {strides = array<i32>} : memref<10x24x128xbf16, #tpu.memory_space<vmem>>, vector<10x24x128xbf16>,
    %cst_33 = arith.constant 0.000000e+00 : bf16
    %45 = vector.broadcast %cst_33 : bf16 to vector<10x8x128xbf16>
    %c0_34 = arith.constant 0 : index
    %c16 = arith.constant 16 : index
    %c0_35 = arith.constant 0 : index
    %46 = vector.load %arg10[%c0_34, %c16, %c0_35] : memref<10x24x128xbf16, #tpu.memory_space<vmem>>, vector<10x8x128xbf16>
    tpu.vector_store %arg10[%c0_34, %c16, %c0_35], %45 {strides = array<i32>} : memref<10x24x128xbf16, #tpu.memory_space<vmem>>, vector<10x8x128xbf16>,
    %c0_i32_36 = arith.constant 0 : i32
    %47 = arith.cmpi eq, %arg1, %c0_i32_36 : i32
    %48 = arith.extui %47 : i1 to i32
    %c0_i32_37 = arith.constant 0 : i32
    %49 = arith.cmpi ne, %48, %c0_i32_37 : i32
    scf.if %49 {
      %cst_64 = arith.constant 0.000000e+00 : bf16
      %90 = vector.broadcast %cst_64 : bf16 to vector<1x24x128xbf16>
      %c0_65 = arith.constant 0 : index
      %c0_66 = arith.constant 0 : index
      %c0_67 = arith.constant 0 : index
      %91 = vector.load %arg10[%c0_65, %c0_66, %c0_67] : memref<10x24x128xbf16, #tpu.memory_space<vmem>>, vector<1x24x128xbf16>
      tpu.vector_store %arg10[%c0_65, %c0_66, %c0_67], %90 {strides = array<i32>} : memref<10x24x128xbf16, #tpu.memory_space<vmem>>, vector<1x24x128xbf16>,
    } else {
    }
    %c1_i32_38 = arith.constant 1 : i32
    %50 = arith.cmpi eq, %arg1, %c1_i32_38 : i32
    %51 = arith.extui %50 : i1 to i32
    %c0_i32_39 = arith.constant 0 : i32
    %52 = arith.cmpi ne, %51, %c0_i32_39 : i32
    scf.if %52 {
      %cst_64 = arith.constant 0.000000e+00 : bf16
      %90 = vector.broadcast %cst_64 : bf16 to vector<1x24x128xbf16>
      %c9 = arith.constant 9 : index
      %c0_65 = arith.constant 0 : index
      %c0_66 = arith.constant 0 : index
      %91 = vector.load %arg10[%c9, %c0_65, %c0_66] : memref<10x24x128xbf16, #tpu.memory_space<vmem>>, vector<1x24x128xbf16>
      tpu.vector_store %arg10[%c9, %c0_65, %c0_66], %90 {strides = array<i32>} : memref<10x24x128xbf16, #tpu.memory_space<vmem>>, vector<1x24x128xbf16>,
    } else {
    }
    %c0_40 = arith.constant 0 : index
    %c0_41 = arith.constant 0 : index
    %c0_42 = arith.constant 0 : index
    %53 = vector.load %arg10[%c0_40, %c0_41, %c0_42] : memref<10x24x128xbf16, #tpu.memory_space<vmem>>, vector<10x24x128xbf16>
    %54 = vector.shape_cast %53 : vector<10x24x128xbf16> to vector<240x128xbf16>
    %55 = vector.extract_strided_slice %54 {offsets = [0, 0], sizes = [192, 128], strides = [1, 1]} : vector<240x128xbf16> to vector<192x128xbf16>
    %c0_43 = arith.constant 0 : index
    %c0_44 = arith.constant 0 : index
    %c0_45 = arith.constant 0 : index
    %56 = vector.load %arg6[%c0_43, %c0_44, %c0_45] : memref<3x128x384xbf16, #tpu.memory_space<vmem>>, vector<1x128x384xbf16>
    %57 = vector.shape_cast %56 : vector<1x128x384xbf16> to vector<128x384xbf16>
    %cst_46 = arith.constant dense<0.000000e+00> : vector<192x384xf32>
    %58 = tpu.matmul %55, %57, %cst_46 {dimension_numbers = #tpu.dot_dimension_numbers<[1], [0], [0], [1], [0, 0, 1, 1], [], []>} : vector<192x128xbf16>, vector<128x384xbf16>, vector<192x384xf32> -> vector<192x384xf32>
    %59 = vector.extract_strided_slice %54 {offsets = [24, 0], sizes = [192, 128], strides = [1, 1]} : vector<240x128xbf16> to vector<192x128xbf16>
    %c1_47 = arith.constant 1 : index
    %c0_48 = arith.constant 0 : index
    %c0_49 = arith.constant 0 : index
    %60 = vector.load %arg6[%c1_47, %c0_48, %c0_49] : memref<3x128x384xbf16, #tpu.memory_space<vmem>>, vector<1x128x384xbf16>
    %61 = vector.shape_cast %60 : vector<1x128x384xbf16> to vector<128x384xbf16>
    %cst_50 = arith.constant dense<0.000000e+00> : vector<192x384xf32>
    %62 = tpu.matmul %59, %61, %cst_50 {dimension_numbers = #tpu.dot_dimension_numbers<[1], [0], [0], [1], [0, 0, 1, 1], [], []>} : vector<192x128xbf16>, vector<128x384xbf16>, vector<192x384xf32> -> vector<192x384xf32>
    %63 = arith.addf %58, %62 : vector<192x384xf32>
    %64 = vector.extract_strided_slice %54 {offsets = [48, 0], sizes = [192, 128], strides = [1, 1]} : vector<240x128xbf16> to vector<192x128xbf16>
    %c2_51 = arith.constant 2 : index
    %c0_52 = arith.constant 0 : index
    %c0_53 = arith.constant 0 : index
    %65 = vector.load %arg6[%c2_51, %c0_52, %c0_53] : memref<3x128x384xbf16, #tpu.memory_space<vmem>>, vector<1x128x384xbf16>
    %66 = vector.shape_cast %65 : vector<1x128x384xbf16> to vector<128x384xbf16>
    %cst_54 = arith.constant dense<0.000000e+00> : vector<192x384xf32>
    %67 = tpu.matmul %64, %66, %cst_54 {dimension_numbers = #tpu.dot_dimension_numbers<[1], [0], [0], [1], [0, 0, 1, 1], [], []>} : vector<192x128xbf16>, vector<128x384xbf16>, vector<192x384xf32> -> vector<192x384xf32>
    %68 = arith.addf %63, %67 : vector<192x384xf32>
    %69 = vector.extract_strided_slice %68 {offsets = [0, 0], sizes = [192, 128], strides = [1, 1]} : vector<192x384xf32> to vector<192x128xf32>
    %70 = vector.extract_strided_slice %68 {offsets = [0, 128], sizes = [192, 128], strides = [1, 1]} : vector<192x384xf32> to vector<192x128xf32>
    %71 = vector.extract_strided_slice %68 {offsets = [0, 256], sizes = [192, 128], strides = [1, 1]} : vector<192x384xf32> to vector<192x128xf32>
    %c1_i32_55 = arith.constant 1 : i32
    %72 = tpu.dynamic_rotate %69 by %c1_i32_55 dim 0 : vector<192x128xf32>, i32 -> vector<192x128xf32>
    %73 = arith.addf %70, %72 : vector<192x128xf32>
    %c191_i32 = arith.constant 191 : i32
    %74 = tpu.dynamic_rotate %71 by %c191_i32 dim 0 : vector<192x128xf32>, i32 -> vector<192x128xf32>
    %75 = arith.addf %73, %74 : vector<192x128xf32>
    %c2_56 = arith.constant 2 : index
    %c0_57 = arith.constant 0 : index
    %76 = vector.load %arg7[%c2_56, %c0_57] : memref<4x128xf32, #tpu.memory_space<vmem>>, vector<1x128xf32>
    %77 = vector.broadcast %76 : vector<1x128xf32> to vector<192x128xf32>
    %78 = arith.mulf %75, %77 : vector<192x128xf32>
    %c3 = arith.constant 3 : index
    %c0_58 = arith.constant 0 : index
    %79 = vector.load %arg7[%c3, %c0_58] : memref<4x128xf32, #tpu.memory_space<vmem>>, vector<1x128xf32>
    %80 = vector.broadcast %79 : vector<1x128xf32> to vector<192x128xf32>
    %81 = arith.addf %78, %80 : vector<192x128xf32>
    %cst_59 = arith.constant 0.000000e+00 : f32
    %82 = vector.broadcast %cst_59 : f32 to vector<192x128xf32>
    %83 = arith.maximumf %81, %82 : vector<192x128xf32>
    %84 = arith.truncf %83 : vector<192x128xf32> to vector<192x128xbf16>
    %85 = vector.shape_cast %84 : vector<192x128xbf16> to vector<8x24x128xbf16>
    %86 = vector.extract_strided_slice %85 {offsets = [0, 0, 0], sizes = [8, 16, 128], strides = [1, 1, 1]} : vector<8x24x128xbf16> to vector<8x16x128xbf16>
    %c0_60 = arith.constant 0 : index
    %c0_61 = arith.constant 0 : index
    %c0_62 = arith.constant 0 : index
    %c0_63 = arith.constant 0 : index
    %87 = vector.load %arg8[%c0_60, %c0_61, %c0_62, %c0_63] : memref<1x8x16x128xbf16, #tpu.memory_space<vmem>>, vector<1x8x16x128xbf16>
    %88 = vector.shape_cast %87 : vector<1x8x16x128xbf16> to vector<8x16x128xbf16>
    %89 = vector.shape_cast %86 : vector<8x16x128xbf16> to vector<1x8x16x128xbf16>
    tpu.vector_store %arg8[%c0_60, %c0_61, %c0_62, %c0_63], %89 {strides = array<i32>} : memref<1x8x16x128xbf16, #tpu.memory_space<vmem>>, vector<1x8x16x128xbf16>,
    return
  }
  func.func @transform_0(%arg0: i32, %arg1: i32) -> (i32, i32, i32, i32) {
    %c0_i32 = arith.constant 0 : i32
    %c0_i32_0 = arith.constant 0 : i32
    %c0_i32_1 = arith.constant 0 : i32
    return %arg0, %arg1, %c0_i32, %c0_i32_0 : i32, i32, i32, i32
  }
  func.func @transform_1(%arg0: i32, %arg1: i32) -> (i32, i32, i32, i32) {
    %c4_i32 = arith.constant 4 : i32
    %0 = arith.muli %arg1, %c4_i32 : i32
    %c1_i32 = arith.constant 1 : i32
    %1 = arith.subi %0, %c1_i32 : i32
    %c0_i32 = arith.constant 0 : i32
    %c7_i32 = arith.constant 7 : i32
    %2 = arith.maxsi %c0_i32, %1 : i32
    %3 = arith.minsi %c7_i32, %2 : i32
    %c0_i32_0 = arith.constant 0 : i32
    %c0_i32_1 = arith.constant 0 : i32
    %c0_i32_2 = arith.constant 0 : i32
    return %arg0, %3, %c0_i32_0, %c0_i32_1 : i32, i32, i32, i32
  }
  func.func @transform_2(%arg0: i32, %arg1: i32) -> (i32, i32, i32, i32) {
    %c1_i32 = arith.constant 1 : i32
    %0 = arith.addi %arg1, %c1_i32 : i32
    %c4_i32 = arith.constant 4 : i32
    %1 = arith.muli %0, %c4_i32 : i32
    %c0_i32 = arith.constant 0 : i32
    %c7_i32 = arith.constant 7 : i32
    %2 = arith.maxsi %c0_i32, %1 : i32
    %3 = arith.minsi %c7_i32, %2 : i32
    %c0_i32_0 = arith.constant 0 : i32
    %c0_i32_1 = arith.constant 0 : i32
    %c0_i32_2 = arith.constant 0 : i32
    return %arg0, %3, %c0_i32_0, %c0_i32_1 : i32, i32, i32, i32
  }
  func.func @transform_3(%arg0: i32, %arg1: i32) -> (i32, i32, i32) {
    %c0_i32 = arith.constant 0 : i32
    %c0_i32_0 = arith.constant 0 : i32
    %c0_i32_1 = arith.constant 0 : i32
    %c0_i32_2 = arith.constant 0 : i32
    return %c0_i32, %c0_i32_0, %c0_i32_1 : i32, i32, i32
  }
  func.func @transform_4(%arg0: i32, %arg1: i32) -> (i32, i32, i32) {
    %c0_i32 = arith.constant 0 : i32
    %c0_i32_0 = arith.constant 0 : i32
    %c0_i32_1 = arith.constant 0 : i32
    %c0_i32_2 = arith.constant 0 : i32
    return %c0_i32, %c0_i32_0, %c0_i32_1 : i32, i32, i32
  }
  func.func @transform_5(%arg0: i32, %arg1: i32) -> (i32, i32) {
    %c0_i32 = arith.constant 0 : i32
    %c0_i32_0 = arith.constant 0 : i32
    %c0_i32_1 = arith.constant 0 : i32
    return %c0_i32, %c0_i32_0 : i32, i32
  }
  func.func @transform_6(%arg0: i32, %arg1: i32) -> (i32, i32, i32, i32) {
    %c0_i32 = arith.constant 0 : i32
    %c0_i32_0 = arith.constant 0 : i32
    %c0_i32_1 = arith.constant 0 : i32
    return %arg0, %arg1, %c0_i32, %c0_i32_0 : i32, i32, i32, i32
  }
}

</mosaic_0001>

<llo_original>
// kernel: tpu_custom_call.1
$region0: #{tpu_custom_call.1}
  #allocation0 [shape = 'u32[]', space=smem, size = 0x4, offset = 0x4, fixed_abs, tag = 'smem constant byte address 0x4 - core index']
  #allocation1 [shape = 'u32[144,128]{1,0:T(1,128)}', space=vmem, size = 0x12000, scoped, tag = 'internal scratch']
  #allocation2 [shape = 'bf16[12,24,128]{2,1,0:T(8,128)(2,1)}', space=vmem, size = 0x12000, scoped, tag = 'scratch operand']
  #allocation3 [shape = 'bf16[10,24,128]{2,1,0:T(8,128)(2,1)}', space=vmem, size = 0xf000, scoped, tag = 'scratch operand']
  %s0 = inlined_call_operand.vmem [shape: bf16[2,16,16,4], index: 0, kind: input, shape index: {}]
  %s1 = inlined_call_operand.vmem [shape: bf16[2,16,16,4], index: 1, kind: input, shape index: {}]
  %s2 = inlined_call_operand.vmem [shape: bf16[2,16,16,4], index: 2, kind: input, shape index: {}]
  %s3 = inlined_call_operand.vmem [shape: bf16[3,128,384], index: 3, kind: input, shape index: {}]
  %s4 = inlined_call_operand.hbm [shape: bf16[3,128,384], index: 4, kind: input, shape index: {}]
  %s5 = inlined_call_operand.vmem [shape: f32[4,128], index: 5, kind: input, shape index: {}]
  %s6 = inlined_call_operand.hbm [shape: bf16[2,16,16,128], index: 6, kind: output, shape index: {}]
  %s7 = sld [smem:[#allocation0]]
  $region77: #{tpu_custom_call.1} parent=0
    _
  %s9 = ssub.s32 1, %s7
  %s10 = scalar_select 0, %s9, %s7
  $region1: #{tpu_custom_call.1} parent=0
    #allocation4 [shape = 'u8[294912]{0}', space=vmem, size = 0x48000, scoped, tag = 'input window, operand 4, single buffered']
    #allocation5 [shape = 's32[2]{0}', space=sflag, size = 0x8, scoped, tag = 'scoped memory for tpu_custom_call.1']
    #allocation6 [shape = 's32[2]{0}', space=sflag, size = 0x8, scoped, tag = 'scoped memory for tpu_custom_call.1']
    #allocation7 [shape = 'u8[65536]{0}', space=vmem, size = 0x10000, scoped, tag = 'output window, operand 0']
    %11 = vsyncpa [#allocation5], 0
    %12 = vsyncpa [#allocation6], 0
    %s13 = scalar_lea.sflag [#allocation6], 1
    %14 = vsyncpa %s13, 0
    loop: start=0, step=1, limit=6
    $region2: #{tpu_custom_call.1} parent=1 // loop_pre_header
      _
    $region3: #{tpu_custom_call.1} parent=1 // loop_header
      %s16 = sphi 0, %s20
      %p17 = scmp.ge.s32.totalorder %s16, 6
      %s23 = sphi 0, %s35
      %s24 = sphi 0, %s31
      %s25 = sphi 0, %s23
      %s26 = sphi 0, %s24
      %s27 = sphi 0, %s25
      %s28 = sphi 0, %s26
      %s40 = sphi 0, %s42
      %s43 = sphi 0, %s40
      %s44 = sphi 0, %s43
      %s60 = sphi 0, %s44
      %s80 = sphi 0, %s82
      %s83 = sphi 0, %s80
      %s84 = sphi 0, %s83
      %s100 = sphi 0, %s84
      %s120 = sphi 0, %s122
      %s123 = sphi 0, %s120
      %s124 = sphi 0, %s123
      %s140 = sphi 0, %s124
      %s144 = sphi 0, %s144
      %s146 = sphi 0, %s144
      %s147 = sphi 0, %s146
      %s161 = sphi 0, %s147
      %s165 = sphi 0, %s165
      %s167 = sphi 0, %s165
      %s168 = sphi 0, %s167
      %s182 = sphi 0, %s168
      %s186 = sphi 0, %s186
      %s188 = sphi 0, %s186
      %s189 = sphi 0, %s188
      %s203 = sphi 0, %s189
      %s211 = sphi 0, %s213
      %s214 = sphi 0, %s211
      %s215 = sphi 0, %s214
      %s231 = sphi 0, %s215
    $region4: #{tpu_custom_call.1} parent=1 // loop_header_branch
      %19 = sbr.rel (%p17) target = $region8
    $region5: #{tpu_custom_call.1} parent=1 // loop_body
      %s21 = ssub.s32 %s16, 1
      %s22 = ssub.s32 %s16, 2
      %s29 = sadd.s32 1, %s24
      %p30 = scmp.ge.s32.totalorder %s29, 2
      %s31 = scalar_select %p30, 0, %s29
      %s32 = sadd.s32 1, %s23
      %s33 = scalar_select %p30, %s32, %s23
      %p34 = scmp.ge.s32.totalorder %s33, 2
      %s35 = scalar_select %p34, 0, %s33
      %s36 = ssub.s32 %s23, %s35
      %s37 = ssub.s32 %s24, %s31
      %s38 = sor.u32 %s36, %s37
      %p39 = scmp.eq.s32.totalorder %s38, 0
      %s41 = sadd.s32 %s40, 1
      %s42 = scalar_select %p39, %s40, %s41
      %p45 = pneg %p39
      %p46 = scmp.eq.s32.totalorder %s16, 3
      %p47 = por %p45, %p46
      %p48 = scmp.ne.s32.totalorder %s40, %s43
      %p49 = scmp.eq.s32.totalorder %s16, 0
      %p50 = por %p48, %p49
      %p51 = scmp.ne.s32.totalorder %s40, %s43
      %p52 = scmp.eq.s32.totalorder %s21, 3
      %p53 = por %p51, %p52
      %p54 = scmp.ne.s32.totalorder %s43, %s44
      %p55 = scmp.eq.s32.totalorder %s21, 0
      %p56 = por %p54, %p55
      %p57 = scmp.ne.s32.totalorder %s43, %s44
      %p58 = scmp.eq.s32.totalorder %s22, 3
      %p59 = por %p57, %p58
      %p61 = scmp.ne.s32.totalorder %s44, %s60
      %p62 = scmp.eq.s32.totalorder %s22, 0
      %p63 = por %p61, %p62
      %s64 = smul.u32 %s24, 4
      %s65 = ssub.s32 %s64, 1
      %p66 = scmp.gt.s32.totalorder %s65, 0
      %s67 = scalar_select %p66, %s65, 0
      %p68 = scmp.lt.s32.totalorder %s67, 7
      %s69 = scalar_select %p68, %s67, 7
      %s70 = smul.u32 %s31, 4
      %s71 = ssub.s32 %s70, 1
      %p72 = scmp.gt.s32.totalorder %s71, 0
      %s73 = scalar_select %p72, %s71, 0
      %p74 = scmp.lt.s32.totalorder %s73, 7
      %s75 = scalar_select %p74, %s73, 7
      %s76 = ssub.s32 %s23, %s35
      %s77 = ssub.s32 %s69, %s75
      %s78 = sor.u32 %s76, %s77
      %p79 = scmp.eq.s32.totalorder %s78, 0
      %s81 = sadd.s32 %s80, 1
      %s82 = scalar_select %p79, %s80, %s81
      %p85 = pneg %p79
      %p86 = scmp.eq.s32.totalorder %s16, 3
      %p87 = por %p85, %p86
      %p88 = scmp.ne.s32.totalorder %s80, %s83
      %p89 = scmp.eq.s32.totalorder %s16, 0
      %p90 = por %p88, %p89
      %p91 = scmp.ne.s32.totalorder %s80, %s83
      %p92 = scmp.eq.s32.totalorder %s21, 3
      %p93 = por %p91, %p92
      %p94 = scmp.ne.s32.totalorder %s83, %s84
      %p95 = scmp.eq.s32.totalorder %s21, 0
      %p96 = por %p94, %p95
      %p97 = scmp.ne.s32.totalorder %s83, %s84
      %p98 = scmp.eq.s32.totalorder %s22, 3
      %p99 = por %p97, %p98
      %p101 = scmp.ne.s32.totalorder %s84, %s100
      %p102 = scmp.eq.s32.totalorder %s22, 0
      %p103 = por %p101, %p102
      %s104 = sadd.s32 %s24, 1
      %s105 = smul.u32 %s104, 4
      %p106 = scmp.gt.s32.totalorder %s105, 0
      %s107 = scalar_select %p106, %s105, 0
      %p108 = scmp.lt.s32.totalorder %s107, 7
      %s109 = scalar_select %p108, %s107, 7
      %s110 = sadd.s32 %s31, 1
      %s111 = smul.u32 %s110, 4
      %p112 = scmp.gt.s32.totalorder %s111, 0
      %s113 = scalar_select %p112, %s111, 0
      %p114 = scmp.lt.s32.totalorder %s113, 7
      %s115 = scalar_select %p114, %s113, 7
      %s116 = ssub.s32 %s23, %s35
      %s117 = ssub.s32 %s109, %s115
      %s118 = sor.u32 %s116, %s117
      %p119 = scmp.eq.s32.totalorder %s118, 0
      %s121 = sadd.s32 %s120, 1
      %s122 = scalar_select %p119, %s120, %s121
      %p125 = pneg %p119
      %p126 = scmp.eq.s32.totalorder %s16, 3
      %p127 = por %p125, %p126
      %p128 = scmp.ne.s32.totalorder %s120, %s123
      %p129 = scmp.eq.s32.totalorder %s16, 0
      %p130 = por %p128, %p129
      %p131 = scmp.ne.s32.totalorder %s120, %s123
      %p132 = scmp.eq.s32.totalorder %s21, 3
      %p133 = por %p131, %p132
      %p134 = scmp.ne.s32.totalorder %s123, %s124
      %p135 = scmp.eq.s32.totalorder %s21, 0
      %p136 = por %p134, %p135
      %p137 = scmp.ne.s32.totalorder %s123, %s124
      %p138 = scmp.eq.s32.totalorder %s22, 3
      %p139 = por %p137, %p138
      %p141 = scmp.ne.s32.totalorder %s124, %s140
      %p142 = scmp.eq.s32.totalorder %s22, 0
      %p143 = por %p141, %p142
      %s145 = sadd.s32 %s144, 1
      %p148 = scmp.eq.s32.totalorder %s16, 3
      %p149 = scmp.ne.s32.totalorder %s144, %s146
      %p150 = scmp.eq.s32.totalorder %s16, 0
      %p151 = por %p149, %p150
      %p152 = scmp.ne.s32.totalorder %s144, %s146
      %p153 = scmp.eq.s32.totalorder %s21, 3
      %p154 = por %p152, %p153
      %p155 = scmp.ne.s32.totalorder %s146, %s147
      %p156 = scmp.eq.s32.totalorder %s21, 0
      %p157 = por %p155, %p156
      %p158 = scmp.ne.s32.totalorder %s146, %s147
      %p159 = scmp.eq.s32.totalorder %s22, 3
      %p160 = por %p158, %p159
      %p162 = scmp.ne.s32.totalorder %s147, %s161
      %p163 = scmp.eq.s32.totalorder %s22, 0
      %p164 = por %p162, %p163
      %s166 = sadd.s32 %s165, 1
      %p169 = scmp.eq.s32.totalorder %s16, 3
      %p170 = scmp.ne.s32.totalorder %s165, %s167
      %p171 = scmp.eq.s32.totalorder %s16, 0
      %p172 = por %p170, %p171
      %p173 = scmp.ne.s32.totalorder %s165, %s167
      %p174 = scmp.eq.s32.totalorder %s21, 3
      %p175 = por %p173, %p174
      %p176 = scmp.ne.s32.totalorder %s167, %s168
      %p177 = scmp.eq.s32.totalorder %s21, 0
      %p178 = por %p176, %p177
      %p179 = scmp.ne.s32.totalorder %s167, %s168
      %p180 = scmp.eq.s32.totalorder %s22, 3
      %p181 = por %p179, %p180
      %p183 = scmp.ne.s32.totalorder %s168, %s182
      %p184 = scmp.eq.s32.totalorder %s22, 0
      %p185 = por %p183, %p184
      %s187 = sadd.s32 %s186, 1
      %p190 = scmp.eq.s32.totalorder %s16, 3
      %p191 = scmp.ne.s32.totalorder %s186, %s188
      %p192 = scmp.eq.s32.totalorder %s16, 0
      %p193 = por %p191, %p192
      %p194 = scmp.ne.s32.totalorder %s186, %s188
      %p195 = scmp.eq.s32.totalorder %s21, 3
      %p196 = por %p194, %p195
      %p197 = scmp.ne.s32.totalorder %s188, %s189
      %p198 = scmp.eq.s32.totalorder %s21, 0
      %p199 = por %p197, %p198
      %p200 = scmp.ne.s32.totalorder %s188, %s189
      %p201 = scmp.eq.s32.totalorder %s22, 3
      %p202 = por %p200, %p201
      %p204 = scmp.ne.s32.totalorder %s189, %s203
      %p205 = scmp.eq.s32.totalorder %s22, 0
      %p206 = por %p204, %p205
      %s207 = ssub.s32 %s23, %s35
      %s208 = ssub.s32 %s24, %s31
      %s209 = sor.u32 %s207, %s208
      %p210 = scmp.eq.s32.totalorder %s209, 0
      %s212 = sadd.s32 %s211, 1
      %s213 = scalar_select %p210, %s211, %s212
      %p216 = pneg %p210
      %p217 = scmp.eq.s32.totalorder %s16, 3
      %p218 = por %p216, %p217
      %p219 = scmp.ne.s32.totalorder %s211, %s214
      %p220 = scmp.eq.s32.totalorder %s16, 0
      %p221 = por %p219, %p220
      %p222 = scmp.ne.s32.totalorder %s211, %s214
      %p223 = scmp.eq.s32.totalorder %s21, 3
      %p224 = por %p222, %p223
      %p225 = scmp.ne.s32.totalorder %s214, %s215
      %p226 = scmp.eq.s32.totalorder %s21, 0
      %p227 = por %p225, %p226
      %p228 = scmp.ne.s32.totalorder %s214, %s215
      %p229 = scmp.eq.s32.totalorder %s22, 3
      %p230 = por %p228, %p229
      %p232 = scmp.ne.s32.totalorder %s215, %s231
      %p233 = scmp.eq.s32.totalorder %s22, 0
      %p234 = por %p232, %p233
      %p235 = scmp.le.s32.totalorder 1, %s16
      %p236 = scmp.lt.s32.totalorder %s16, 5
      %p237 = pnand %p235, %p236
      %p238 = pneg %p237
      // Predicated region
      $region9: #{tpu_custom_call.1} parent=5 // pred_check
        _
      $region10: #{tpu_custom_call.1} parent=5 // pred_check_branch
        %240 = sbr.rel (%p237) target = $region12
      $region11: #{tpu_custom_call.1} parent=5 // pred_region
        %s241 = ssub.s32 %s16, 1
        // Predicated region
        $region13: #{tpu_custom_call.1} parent=11 // pred_check
          %p242 = pneg %p157
        $region14: #{tpu_custom_call.1} parent=11 // pred_check_branch
          %244 = sbr.rel (%p242) target = $region16
        $region15: #{tpu_custom_call.1} parent=11 // pred_region
          _
        $region16: #{tpu_custom_call.1} parent=11 // pred_fallthru
          _
        // Predicated region
        $region17: #{tpu_custom_call.1} parent=11 // pred_check
          %p245 = pneg %p178
        $region18: #{tpu_custom_call.1} parent=11 // pred_check_branch
          %247 = sbr.rel (%p245) target = $region20
        $region19: #{tpu_custom_call.1} parent=11 // pred_region
          %s249 = ssub.s32 9216, 9216
          %250 = vsyncadd [#allocation5], %s249
          %s251 = sshll.u32 [#allocation4], 4
          %s252 = int_to_ptr.vmem [resolvable:$true] %s251
          %257 = dma.hbm_to_vmem [thread:$0]  %s4, 9216, %s252, [#allocation5], 192, 192, 12
        $region20: #{tpu_custom_call.1} parent=11 // pred_fallthru
          _
        // Predicated region
        $region21: #{tpu_custom_call.1} parent=11 // pred_check
          %p258 = pneg %p199
        $region22: #{tpu_custom_call.1} parent=11 // pred_check_branch
          %260 = sbr.rel (%p258) target = $region24
        $region23: #{tpu_custom_call.1} parent=11 // pred_region
          _
        $region24: #{tpu_custom_call.1} parent=11 // pred_fallthru
          _
      $region12: #{tpu_custom_call.1} parent=5 // pred_fallthru
        _
      %p261 = scmp.lt.s32.totalorder %s16, 4
      // Predicated region
      $region25: #{tpu_custom_call.1} parent=5 // pred_check
        %p262 = pneg %p261
      $region26: #{tpu_custom_call.1} parent=5 // pred_check_branch
        %264 = sbr.rel (%p262) target = $region28
      $region27: #{tpu_custom_call.1} parent=5 // pred_region
        // Predicated region
        $region29: #{tpu_custom_call.1} parent=27 // pred_check
          %p265 = pneg %p50
        $region30: #{tpu_custom_call.1} parent=27 // pred_check_branch
          %267 = sbr.rel (%p265) target = $region32
        $region31: #{tpu_custom_call.1} parent=27 // pred_region
          %s268 = smul.u32 8, %s24
          %p269 = scmp.lt.s32.totalorder %s23, 1
          %s270 = scalar_select %p269, %s23, 1
          %p271 = scmp.lt.s32.totalorder %s268, 15
          %s272 = scalar_select %p271, %s268, 15
          %s273 = smul.addr %s272, 2
          %s274 = smul.addr %s270, 32
          %s275 = sadd.s32 %s273, %s274
          %s276 = smul.addr %s275, 4
          %s277 = scalar_lea.vmem %s0, %s276
          %s278 = smul.u32 8, %s24
        $region32: #{tpu_custom_call.1} parent=27 // pred_fallthru
          _
        // Predicated region
        $region33: #{tpu_custom_call.1} parent=27 // pred_check
          %p279 = pneg %p90
        $region34: #{tpu_custom_call.1} parent=27 // pred_check_branch
          %281 = sbr.rel (%p279) target = $region36
        $region35: #{tpu_custom_call.1} parent=27 // pred_region
          %s282 = smul.u32 %s24, 4
          %s283 = ssub.s32 %s282, 1
          %p284 = scmp.gt.s32.totalorder %s283, 0
          %s285 = scalar_select %p284, %s283, 0
          %p286 = scmp.lt.s32.totalorder %s285, 7
          %s287 = scalar_select %p286, %s285, 7
          %s288 = smul.u32 2, %s287
          %p289 = scmp.lt.s32.totalorder %s23, 1
          %s290 = scalar_select %p289, %s23, 1
          %p291 = scmp.lt.s32.totalorder %s288, 15
          %s292 = scalar_select %p291, %s288, 15
          %s293 = smul.addr %s292, 2
          %s294 = smul.addr %s290, 32
          %s295 = sadd.s32 %s293, %s294
          %s296 = smul.addr %s295, 4
          %s297 = scalar_lea.vmem %s1, %s296
          %s298 = smul.u32 %s24, 4
          %s299 = ssub.s32 %s298, 1
          %p300 = scmp.gt.s32.totalorder %s299, 0
          %s301 = scalar_select %p300, %s299, 0
          %p302 = scmp.lt.s32.totalorder %s301, 7
          %s303 = scalar_select %p302, %s301, 7
          %s304 = smul.u32 2, %s303
        $region36: #{tpu_custom_call.1} parent=27 // pred_fallthru
          _
        // Predicated region
        $region37: #{tpu_custom_call.1} parent=27 // pred_check
          %p305 = pneg %p130
        $region38: #{tpu_custom_call.1} parent=27 // pred_check_branch
          %307 = sbr.rel (%p305) target = $region40
        $region39: #{tpu_custom_call.1} parent=27 // pred_region
          %s308 = sadd.s32 %s24, 1
          %s309 = smul.u32 %s308, 4
          %p310 = scmp.gt.s32.totalorder %s309, 0
          %s311 = scalar_select %p310, %s309, 0
          %p312 = scmp.lt.s32.totalorder %s311, 7
          %s313 = scalar_select %p312, %s311, 7
          %s314 = smul.u32 2, %s313
          %p315 = scmp.lt.s32.totalorder %s23, 1
          %s316 = scalar_select %p315, %s23, 1
          %p317 = scmp.lt.s32.totalorder %s314, 15
          %s318 = scalar_select %p317, %s314, 15
          %s319 = smul.addr %s318, 2
          %s320 = smul.addr %s316, 32
          %s321 = sadd.s32 %s319, %s320
          %s322 = smul.addr %s321, 4
          %s323 = scalar_lea.vmem %s2, %s322
          %s324 = sadd.s32 %s24, 1
          %s325 = smul.u32 %s324, 4
          %p326 = scmp.gt.s32.totalorder %s325, 0
          %s327 = scalar_select %p326, %s325, 0
          %p328 = scmp.lt.s32.totalorder %s327, 7
          %s329 = scalar_select %p328, %s327, 7
          %s330 = smul.u32 2, %s329
        $region40: #{tpu_custom_call.1} parent=27 // pred_fallthru
          _
      $region28: #{tpu_custom_call.1} parent=5 // pred_fallthru
        _
      %p331 = scmp.le.s32.totalorder 1, %s16
      %p332 = scmp.lt.s32.totalorder %s16, 5
      %p333 = pnand %p331, %p332
      %p334 = pneg %p333
      // Predicated region
      $region41: #{tpu_custom_call.1} parent=5 // pred_check
        _
      $region42: #{tpu_custom_call.1} parent=5 // pred_check_branch
        %336 = sbr.rel (%p333) target = $region44
      $region43: #{tpu_custom_call.1} parent=5 // pred_region
        %s337 = ssub.s32 %s16, 1
        // Predicated region
        $region45: #{tpu_custom_call.1} parent=43 // pred_check
          %p338 = pneg %p178
        $region46: #{tpu_custom_call.1} parent=43 // pred_check_branch
          %340 = sbr.rel (%p338) target = $region48
        $region47: #{tpu_custom_call.1} parent=43 // pred_region
          %341 = dma.done [#allocation5], 9216
        $region48: #{tpu_custom_call.1} parent=43 // pred_fallthru
          _
        %s342 = smul.u32 8, %s26
        %p343 = scmp.lt.s32.totalorder %s25, 1
        %s344 = scalar_select %p343, %s25, 1
        %p345 = scmp.lt.s32.totalorder %s342, 15
        %s346 = scalar_select %p345, %s342, 15
        %s347 = smul.addr %s346, 2
        %s348 = smul.addr %s344, 32
        %s349 = sadd.s32 %s347, %s348
        %s350 = smul.addr %s349, 4
        %s351 = scalar_lea.vmem %s0, %s350
        %p352 = pneg %p56
        %p353 = pneg %p53
        %s354 = smul.u32 %s26, 4
        %s355 = ssub.s32 %s354, 1
        %p356 = scmp.gt.s32.totalorder %s355, 0
        %s357 = scalar_select %p356, %s355, 0
        %p358 = scmp.lt.s32.totalorder %s357, 7
        %s359 = scalar_select %p358, %s357, 7
        %s360 = smul.u32 2, %s359
        %p361 = scmp.lt.s32.totalorder %s25, 1
        %s362 = scalar_select %p361, %s25, 1
        %p363 = scmp.lt.s32.totalorder %s360, 15
        %s364 = scalar_select %p363, %s360, 15
        %s365 = smul.addr %s364, 2
        %s366 = smul.addr %s362, 32
        %s367 = sadd.s32 %s365, %s366
        %s368 = smul.addr %s367, 4
        %s369 = scalar_lea.vmem %s1, %s368
        %p370 = pneg %p96
        %p371 = pneg %p93
        %s372 = sadd.s32 %s26, 1
        %s373 = smul.u32 %s372, 4
        %p374 = scmp.gt.s32.totalorder %s373, 0
        %s375 = scalar_select %p374, %s373, 0
        %p376 = scmp.lt.s32.totalorder %s375, 7
        %s377 = scalar_select %p376, %s375, 7
        %s378 = smul.u32 2, %s377
        %p379 = scmp.lt.s32.totalorder %s25, 1
        %s380 = scalar_select %p379, %s25, 1
        %p381 = scmp.lt.s32.totalorder %s378, 15
        %s382 = scalar_select %p381, %s378, 15
        %s383 = smul.addr %s382, 2
        %s384 = smul.addr %s380, 32
        %s385 = sadd.s32 %s383, %s384
        %s386 = smul.addr %s385, 4
        %s387 = scalar_lea.vmem %s2, %s386
        %p388 = pneg %p136
        %p389 = pneg %p133
        %p390 = pneg %p157
        %p391 = pneg %p154
        %p392 = pneg %p178
        %p393 = pneg %p175
        %p394 = pneg %p199
        %p395 = pneg %p196
        %p396 = pneg %p227
        %p397 = pneg %p224
        %s398 = sand.u32 %s214, 1
        %s399 = scalar_lea.sflag [#allocation6], %s398
        %s400 = sand.u32 %s214, 1
        %s401 = smul.addr %s400, 64
        %s402 = scalar_lea.vmem [#allocation7], %s401
        %s403 = smul.u32 8, %s26
        %p404 = scmp.lt.s32.totalorder %s25, 1
        %s405 = scalar_select %p404, %s25, 1
        %p406 = scmp.lt.s32.totalorder %s403, 15
        %s407 = scalar_select %p406, %s403, 15
        %s408 = smul.addr %s407, 2
        %s409 = smul.addr %s405, 32
        %s410 = sadd.s32 %s408, %s409
        %s411 = smul.addr %s410, 4
        %s412 = scalar_lea.vmem %s0, %s411
        %s413 = smul.u32 8, %s26
        %s414 = smul.u32 %s26, 4
        %s415 = ssub.s32 %s414, 1
        %p416 = scmp.gt.s32.totalorder %s415, 0
        %s417 = scalar_select %p416, %s415, 0
        %p418 = scmp.lt.s32.totalorder %s417, 7
        %s419 = scalar_select %p418, %s417, 7
        %s420 = smul.u32 2, %s419
        %p421 = scmp.lt.s32.totalorder %s25, 1
        %s422 = scalar_select %p421, %s25, 1
        %p423 = scmp.lt.s32.totalorder %s420, 15
        %s424 = scalar_select %p423, %s420, 15
        %s425 = smul.addr %s424, 2
        %s426 = smul.addr %s422, 32
        %s427 = sadd.s32 %s425, %s426
        %s428 = smul.addr %s427, 4
        %s429 = scalar_lea.vmem %s1, %s428
        %s430 = smul.u32 %s26, 4
        %s431 = ssub.s32 %s430, 1
        %p432 = scmp.gt.s32.totalorder %s431, 0
        %s433 = scalar_select %p432, %s431, 0
        %p434 = scmp.lt.s32.totalorder %s433, 7
        %s435 = scalar_select %p434, %s433, 7
        %s436 = smul.u32 2, %s435
        %s437 = sadd.s32 %s26, 1
        %s438 = smul.u32 %s437, 4
        %p439 = scmp.gt.s32.totalorder %s438, 0
        %s440 = scalar_select %p439, %s438, 0
        %p441 = scmp.lt.s32.totalorder %s440, 7
        %s442 = scalar_select %p441, %s440, 7
        %s443 = smul.u32 2, %s442
        %p444 = scmp.lt.s32.totalorder %s25, 1
        %s445 = scalar_select %p444, %s25, 1
        %p446 = scmp.lt.s32.totalorder %s443, 15
        %s447 = scalar_select %p446, %s443, 15
        %s448 = smul.addr %s447, 2
        %s449 = smul.addr %s445, 32
        %s450 = sadd.s32 %s448, %s449
        %s451 = smul.addr %s450, 4
        %s452 = scalar_lea.vmem %s2, %s451
        %s453 = sadd.s32 %s26, 1
        %s454 = smul.u32 %s453, 4
        %p455 = scmp.gt.s32.totalorder %s454, 0
        %s456 = scalar_select %p455, %s454, 0
        %p457 = scmp.lt.s32.totalorder %s456, 7
        %s458 = scalar_select %p457, %s456, 7
        %s459 = smul.u32 2, %s458
        %s460 = smul.u32 8, %s26
        %462 = vst [vmem:[#allocation2] sm:$0xf] 0
        %463 = vst [vmem:[#allocation2 + $0x4] sm:$0xf] 0
        %464 = vst [vmem:[#allocation2 + $0x8] sm:$0xf] 0
        %465 = vst [vmem:[#allocation2 + $0xc] sm:$0xf] 0
        %466 = vst [vmem:[#allocation2 + $0x10] sm:$0xf] 0
        %467 = vst [vmem:[#allocation2 + $0x14] sm:$0xf] 0
        %468 = vst [vmem:[#allocation2 + $0x18] sm:$0xf] 0
        %469 = vst [vmem:[#allocation2 + $0x1c] sm:$0xf] 0
        %470 = vst [vmem:[#allocation2 + $0x20] sm:$0xf] 0
        %471 = vst [vmem:[#allocation2 + $0x24] sm:$0xf] 0
        %472 = vst [vmem:[#allocation2 + $0x28] sm:$0xf] 0
        %473 = vst [vmem:[#allocation2 + $0x2c] sm:$0xf] 0
        %474 = vst [vmem:[#allocation2 + $0x30] sm:$0xf] 0
        %475 = vst [vmem:[#allocation2 + $0x34] sm:$0xf] 0
        %476 = vst [vmem:[#allocation2 + $0x38] sm:$0xf] 0
        %477 = vst [vmem:[#allocation2 + $0x3c] sm:$0xf] 0
        %478 = vst [vmem:[#allocation2 + $0x40] sm:$0xf] 0
        %479 = vst [vmem:[#allocation2 + $0x44] sm:$0xf] 0
        %480 = vst [vmem:[#allocation2 + $0x48] sm:$0xf] 0
        %481 = vst [vmem:[#allocation2 + $0x4c] sm:$0xf] 0
        %482 = vst [vmem:[#allocation2 + $0x50] sm:$0xf] 0
        %483 = vst [vmem:[#allocation2 + $0x54] sm:$0xf] 0
        %484 = vst [vmem:[#allocation2 + $0x58] sm:$0xf] 0
        %485 = vst [vmem:[#allocation2 + $0x5c] sm:$0xf] 0
        %486 = vst [vmem:[#allocation2 + $0x60] sm:$0xf] 0
        %487 = vst [vmem:[#allocation2 + $0x64] sm:$0xf] 0
        %488 = vst [vmem:[#allocation2 + $0x68] sm:$0xf] 0
        %489 = vst [vmem:[#allocation2 + $0x6c] sm:$0xf] 0
        %490 = vst [vmem:[#allocation2 + $0x70] sm:$0xf] 0
        %491 = vst [vmem:[#allocation2 + $0x74] sm:$0xf] 0
        %492 = vst [vmem:[#allocation2 + $0x78] sm:$0xf] 0
        %493 = vst [vmem:[#allocation2 + $0x7c] sm:$0xf] 0
        %494 = vst [vmem:[#allocation2 + $0x80] sm:$0xf] 0
        %495 = vst [vmem:[#allocation2 + $0x84] sm:$0xf] 0
        %496 = vst [vmem:[#allocation2 + $0x88] sm:$0xf] 0
        %497 = vst [vmem:[#allocation2 + $0x8c] sm:$0xf] 0
        %v498 = vld [vmem:[%s412] sm:$0xf]
        %v499 = vld [vmem:[%s412 + $0x4] sm:$0xf]
        %v500 = vld [vmem:[%s412 + $0x8] sm:$0xf]
        %v501 = vld [vmem:[%s412 + $0xc] sm:$0xf]
        %v502 = vld [vmem:[%s412 + $0x10] sm:$0xf]
        %v503 = vld [vmem:[%s412 + $0x14] sm:$0xf]
        %v504 = vld [vmem:[%s412 + $0x18] sm:$0xf]
        %v505 = vld [vmem:[%s412 + $0x1c] sm:$0xf]
        %v506 = vld [vmem:[%s412 + $0x20] sm:$0xf]
        %v507 = vld [vmem:[%s412 + $0x24] sm:$0xf]
        %v508 = vld [vmem:[%s412 + $0x28] sm:$0xf]
        %v509 = vld [vmem:[%s412 + $0x2c] sm:$0xf]
        %v510 = vld [vmem:[%s412 + $0x30] sm:$0xf]
        %v511 = vld [vmem:[%s412 + $0x34] sm:$0xf]
        %v512 = vld [vmem:[%s412 + $0x38] sm:$0xf]
        %v513 = vld [vmem:[%s412 + $0x3c] sm:$0xf]
        %s514 = scalar_lea.vmem [#allocation2], 24
        %vm515 = vcmask 27648
        %516 = vst.msk [vmem:[%s514] sm:$0xf] %vm515, %v498
        %517 = vst.msk [vmem:[%s514 + $0x4] sm:$0xf] %vm515, %v499
        %518 = vst.msk [vmem:[%s514 + $0xc] sm:$0xf] %vm515, %v500
        %519 = vst.msk [vmem:[%s514 + $0x10] sm:$0xf] %vm515, %v501
        %520 = vst.msk [vmem:[%s514 + $0x18] sm:$0xf] %vm515, %v502
        %521 = vst.msk [vmem:[%s514 + $0x1c] sm:$0xf] %vm515, %v503
        %522 = vst.msk [vmem:[%s514 + $0x24] sm:$0xf] %vm515, %v504
        %523 = vst.msk [vmem:[%s514 + $0x28] sm:$0xf] %vm515, %v505
        %524 = vst.msk [vmem:[%s514 + $0x30] sm:$0xf] %vm515, %v506
        %525 = vst.msk [vmem:[%s514 + $0x34] sm:$0xf] %vm515, %v507
        %526 = vst.msk [vmem:[%s514 + $0x3c] sm:$0xf] %vm515, %v508
        %527 = vst.msk [vmem:[%s514 + $0x40] sm:$0xf] %vm515, %v509
        %528 = vst.msk [vmem:[%s514 + $0x48] sm:$0xf] %vm515, %v510
        %529 = vst.msk [vmem:[%s514 + $0x4c] sm:$0xf] %vm515, %v511
        %530 = vst.msk [vmem:[%s514 + $0x54] sm:$0xf] %vm515, %v512
        %531 = vst.msk [vmem:[%s514 + $0x58] sm:$0xf] %vm515, %v513
        %p532 = scmp.gt.s32.totalorder %s26, 0
        // Predicated region
        $region49: #{tpu_custom_call.1} parent=43 // pred_check
          %p533 = pneg %p532
        $region50: #{tpu_custom_call.1} parent=43 // pred_check_branch
          %535 = sbr.rel (%p533) target = $region52
        $region51: #{tpu_custom_call.1} parent=43 // pred_region
          %v536 = vld [vmem:[%s429] sm:$0xf]
          %v537 = vld [vmem:[%s429 + $0x4] sm:$0xf]
          %v538 = vld [vmem:[%s429 + $0x8] sm:$0xf]
          %v539 = vld [vmem:[%s429 + $0xc] sm:$0xf]
          %540 = vst.msk [vmem:[#allocation2] sm:$0xf] %vm515, %v536
          %541 = vst.msk [vmem:[#allocation2 + $0x4] sm:$0xf] %vm515, %v537
          %542 = vst.msk [vmem:[#allocation2 + $0xc] sm:$0xf] %vm515, %v538
          %543 = vst.msk [vmem:[#allocation2 + $0x10] sm:$0xf] %vm515, %v539
        $region52: #{tpu_custom_call.1} parent=43 // pred_fallthru
          _
        %p544 = scmp.lt.s32.totalorder %s26, 1
        // Predicated region
        $region53: #{tpu_custom_call.1} parent=43 // pred_check
          %p545 = pneg %p544
        $region54: #{tpu_custom_call.1} parent=43 // pred_check_branch
          %547 = sbr.rel (%p545) target = $region56
        $region55: #{tpu_custom_call.1} parent=43 // pred_region
          %v548 = vld [vmem:[%s452] sm:$0xf]
          %v549 = vld [vmem:[%s452 + $0x4] sm:$0xf]
          %v550 = vld [vmem:[%s452 + $0x8] sm:$0xf]
          %v551 = vld [vmem:[%s452 + $0xc] sm:$0xf]
          %s552 = scalar_lea.vmem [#allocation2], 120
          %553 = vst.msk [vmem:[%s552] sm:$0xf] %vm515, %v548
          %554 = vst.msk [vmem:[%s552 + $0x4] sm:$0xf] %vm515, %v549
          %555 = vst.msk [vmem:[%s552 + $0xc] sm:$0xf] %vm515, %v550
          %556 = vst.msk [vmem:[%s552 + $0x10] sm:$0xf] %vm515, %v551
        $region56: #{tpu_custom_call.1} parent=43 // pred_fallthru
          _
        %v557 = vld [vmem:[#allocation2] sm:$0xf]
        %v558 = vld [vmem:[#allocation2 + $0x4] sm:$0xf]
        %v559 = vld [vmem:[#allocation2 + $0x8] sm:$0xf]
        %v560 = vld [vmem:[#allocation2 + $0xc] sm:$0xf]
        %v561 = vld [vmem:[#allocation2 + $0x10] sm:$0xf]
        %v562 = vld [vmem:[#allocation2 + $0x14] sm:$0xf]
        %v563 = vld [vmem:[#allocation2 + $0x18] sm:$0xf]
        %v564 = vld [vmem:[#allocation2 + $0x1c] sm:$0xf]
        %v565 = vld [vmem:[#allocation2 + $0x20] sm:$0xf]
        %v566 = vld [vmem:[#allocation2 + $0x24] sm:$0xf]
        %v567 = vld [vmem:[#allocation2 + $0x28] sm:$0xf]
        %v568 = vld [vmem:[#allocation2 + $0x2c] sm:$0xf]
        %v569 = vld [vmem:[#allocation2 + $0x30] sm:$0xf]
        %v570 = vld [vmem:[#allocation2 + $0x34] sm:$0xf]
        %v571 = vld [vmem:[#allocation2 + $0x38] sm:$0xf]
        %v572 = vld [vmem:[#allocation2 + $0x3c] sm:$0xf]
        %v573 = vld [vmem:[#allocation2 + $0x40] sm:$0xf]
        %v574 = vld [vmem:[#allocation2 + $0x44] sm:$0xf]
        %v575 = vld [vmem:[#allocation2 + $0x48] sm:$0xf]
        %v576 = vld [vmem:[#allocation2 + $0x4c] sm:$0xf]
        %v577 = vld [vmem:[#allocation2 + $0x50] sm:$0xf]
        %v578 = vld [vmem:[#allocation2 + $0x54] sm:$0xf]
        %v579 = vld [vmem:[#allocation2 + $0x58] sm:$0xf]
        %v580 = vld [vmem:[#allocation2 + $0x5c] sm:$0xf]
        %v581 = vld [vmem:[#allocation2 + $0x60] sm:$0xf]
        %v582 = vld [vmem:[#allocation2 + $0x64] sm:$0xf]
        %v583 = vld [vmem:[#allocation2 + $0x68] sm:$0xf]
        %v584 = vld [vmem:[#allocation2 + $0x6c] sm:$0xf]
        %v585 = vld [vmem:[#allocation2 + $0x70] sm:$0xf]
        %v586 = vld [vmem:[#allocation2 + $0x74] sm:$0xf]
        %v587 = vld [vmem:[#allocation2 + $0x78] sm:$0xf]
        %v588 = vld [vmem:[#allocation2 + $0x7c] sm:$0xf]
        %v589 = vld [vmem:[#allocation2 + $0x80] sm:$0xf]
        %v590 = vld [vmem:[#allocation2 + $0x84] sm:$0xf]
        %v591 = vld [vmem:[#allocation2 + $0x88] sm:$0xf]
        %v592 = vld [vmem:[#allocation2 + $0x8c] sm:$0xf]
        %v593 = vld [vmem:[%s3] sm:$0xff]
        %v594 = vld [vmem:[%s3 + $0x8] sm:$0xf]
        %v595 = vld [vmem:[%s3 + $0xc] sm:$0xff]
        %v596 = vld [vmem:[%s3 + $0x14] sm:$0xf]
        %v597 = vld [vmem:[%s3 + $0x18] sm:$0xff]
        %v598 = vld [vmem:[%s3 + $0x20] sm:$0xf]
        %v599 = vld [vmem:[%s3 + $0x24] sm:$0xff]
        %v600 = vld [vmem:[%s3 + $0x2c] sm:$0xf]
        %v601 = vld [vmem:[%s3 + $0x30] sm:$0xff]
        %v602 = vld [vmem:[%s3 + $0x38] sm:$0xf]
        %v603 = vld [vmem:[%s3 + $0x3c] sm:$0xff]
        %v604 = vld [vmem:[%s3 + $0x44] sm:$0xf]
        %v605 = vld [vmem:[%s3 + $0x48] sm:$0xff]
        %v606 = vld [vmem:[%s3 + $0x50] sm:$0xf]
        %v607 = vld [vmem:[%s3 + $0x54] sm:$0xff]
        %v608 = vld [vmem:[%s3 + $0x5c] sm:$0xf]
        %v609 = vld [vmem:[%s3 + $0x60] sm:$0xff]
        %v610 = vld [vmem:[%s3 + $0x68] sm:$0xf]
        %v611 = vld [vmem:[%s3 + $0x6c] sm:$0xff]
        %v612 = vld [vmem:[%s3 + $0x74] sm:$0xf]
        %v613 = vld [vmem:[%s3 + $0x78] sm:$0xff]
        %v614 = vld [vmem:[%s3 + $0x80] sm:$0xf]
        %v615 = vld [vmem:[%s3 + $0x84] sm:$0xff]
        %v616 = vld [vmem:[%s3 + $0x8c] sm:$0xf]
        %v617 = vld [vmem:[%s3 + $0x90] sm:$0xff]
        %v618 = vld [vmem:[%s3 + $0x98] sm:$0xf]
        %v619 = vld [vmem:[%s3 + $0x9c] sm:$0xff]
        %v620 = vld [vmem:[%s3 + $0xa4] sm:$0xf]
        %v621 = vld [vmem:[%s3 + $0xa8] sm:$0xff]
        %v622 = vld [vmem:[%s3 + $0xb0] sm:$0xf]
        %v623 = vld [vmem:[%s3 + $0xb4] sm:$0xff]
        %v624 = vld [vmem:[%s3 + $0xbc] sm:$0xf]
        %s625 = scalar_lea.vmem %s3, 192
        %v626 = vld [vmem:[%s625] sm:$0xff]
        %v627 = vld [vmem:[%s625 + $0x8] sm:$0xf]
        %v628 = vld [vmem:[%s625 + $0xc] sm:$0xff]
        %v629 = vld [vmem:[%s625 + $0x14] sm:$0xf]
        %v630 = vld [vmem:[%s625 + $0x18] sm:$0xff]
        %v631 = vld [vmem:[%s625 + $0x20] sm:$0xf]
        %v632 = vld [vmem:[%s625 + $0x24] sm:$0xff]
        %v633 = vld [vmem:[%s625 + $0x2c] sm:$0xf]
        %v634 = vld [vmem:[%s625 + $0x30] sm:$0xff]
        %v635 = vld [vmem:[%s625 + $0x38] sm:$0xf]
        %v636 = vld [vmem:[%s625 + $0x3c] sm:$0xff]
        %v637 = vld [vmem:[%s625 + $0x44] sm:$0xf]
        %v638 = vld [vmem:[%s625 + $0x48] sm:$0xff]
        %v639 = vld [vmem:[%s625 + $0x50] sm:$0xf]
        %v640 = vld [vmem:[%s625 + $0x54] sm:$0xff]
        %v641 = vld [vmem:[%s625 + $0x5c] sm:$0xf]
        %v642 = vld [vmem:[%s625 + $0x60] sm:$0xff]
        %v643 = vld [vmem:[%s625 + $0x68] sm:$0xf]
        %v644 = vld [vmem:[%s625 + $0x6c] sm:$0xff]
        %v645 = vld [vmem:[%s625 + $0x74] sm:$0xf]
        %v646 = vld [vmem:[%s625 + $0x78] sm:$0xff]
        %v647 = vld [vmem:[%s625 + $0x80] sm:$0xf]
        %v648 = vld [vmem:[%s625 + $0x84] sm:$0xff]
        %v649 = vld [vmem:[%s625 + $0x8c] sm:$0xf]
        %v650 = vld [vmem:[%s625 + $0x90] sm:$0xff]
        %v651 = vld [vmem:[%s625 + $0x98] sm:$0xf]
        %v652 = vld [vmem:[%s625 + $0x9c] sm:$0xff]
        %v653 = vld [vmem:[%s625 + $0xa4] sm:$0xf]
        %v654 = vld [vmem:[%s625 + $0xa8] sm:$0xff]
        %v655 = vld [vmem:[%s625 + $0xb0] sm:$0xf]
        %v656 = vld [vmem:[%s625 + $0xb4] sm:$0xff]
        %v657 = vld [vmem:[%s625 + $0xbc] sm:$0xf]
        %v688 = vunpack.c.l.b16 %v560
        %v689 = vunpack.c.l.b16 %v561
        %v690 = vunpack.c.l.b16 %v562
        %v691 = vunpack.c.l.b16 %v563
        %v692 = vunpack.c.l.b16 %v564
        %v693 = vunpack.c.l.b16 %v565
        %v694 = vunpack.c.l.b16 %v566
        %v695 = vunpack.c.l.b16 %v567
        %v696 = vunpack.c.l.b16 %v568
        %v697 = vunpack.c.l.b16 %v569
        %v698 = vunpack.c.l.b16 %v570
        %v699 = vunpack.c.l.b16 %v571
        %v700 = vunpack.c.l.b16 %v572
        %v701 = vunpack.c.l.b16 %v573
        %v702 = vunpack.c.l.b16 %v574
        %v703 = vunpack.c.l.b16 %v575
        %v704 = vunpack.c.l.b16 %v576
        %v705 = vunpack.c.l.b16 %v577
        %v706 = vunpack.c.l.b16 %v578
        %v707 = vunpack.c.l.b16 %v579
        %v708 = vunpack.c.l.b16 %v580
        %v709 = vunpack.c.l.b16 %v581
        %v710 = vunpack.c.l.b16 %v582
        %v711 = vunpack.c.l.b16 %v583
        %v712 = vunpack.c.l.b16 %v584
        %v713 = vunpack.c.l.b16 %v585
        %v714 = vunpack.c.l.b16 %v586
        %v715 = vunpack.c.l.b16 %v587
        %v716 = vunpack.c.l.b16 %v588
        %v717 = vunpack.c.l.b16 %v589
        %v718 = vpack.c.b16 %v689, %v688
        %v719 = vpack.c.b16 %v691, %v690
        %v720 = vpack.c.b16 %v693, %v692
        %v721 = vpack.c.b16 %v695, %v694
        %v722 = vpack.c.b16 %v697, %v696
        %v723 = vpack.c.b16 %v699, %v698
        %v724 = vpack.c.b16 %v701, %v700
        %v725 = vpack.c.b16 %v703, %v702
        %v726 = vpack.c.b16 %v705, %v704
        %v727 = vpack.c.b16 %v707, %v706
        %v728 = vpack.c.b16 %v709, %v708
        %v729 = vpack.c.b16 %v711, %v710
        %v730 = vpack.c.b16 %v713, %v712
        %v731 = vpack.c.b16 %v715, %v714
        %v732 = vpack.c.b16 %v717, %v716
        %v780 = vunpack.c.l.b16 %v626
        %v781 = vunpack.c.h.b16 %v626
        %v782 = vunpack.c.l.b16 %v627
        %v783 = vunpack.c.l.b16 %v628
        %v784 = vunpack.c.h.b16 %v628
        %v785 = vunpack.c.l.b16 %v629
        %v786 = vunpack.c.l.b16 %v630
        %v787 = vunpack.c.h.b16 %v630
        %v788 = vunpack.c.l.b16 %v631
        %v789 = vunpack.c.l.b16 %v632
        %v790 = vunpack.c.h.b16 %v632
        %v791 = vunpack.c.l.b16 %v633
        %v792 = vunpack.c.l.b16 %v634
        %v793 = vunpack.c.h.b16 %v634
        %v794 = vunpack.c.l.b16 %v635
        %v795 = vunpack.c.l.b16 %v636
        %v796 = vunpack.c.h.b16 %v636
        %v797 = vunpack.c.l.b16 %v637
        %v798 = vunpack.c.l.b16 %v638
        %v799 = vunpack.c.h.b16 %v638
        %v800 = vunpack.c.l.b16 %v639
        %v801 = vunpack.c.l.b16 %v640
        %v802 = vunpack.c.h.b16 %v640
        %v803 = vunpack.c.l.b16 %v641
        %v804 = vunpack.c.l.b16 %v642
        %v805 = vunpack.c.h.b16 %v642
        %v806 = vunpack.c.l.b16 %v643
        %v807 = vunpack.c.l.b16 %v644
        %v808 = vunpack.c.h.b16 %v644
        %v809 = vunpack.c.l.b16 %v645
        %v810 = vunpack.c.l.b16 %v646
        %v811 = vunpack.c.h.b16 %v646
        %v812 = vunpack.c.l.b16 %v647
        %v813 = vunpack.c.l.b16 %v648
        %v814 = vunpack.c.h.b16 %v648
        %v815 = vunpack.c.l.b16 %v649
        %v816 = vunpack.c.l.b16 %v650
        %v817 = vunpack.c.h.b16 %v650
        %v818 = vunpack.c.l.b16 %v651
        %v819 = vunpack.c.l.b16 %v652
        %v820 = vunpack.c.h.b16 %v652
        %v821 = vunpack.c.l.b16 %v653
        %v822 = vunpack.c.l.b16 %v654
        %v823 = vunpack.c.h.b16 %v654
        %v824 = vunpack.c.l.b16 %v655
        %v825 = vunpack.c.l.b16 %v656
        %v826 = vunpack.c.h.b16 %v656
        %v827 = vunpack.c.l.b16 %v657
        %v828 = vpack.c.b16 %v783, %v780
        %v829 = vpack.c.b16 %v784, %v781
        %v830 = vpack.c.b16 %v785, %v782
        %v831 = vpack.c.b16 %v789, %v786
        %v832 = vpack.c.b16 %v790, %v787
        %v833 = vpack.c.b16 %v791, %v788
        %v834 = vpack.c.b16 %v795, %v792
        %v835 = vpack.c.b16 %v796, %v793
        %v836 = vpack.c.b16 %v797, %v794
        %v837 = vpack.c.b16 %v801, %v798
        %v838 = vpack.c.b16 %v802, %v799
        %v839 = vpack.c.b16 %v803, %v800
        %v840 = vpack.c.b16 %v807, %v804
        %v841 = vpack.c.b16 %v808, %v805
        %v842 = vpack.c.b16 %v809, %v806
        %v843 = vpack.c.b16 %v813, %v810
        %v844 = vpack.c.b16 %v814, %v811
        %v845 = vpack.c.b16 %v815, %v812
        %v846 = vpack.c.b16 %v819, %v816
        %v847 = vpack.c.b16 %v820, %v817
        %v848 = vpack.c.b16 %v821, %v818
        %v849 = vpack.c.b16 %v825, %v822
        %v850 = vpack.c.b16 %v826, %v823
        %v851 = vpack.c.b16 %v827, %v824
        %876 = vmatprep.subr.bf16.mxu0 %v829
        %877 = vmatpush1.bf16.msra.mxu0 %v828
        %878 = vmatprep.subr.bf16.mxu0 %v832
        %879 = vmatpush1.bf16.msra.mxu0 %v831
        %880 = vmatprep.subr.bf16.mxu0 %v835
        %881 = vmatpush1.bf16.msra.mxu0 %v834
        %882 = vmatprep.subr.bf16.mxu0 %v838
        %883 = vmatpush1.bf16.msra.mxu0 %v837
        %884 = vmatprep.subr.bf16.mxu0 %v841
        %885 = vmatpush1.bf16.msra.mxu0 %v840
        %886 = vmatprep.subr.bf16.mxu0 %v844
        %887 = vmatpush1.bf16.msra.mxu0 %v843
        %888 = vmatprep.subr.bf16.mxu0 %v847
        %889 = vmatpush1.bf16.msra.mxu0 %v846
        %890 = vmatprep.subr.bf16.mxu0 %v850
        %891 = vmatpush1.bf16.msra.mxu0 %v849
        %892 = vmatprep.subr.bf16.mxu0 0
        %893 = vmatpush1.bf16.msra.mxu0 0
        %894 = vmatprep.subr.bf16.mxu0 0
        %895 = vmatpush1.bf16.msra.mxu0 0
        %896 = vmatprep.subr.bf16.mxu0 0
        %897 = vmatpush1.bf16.msra.mxu0 0
        %898 = vmatprep.subr.bf16.mxu0 0
        %899 = vmatpush1.bf16.msra.mxu0 0
        %900 = vmatprep.subr.bf16.mxu0 0
        %901 = vmatpush1.bf16.msra.mxu0 0
        %902 = vmatprep.subr.bf16.mxu0 0
        %903 = vmatpush1.bf16.msra.mxu0 0
        %904 = vmatprep.subr.bf16.mxu0 0
        %905 = vmatpush1.bf16.msra.mxu0 0
        %906 = vmatprep.subr.bf16.mxu0 0
        %907 = vmatpush1.bf16.msra.mxu0 0
        %908 = vmatprep.mubr.bf16.mxu0 0
        %909 = vmatmul.mubr.bf16.gmra.mrb[0].mxu0 %v718
        %v910 = vpop.f32.mrb[0].mxu0
        %v911 = vadd.f32 0.0, %v910
        %v912 = vpop.f32.mrb[0].mxu0
        %v913 = vadd.f32 0.0, %v912
        %v914 = vpop.f32.mrb[0].mxu0
        %v915 = vadd.f32 0.0, %v914
        %v916 = vpop.f32.mrb[0].mxu0
        %v917 = vadd.f32 0.0, %v916
        %918 = vmatprep.mubr.bf16.mxu0 0
        %919 = vmatmul.mubr.bf16.gmra.mrb[0].mxu0 %v719
        %v920 = vpop.f32.mrb[0].mxu0
        %v921 = vadd.f32 0.0, %v920
        %v922 = vpop.f32.mrb[0].mxu0
        %v923 = vadd.f32 0.0, %v922
        %v924 = vpop.f32.mrb[0].mxu0
        %v925 = vadd.f32 0.0, %v924
        %v926 = vpop.f32.mrb[0].mxu0
        %v927 = vadd.f32 0.0, %v926
        %928 = vmatprep.mubr.bf16.mxu0 0
        %929 = vmatmul.mubr.bf16.gmra.mrb[0].mxu0 %v720
        %v930 = vpop.f32.mrb[0].mxu0
        %v931 = vadd.f32 0.0, %v930
        %v932 = vpop.f32.mrb[0].mxu0
        %v933 = vadd.f32 0.0, %v932
        %v934 = vpop.f32.mrb[0].mxu0
        %v935 = vadd.f32 0.0, %v934
        %v936 = vpop.f32.mrb[0].mxu0
        %v937 = vadd.f32 0.0, %v936
        %938 = vmatprep.mubr.bf16.mxu0 0
        %939 = vmatmul.mubr.bf16.gmra.mrb[0].mxu0 %v721
        %v940 = vpop.f32.mrb[0].mxu0
        %v941 = vadd.f32 0.0, %v940
        %v942 = vpop.f32.mrb[0].mxu0
        %v943 = vadd.f32 0.0, %v942
        %v944 = vpop.f32.mrb[0].mxu0
        %v945 = vadd.f32 0.0, %v944
        %v946 = vpop.f32.mrb[0].mxu0
        %v947 = vadd.f32 0.0, %v946
        %948 = vmatprep.mubr.bf16.mxu0 0
        %949 = vmatmul.mubr.bf16.gmra.mrb[0].mxu0 %v722
        %v950 = vpop.f32.mrb[0].mxu0
        %v951 = vadd.f32 0.0, %v950
        %v952 = vpop.f32.mrb[0].mxu0
        %v953 = vadd.f32 0.0, %v952
        %v954 = vpop.f32.mrb[0].mxu0
        %v955 = vadd.f32 0.0, %v954
        %v956 = vpop.f32.mrb[0].mxu0
        %v957 = vadd.f32 0.0, %v956
        %958 = vmatprep.mubr.bf16.mxu0 0
        %959 = vmatmul.mubr.bf16.gmra.mrb[0].mxu0 %v723
        %v960 = vpop.f32.mrb[0].mxu0
        %v961 = vadd.f32 0.0, %v960
        %v962 = vpop.f32.mrb[0].mxu0
        %v963 = vadd.f32 0.0, %v962
        %v964 = vpop.f32.mrb[0].mxu0
        %v965 = vadd.f32 0.0, %v964
        %v966 = vpop.f32.mrb[0].mxu0
        %v967 = vadd.f32 0.0, %v966
        %968 = vmatprep.mubr.bf16.mxu0 0
        %969 = vmatmul.mubr.bf16.gmra.mrb[0].mxu0 %v724
        %v970 = vpop.f32.mrb[0].mxu0
        %v971 = vadd.f32 0.0, %v970
        %v972 = vpop.f32.mrb[0].mxu0
        %v973 = vadd.f32 0.0, %v972
        %v974 = vpop.f32.mrb[0].mxu0
        %v975 = vadd.f32 0.0, %v974
        %v976 = vpop.f32.mrb[0].mxu0
        %v977 = vadd.f32 0.0, %v976
        %978 = vmatprep.mubr.bf16.mxu0 0
        %979 = vmatmul.mubr.bf16.gmra.mrb[0].mxu0 %v725
        %v980 = vpop.f32.mrb[0].mxu0
        %v981 = vadd.f32 0.0, %v980
        %v982 = vpop.f32.mrb[0].mxu0
        %v983 = vadd.f32 0.0, %v982
        %v984 = vpop.f32.mrb[0].mxu0
        %v985 = vadd.f32 0.0, %v984
        %v986 = vpop.f32.mrb[0].mxu0
        %v987 = vadd.f32 0.0, %v986
        %988 = vmatprep.mubr.bf16.mxu0 0
        %989 = vmatmul.mubr.bf16.gmra.mrb[0].mxu0 %v726
        %v990 = vpop.f32.mrb[0].mxu0
        %v991 = vadd.f32 0.0, %v990
        %v992 = vpop.f32.mrb[0].mxu0
        %v993 = vadd.f32 0.0, %v992
        %v994 = vpop.f32.mrb[0].mxu0
        %v995 = vadd.f32 0.0, %v994
        %v996 = vpop.f32.mrb[0].mxu0
        %v997 = vadd.f32 0.0, %v996
        %998 = vmatprep.mubr.bf16.mxu0 0
        %999 = vmatmul.mubr.bf16.gmra.mrb[0].mxu0 %v727
        %v1000 = vpop.f32.mrb[0].mxu0
        %v1001 = vadd.f32 0.0, %v1000
        %v1002 = vpop.f32.mrb[0].mxu0
        %v1003 = vadd.f32 0.0, %v1002
        %v1004 = vpop.f32.mrb[0].mxu0
        %v1005 = vadd.f32 0.0, %v1004
        %v1006 = vpop.f32.mrb[0].mxu0
        %v1007 = vadd.f32 0.0, %v1006
        %1008 = vmatprep.mubr.bf16.mxu0 0
        %1009 = vmatmul.mubr.bf16.gmra.mrb[0].mxu0 %v728
        %v1010 = vpop.f32.mrb[0].mxu0
        %v1011 = vadd.f32 0.0, %v1010
        %v1012 = vpop.f32.mrb[0].mxu0
        %v1013 = vadd.f32 0.0, %v1012
        %v1014 = vpop.f32.mrb[0].mxu0
        %v1015 = vadd.f32 0.0, %v1014
        %v1016 = vpop.f32.mrb[0].mxu0
        %v1017 = vadd.f32 0.0, %v1016
        %1018 = vmatprep.mubr.bf16.mxu0 0
        %1019 = vmatmul.mubr.bf16.gmra.mrb[0].mxu0 %v729
        %v1020 = vpop.f32.mrb[0].mxu0
        %v1021 = vadd.f32 0.0, %v1020
        %v1022 = vpop.f32.mrb[0].mxu0
        %v1023 = vadd.f32 0.0, %v1022
        %v1024 = vpop.f32.mrb[0].mxu0
        %v1025 = vadd.f32 0.0, %v1024
        %v1026 = vpop.f32.mrb[0].mxu0
        %v1027 = vadd.f32 0.0, %v1026
        %1028 = vmatprep.mubr.bf16.mxu0 0
        %1029 = vmatmul.mubr.bf16.gmra.mrb[0].mxu0 %v730
        %v1030 = vpop.f32.mrb[0].mxu0
        %v1031 = vadd.f32 0.0, %v1030
        %v1032 = vpop.f32.mrb[0].mxu0
        %v1033 = vadd.f32 0.0, %v1032
        %v1034 = vpop.f32.mrb[0].mxu0
        %v1035 = vadd.f32 0.0, %v1034
        %v1036 = vpop.f32.mrb[0].mxu0
        %v1037 = vadd.f32 0.0, %v1036
        %1038 = vmatprep.mubr.bf16.mxu0 0
        %1039 = vmatmul.mubr.bf16.gmra.mrb[0].mxu0 %v731
        %v1040 = vpop.f32.mrb[0].mxu0
        %v1041 = vadd.f32 0.0, %v1040
        %v1042 = vpop.f32.mrb[0].mxu0
        %v1043 = vadd.f32 0.0, %v1042
        %v1044 = vpop.f32.mrb[0].mxu0
        %v1045 = vadd.f32 0.0, %v1044
        %v1046 = vpop.f32.mrb[0].mxu0
        %v1047 = vadd.f32 0.0, %v1046
        %1048 = vmatprep.mubr.bf16.mxu0 0
        %1049 = vmatmul.mubr.bf16.gmra.mrb[0].mxu0 %v732
        %v1050 = vpop.f32.mrb[0].mxu0
        %v1051 = vadd.f32 0.0, %v1050
        %v1052 = vpop.f32.mrb[0].mxu0
        %v1053 = vadd.f32 0.0, %v1052
        %v1054 = vpop.f32.mrb[0].mxu0
        %v1055 = vadd.f32 0.0, %v1054
        %v1056 = vpop.f32.mrb[0].mxu0
        %v1057 = vadd.f32 0.0, %v1056
        %1058 = vdwg.mxu0
        %1059 = vmatprep.subr.bf16.mxu0 0
        %1060 = vmatpush1.bf16.msra.mxu0 %v830
        %1061 = vmatprep.subr.bf16.mxu0 0
        %1062 = vmatpush1.bf16.msra.mxu0 %v833
        %1063 = vmatprep.subr.bf16.mxu0 0
        %1064 = vmatpush1.bf16.msra.mxu0 %v836
        %1065 = vmatprep.subr.bf16.mxu0 0
        %1066 = vmatpush1.bf16.msra.mxu0 %v839
        %1067 = vmatprep.subr.bf16.mxu0 0
        %1068 = vmatpush1.bf16.msra.mxu0 %v842
        %1069 = vmatprep.subr.bf16.mxu0 0
        %1070 = vmatpush1.bf16.msra.mxu0 %v845
        %1071 = vmatprep.subr.bf16.mxu0 0
        %1072 = vmatpush1.bf16.msra.mxu0 %v848
        %1073 = vmatprep.subr.bf16.mxu0 0
        %1074 = vmatpush1.bf16.msra.mxu0 %v851
        %1075 = vmatprep.subr.bf16.mxu0 0
        %1076 = vmatpush1.bf16.msra.mxu0 0
        %1077 = vmatprep.subr.bf16.mxu0 0
        %1078 = vmatpush1.bf16.msra.mxu0 0
        %1079 = vmatprep.subr.bf16.mxu0 0
        %1080 = vmatpush1.bf16.msra.mxu0 0
        %1081 = vmatprep.subr.bf16.mxu0 0
        %1082 = vmatpush1.bf16.msra.mxu0 0
        %1083 = vmatprep.subr.bf16.mxu0 0
        %1084 = vmatpush1.bf16.msra.mxu0 0
        %1085 = vmatprep.subr.bf16.mxu0 0
        %1086 = vmatpush1.bf16.msra.mxu0 0
        %1087 = vmatprep.subr.bf16.mxu0 0
        %1088 = vmatpush1.bf16.msra.mxu0 0
        %1089 = vmatprep.subr.bf16.mxu0 0
        %1090 = vmatpush1.bf16.msra.mxu0 0
        %1091 = vmatprep.mubr.bf16.mxu0 0
        %1092 = vmatmul.mubr.bf16.gmra.mrb[0].mxu0 %v718
        %v1093 = vpop.f32.mrb[0].mxu0
        %v1094 = vadd.f32 0.0, %v1093
        %v1095 = vpop.f32.mrb[0].mxu0
        %v1096 = vpop.f32.mrb[0].mxu0
        %v1097 = vadd.f32 0.0, %v1096
        %v1098 = vpop.f32.mrb[0].mxu0
        %1099 = vmatprep.mubr.bf16.mxu0 0
        %1100 = vmatmul.mubr.bf16.gmra.mrb[0].mxu0 %v719
        %v1101 = vpop.f32.mrb[0].mxu0
        %v1102 = vadd.f32 0.0, %v1101
        %v1103 = vpop.f32.mrb[0].mxu0
        %v1104 = vpop.f32.mrb[0].mxu0
        %v1105 = vadd.f32 0.0, %v1104
        %v1106 = vpop.f32.mrb[0].mxu0
        %1107 = vmatprep.mubr.bf16.mxu0 0
        %1108 = vmatmul.mubr.bf16.gmra.mrb[0].mxu0 %v720
        %v1109 = vpop.f32.mrb[0].mxu0
        %v1110 = vadd.f32 0.0, %v1109
        %v1111 = vpop.f32.mrb[0].mxu0
        %v1112 = vpop.f32.mrb[0].mxu0
        %v1113 = vadd.f32 0.0, %v1112
        %v1114 = vpop.f32.mrb[0].mxu0
        %1115 = vmatprep.mubr.bf16.mxu0 0
        %1116 = vmatmul.mubr.bf16.gmra.mrb[0].mxu0 %v721
        %v1117 = vpop.f32.mrb[0].mxu0
        %v1118 = vadd.f32 0.0, %v1117
        %v1119 = vpop.f32.mrb[0].mxu0
        %v1120 = vpop.f32.mrb[0].mxu0
        %v1121 = vadd.f32 0.0, %v1120
        %v1122 = vpop.f32.mrb[0].mxu0
        %1123 = vmatprep.mubr.bf16.mxu0 0
        %1124 = vmatmul.mubr.bf16.gmra.mrb[0].mxu0 %v722
        %v1125 = vpop.f32.mrb[0].mxu0
        %v1126 = vadd.f32 0.0, %v1125
        %v1127 = vpop.f32.mrb[0].mxu0
        %v1128 = vpop.f32.mrb[0].mxu0
        %v1129 = vadd.f32 0.0, %v1128
        %v1130 = vpop.f32.mrb[0].mxu0
        %1131 = vmatprep.mubr.bf16.mxu0 0
        %1132 = vmatmul.mubr.bf16.gmra.mrb[0].mxu0 %v723
        %v1133 = vpop.f32.mrb[0].mxu0
        %v1134 = vadd.f32 0.0, %v1133
        %v1135 = vpop.f32.mrb[0].mxu0
        %v1136 = vpop.f32.mrb[0].mxu0
        %v1137 = vadd.f32 0.0, %v1136
        %v1138 = vpop.f32.mrb[0].mxu0
        %1139 = vmatprep.mubr.bf16.mxu0 0
        %1140 = vmatmul.mubr.bf16.gmra.mrb[0].mxu0 %v724
        %v1141 = vpop.f32.mrb[0].mxu0
        %v1142 = vadd.f32 0.0, %v1141
        %v1143 = vpop.f32.mrb[0].mxu0
        %v1144 = vpop.f32.mrb[0].mxu0
        %v1145 = vadd.f32 0.0, %v1144
        %v1146 = vpop.f32.mrb[0].mxu0
        %1147 = vmatprep.mubr.bf16.mxu0 0
        %1148 = vmatmul.mubr.bf16.gmra.mrb[0].mxu0 %v725
        %v1149 = vpop.f32.mrb[0].mxu0
        %v1150 = vadd.f32 0.0, %v1149
        %v1151 = vpop.f32.mrb[0].mxu0
        %v1152 = vpop.f32.mrb[0].mxu0
        %v1153 = vadd.f32 0.0, %v1152
        %v1154 = vpop.f32.mrb[0].mxu0
        %1155 = vmatprep.mubr.bf16.mxu0 0
        %1156 = vmatmul.mubr.bf16.gmra.mrb[0].mxu0 %v726
        %v1157 = vpop.f32.mrb[0].mxu0
        %v1158 = vadd.f32 0.0, %v1157
        %v1159 = vpop.f32.mrb[0].mxu0
        %v1160 = vpop.f32.mrb[0].mxu0
        %v1161 = vadd.f32 0.0, %v1160
        %v1162 = vpop.f32.mrb[0].mxu0
        %1163 = vmatprep.mubr.bf16.mxu0 0
        %1164 = vmatmul.mubr.bf16.gmra.mrb[0].mxu0 %v727
        %v1165 = vpop.f32.mrb[0].mxu0
        %v1166 = vadd.f32 0.0, %v1165
        %v1167 = vpop.f32.mrb[0].mxu0
        %v1168 = vpop.f32.mrb[0].mxu0
        %v1169 = vadd.f32 0.0, %v1168
        %v1170 = vpop.f32.mrb[0].mxu0
        %1171 = vmatprep.mubr.bf16.mxu0 0
        %1172 = vmatmul.mubr.bf16.gmra.mrb[0].mxu0 %v728
        %v1173 = vpop.f32.mrb[0].mxu0
        %v1174 = vadd.f32 0.0, %v1173
        %v1175 = vpop.f32.mrb[0].mxu0
        %v1176 = vpop.f32.mrb[0].mxu0
        %v1177 = vadd.f32 0.0, %v1176
        %v1178 = vpop.f32.mrb[0].mxu0
        %1179 = vmatprep.mubr.bf16.mxu0 0
        %1180 = vmatmul.mubr.bf16.gmra.mrb[0].mxu0 %v729
        %v1181 = vpop.f32.mrb[0].mxu0
        %v1182 = vadd.f32 0.0, %v1181
        %v1183 = vpop.f32.mrb[0].mxu0
        %v1184 = vpop.f32.mrb[0].mxu0
        %v1185 = vadd.f32 0.0, %v1184
        %v1186 = vpop.f32.mrb[0].mxu0
        %1187 = vmatprep.mubr.bf16.mxu0 0
        %1188 = vmatmul.mubr.bf16.gmra.mrb[0].mxu0 %v730
        %v1189 = vpop.f32.mrb[0].mxu0
        %v1190 = vadd.f32 0.0, %v1189
        %v1191 = vpop.f32.mrb[0].mxu0
        %v1192 = vpop.f32.mrb[0].mxu0
        %v1193 = vadd.f32 0.0, %v1192
        %v1194 = vpop.f32.mrb[0].mxu0
        %1195 = vmatprep.mubr.bf16.mxu0 0
        %1196 = vmatmul.mubr.bf16.gmra.mrb[0].mxu0 %v731
        %v1197 = vpop.f32.mrb[0].mxu0
        %v1198 = vadd.f32 0.0, %v1197
        %v1199 = vpop.f32.mrb[0].mxu0
        %v1200 = vpop.f32.mrb[0].mxu0
        %v1201 = vadd.f32 0.0, %v1200
        %v1202 = vpop.f32.mrb[0].mxu0
        %1203 = vmatprep.mubr.bf16.mxu0 0
        %1204 = vmatmul.mubr.bf16.gmra.mrb[0].mxu0 %v732
        %v1205 = vpop.f32.mrb[0].mxu0
        %v1206 = vadd.f32 0.0, %v1205
        %v1207 = vpop.f32.mrb[0].mxu0
        %v1208 = vpop.f32.mrb[0].mxu0
        %v1209 = vadd.f32 0.0, %v1208
        %v1210 = vpop.f32.mrb[0].mxu0
        %1211 = vdwg.mxu0
        %v1215 = vunpack.c.l.b16 %v557
        %v1216 = vunpack.c.l.b16 %v558
        %v1217 = vunpack.c.l.b16 %v559
        %v1218 = vpack.c.b16 %v1216, %v1215
        %v1219 = vpack.c.b16 %v688, %v1217
        %v1220 = vpack.c.b16 %v690, %v689
        %v1221 = vpack.c.b16 %v692, %v691
        %v1222 = vpack.c.b16 %v694, %v693
        %v1223 = vpack.c.b16 %v696, %v695
        %v1224 = vpack.c.b16 %v698, %v697
        %v1225 = vpack.c.b16 %v700, %v699
        %v1226 = vpack.c.b16 %v702, %v701
        %v1227 = vpack.c.b16 %v704, %v703
        %v1228 = vpack.c.b16 %v706, %v705
        %v1229 = vpack.c.b16 %v708, %v707
        %v1230 = vpack.c.b16 %v710, %v709
        %v1231 = vpack.c.b16 %v712, %v711
        %v1232 = vpack.c.b16 %v714, %v713
        %v1280 = vunpack.c.l.b16 %v593
        %v1281 = vunpack.c.h.b16 %v593
        %v1282 = vunpack.c.l.b16 %v594
        %v1283 = vunpack.c.l.b16 %v595
        %v1284 = vunpack.c.h.b16 %v595
        %v1285 = vunpack.c.l.b16 %v596
        %v1286 = vunpack.c.l.b16 %v597
        %v1287 = vunpack.c.h.b16 %v597
        %v1288 = vunpack.c.l.b16 %v598
        %v1289 = vunpack.c.l.b16 %v599
        %v1290 = vunpack.c.h.b16 %v599
        %v1291 = vunpack.c.l.b16 %v600
        %v1292 = vunpack.c.l.b16 %v601
        %v1293 = vunpack.c.h.b16 %v601
        %v1294 = vunpack.c.l.b16 %v602
        %v1295 = vunpack.c.l.b16 %v603
        %v1296 = vunpack.c.h.b16 %v603
        %v1297 = vunpack.c.l.b16 %v604
        %v1298 = vunpack.c.l.b16 %v605
        %v1299 = vunpack.c.h.b16 %v605
        %v1300 = vunpack.c.l.b16 %v606
        %v1301 = vunpack.c.l.b16 %v607
        %v1302 = vunpack.c.h.b16 %v607
        %v1303 = vunpack.c.l.b16 %v608
        %v1304 = vunpack.c.l.b16 %v609
        %v1305 = vunpack.c.h.b16 %v609
        %v1306 = vunpack.c.l.b16 %v610
        %v1307 = vunpack.c.l.b16 %v611
        %v1308 = vunpack.c.h.b16 %v611
        %v1309 = vunpack.c.l.b16 %v612
        %v1310 = vunpack.c.l.b16 %v613
        %v1311 = vunpack.c.h.b16 %v613
        %v1312 = vunpack.c.l.b16 %v614
        %v1313 = vunpack.c.l.b16 %v615
        %v1314 = vunpack.c.h.b16 %v615
        %v1315 = vunpack.c.l.b16 %v616
        %v1316 = vunpack.c.l.b16 %v617
        %v1317 = vunpack.c.h.b16 %v617
        %v1318 = vunpack.c.l.b16 %v618
        %v1319 = vunpack.c.l.b16 %v619
        %v1320 = vunpack.c.h.b16 %v619
        %v1321 = vunpack.c.l.b16 %v620
        %v1322 = vunpack.c.l.b16 %v621
        %v1323 = vunpack.c.h.b16 %v621
        %v1324 = vunpack.c.l.b16 %v622
        %v1325 = vunpack.c.l.b16 %v623
        %v1326 = vunpack.c.h.b16 %v623
        %v1327 = vunpack.c.l.b16 %v624
        %v1328 = vpack.c.b16 %v1283, %v1280
        %v1329 = vpack.c.b16 %v1284, %v1281
        %v1330 = vpack.c.b16 %v1285, %v1282
        %v1331 = vpack.c.b16 %v1289, %v1286
        %v1332 = vpack.c.b16 %v1290, %v1287
        %v1333 = vpack.c.b16 %v1291, %v1288
        %v1334 = vpack.c.b16 %v1295, %v1292
        %v1335 = vpack.c.b16 %v1296, %v1293
        %v1336 = vpack.c.b16 %v1297, %v1294
        %v1337 = vpack.c.b16 %v1301, %v1298
        %v1338 = vpack.c.b16 %v1302, %v1299
        %v1339 = vpack.c.b16 %v1303, %v1300
        %v1340 = vpack.c.b16 %v1307, %v1304
        %v1341 = vpack.c.b16 %v1308, %v1305
        %v1342 = vpack.c.b16 %v1309, %v1306
        %v1343 = vpack.c.b16 %v1313, %v1310
        %v1344 = vpack.c.b16 %v1314, %v1311
        %v1345 = vpack.c.b16 %v1315, %v1312
        %v1346 = vpack.c.b16 %v1319, %v1316
        %v1347 = vpack.c.b16 %v1320, %v1317
        %v1348 = vpack.c.b16 %v1321, %v1318
        %v1349 = vpack.c.b16 %v1325, %v1322
        %v1350 = vpack.c.b16 %v1326, %v1323
        %v1351 = vpack.c.b16 %v1327, %v1324
        %1376 = vmatprep.subr.bf16.mxu0 %v1329
        %1377 = vmatpush1.bf16.msra.mxu0 %v1328
        %1378 = vmatprep.subr.bf16.mxu0 %v1332
        %1379 = vmatpush1.bf16.msra.mxu0 %v1331
        %1380 = vmatprep.subr.bf16.mxu0 %v1335
        %1381 = vmatpush1.bf16.msra.mxu0 %v1334
        %1382 = vmatprep.subr.bf16.mxu0 %v1338
        %1383 = vmatpush1.bf16.msra.mxu0 %v1337
        %1384 = vmatprep.subr.bf16.mxu0 %v1341
        %1385 = vmatpush1.bf16.msra.mxu0 %v1340
        %1386 = vmatprep.subr.bf16.mxu0 %v1344
        %1387 = vmatpush1.bf16.msra.mxu0 %v1343
        %1388 = vmatprep.subr.bf16.mxu0 %v1347
        %1389 = vmatpush1.bf16.msra.mxu0 %v1346
        %1390 = vmatprep.subr.bf16.mxu0 %v1350
        %1391 = vmatpush1.bf16.msra.mxu0 %v1349
        %1392 = vmatprep.subr.bf16.mxu0 0
        %1393 = vmatpush1.bf16.msra.mxu0 0
        %1394 = vmatprep.subr.bf16.mxu0 0
        %1395 = vmatpush1.bf16.msra.mxu0 0
        %1396 = vmatprep.subr.bf16.mxu0 0
        %1397 = vmatpush1.bf16.msra.mxu0 0
        %1398 = vmatprep.subr.bf16.mxu0 0
        %1399 = vmatpush1.bf16.msra.mxu0 0
        %1400 = vmatprep.subr.bf16.mxu0 0
        %1401 = vmatpush1.bf16.msra.mxu0 0
        %1402 = vmatprep.subr.bf16.mxu0 0
        %1403 = vmatpush1.bf16.msra.mxu0 0
        %1404 = vmatprep.subr.bf16.mxu0 0
        %1405 = vmatpush1.bf16.msra.mxu0 0
        %1406 = vmatprep.subr.bf16.mxu0 0
        %1407 = vmatpush1.bf16.msra.mxu0 0
        %1408 = vmatprep.mubr.bf16.mxu0 0
        %1409 = vmatmul.mubr.bf16.gmra.mrb[0].mxu0 %v1218
        %v1410 = vpop.f32.mrb[0].mxu0
        %v1411 = vadd.f32 %v911, %v1410
        %v1412 = vpop.f32.mrb[0].mxu0
        %v1413 = vadd.f32 %v913, %v1412
        %v1414 = vpop.f32.mrb[0].mxu0
        %v1415 = vadd.f32 %v915, %v1414
        %v1416 = vpop.f32.mrb[0].mxu0
        %v1417 = vadd.f32 %v917, %v1416
        %1418 = vmatprep.mubr.bf16.mxu0 0
        %1419 = vmatmul.mubr.bf16.gmra.mrb[0].mxu0 %v1219
        %v1420 = vpop.f32.mrb[0].mxu0
        %v1421 = vadd.f32 %v921, %v1420
        %v1422 = vpop.f32.mrb[0].mxu0
        %v1423 = vadd.f32 %v923, %v1422
        %v1424 = vpop.f32.mrb[0].mxu0
        %v1425 = vadd.f32 %v925, %v1424
        %v1426 = vpop.f32.mrb[0].mxu0
        %v1427 = vadd.f32 %v927, %v1426
        %1428 = vmatprep.mubr.bf16.mxu0 0
        %1429 = vmatmul.mubr.bf16.gmra.mrb[0].mxu0 %v1220
        %v1430 = vpop.f32.mrb[0].mxu0
        %v1431 = vadd.f32 %v931, %v1430
        %v1432 = vpop.f32.mrb[0].mxu0
        %v1433 = vadd.f32 %v933, %v1432
        %v1434 = vpop.f32.mrb[0].mxu0
        %v1435 = vadd.f32 %v935, %v1434
        %v1436 = vpop.f32.mrb[0].mxu0
        %v1437 = vadd.f32 %v937, %v1436
        %1438 = vmatprep.mubr.bf16.mxu0 0
        %1439 = vmatmul.mubr.bf16.gmra.mrb[0].mxu0 %v1221
        %v1440 = vpop.f32.mrb[0].mxu0
        %v1441 = vadd.f32 %v941, %v1440
        %v1442 = vpop.f32.mrb[0].mxu0
        %v1443 = vadd.f32 %v943, %v1442
        %v1444 = vpop.f32.mrb[0].mxu0
        %v1445 = vadd.f32 %v945, %v1444
        %v1446 = vpop.f32.mrb[0].mxu0
        %v1447 = vadd.f32 %v947, %v1446
        %1448 = vmatprep.mubr.bf16.mxu0 0
        %1449 = vmatmul.mubr.bf16.gmra.mrb[0].mxu0 %v1222
        %v1450 = vpop.f32.mrb[0].mxu0
        %v1451 = vadd.f32 %v951, %v1450
        %v1452 = vpop.f32.mrb[0].mxu0
        %v1453 = vadd.f32 %v953, %v1452
        %v1454 = vpop.f32.mrb[0].mxu0
        %v1455 = vadd.f32 %v955, %v1454
        %v1456 = vpop.f32.mrb[0].mxu0
        %v1457 = vadd.f32 %v957, %v1456
        %1458 = vmatprep.mubr.bf16.mxu0 0
        %1459 = vmatmul.mubr.bf16.gmra.mrb[0].mxu0 %v1223
        %v1460 = vpop.f32.mrb[0].mxu0
        %v1461 = vadd.f32 %v961, %v1460
        %v1462 = vpop.f32.mrb[0].mxu0
        %v1463 = vadd.f32 %v963, %v1462
        %v1464 = vpop.f32.mrb[0].mxu0
        %v1465 = vadd.f32 %v965, %v1464
        %v1466 = vpop.f32.mrb[0].mxu0
        %v1467 = vadd.f32 %v967, %v1466
        %1468 = vmatprep.mubr.bf16.mxu0 0
        %1469 = vmatmul.mubr.bf16.gmra.mrb[0].mxu0 %v1224
        %v1470 = vpop.f32.mrb[0].mxu0
        %v1471 = vadd.f32 %v971, %v1470
        %v1472 = vpop.f32.mrb[0].mxu0
        %v1473 = vadd.f32 %v973, %v1472
        %v1474 = vpop.f32.mrb[0].mxu0
        %v1475 = vadd.f32 %v975, %v1474
        %v1476 = vpop.f32.mrb[0].mxu0
        %v1477 = vadd.f32 %v977, %v1476
        %1478 = vmatprep.mubr.bf16.mxu0 0
        %1479 = vmatmul.mubr.bf16.gmra.mrb[0].mxu0 %v1225
        %v1480 = vpop.f32.mrb[0].mxu0
        %v1481 = vadd.f32 %v981, %v1480
        %v1482 = vpop.f32.mrb[0].mxu0
        %v1483 = vadd.f32 %v983, %v1482
        %v1484 = vpop.f32.mrb[0].mxu0
        %v1485 = vadd.f32 %v985, %v1484
        %v1486 = vpop.f32.mrb[0].mxu0
        %v1487 = vadd.f32 %v987, %v1486
        %1488 = vmatprep.mubr.bf16.mxu0 0
        %1489 = vmatmul.mubr.bf16.gmra.mrb[0].mxu0 %v1226
        %v1490 = vpop.f32.mrb[0].mxu0
        %v1491 = vadd.f32 %v991, %v1490
        %v1492 = vpop.f32.mrb[0].mxu0
        %v1493 = vadd.f32 %v993, %v1492
        %v1494 = vpop.f32.mrb[0].mxu0
        %v1495 = vadd.f32 %v995, %v1494
        %v1496 = vpop.f32.mrb[0].mxu0
        %v1497 = vadd.f32 %v997, %v1496
        %1498 = vmatprep.mubr.bf16.mxu0 0
        %1499 = vmatmul.mubr.bf16.gmra.mrb[0].mxu0 %v1227
        %v1500 = vpop.f32.mrb[0].mxu0
        %v1501 = vadd.f32 %v1001, %v1500
        %v1502 = vpop.f32.mrb[0].mxu0
        %v1503 = vadd.f32 %v1003, %v1502
        %v1504 = vpop.f32.mrb[0].mxu0
        %v1505 = vadd.f32 %v1005, %v1504
        %v1506 = vpop.f32.mrb[0].mxu0
        %v1507 = vadd.f32 %v1007, %v1506
        %1508 = vmatprep.mubr.bf16.mxu0 0
        %1509 = vmatmul.mubr.bf16.gmra.mrb[0].mxu0 %v1228
        %v1510 = vpop.f32.mrb[0].mxu0
        %v1511 = vadd.f32 %v1011, %v1510
        %v1512 = vpop.f32.mrb[0].mxu0
        %v1513 = vadd.f32 %v1013, %v1512
        %v1514 = vpop.f32.mrb[0].mxu0
        %v1515 = vadd.f32 %v1015, %v1514
        %v1516 = vpop.f32.mrb[0].mxu0
        %v1517 = vadd.f32 %v1017, %v1516
        %1518 = vmatprep.mubr.bf16.mxu0 0
        %1519 = vmatmul.mubr.bf16.gmra.mrb[0].mxu0 %v1229
        %v1520 = vpop.f32.mrb[0].mxu0
        %v1521 = vadd.f32 %v1021, %v1520
        %v1522 = vpop.f32.mrb[0].mxu0
        %v1523 = vadd.f32 %v1023, %v1522
        %v1524 = vpop.f32.mrb[0].mxu0
        %v1525 = vadd.f32 %v1025, %v1524
        %v1526 = vpop.f32.mrb[0].mxu0
        %v1527 = vadd.f32 %v1027, %v1526
        %1528 = vmatprep.mubr.bf16.mxu0 0
        %1529 = vmatmul.mubr.bf16.gmra.mrb[0].mxu0 %v1230
        %v1530 = vpop.f32.mrb[0].mxu0
        %v1531 = vadd.f32 %v1031, %v1530
        %v1532 = vpop.f32.mrb[0].mxu0
        %v1533 = vadd.f32 %v1033, %v1532
        %v1534 = vpop.f32.mrb[0].mxu0
        %v1535 = vadd.f32 %v1035, %v1534
        %v1536 = vpop.f32.mrb[0].mxu0
        %v1537 = vadd.f32 %v1037, %v1536
        %1538 = vmatprep.mubr.bf16.mxu0 0
        %1539 = vmatmul.mubr.bf16.gmra.mrb[0].mxu0 %v1231
        %v1540 = vpop.f32.mrb[0].mxu0
        %v1541 = vadd.f32 %v1041, %v1540
        %v1542 = vpop.f32.mrb[0].mxu0
        %v1543 = vadd.f32 %v1043, %v1542
        %v1544 = vpop.f32.mrb[0].mxu0
        %v1545 = vadd.f32 %v1045, %v1544
        %v1546 = vpop.f32.mrb[0].mxu0
        %v1547 = vadd.f32 %v1047, %v1546
        %1548 = vmatprep.mubr.bf16.mxu0 0
        %1549 = vmatmul.mubr.bf16.gmra.mrb[0].mxu0 %v1232
        %v1550 = vpop.f32.mrb[0].mxu0
        %v1551 = vadd.f32 %v1051, %v1550
        %v1552 = vpop.f32.mrb[0].mxu0
        %v1553 = vadd.f32 %v1053, %v1552
        %v1554 = vpop.f32.mrb[0].mxu0
        %v1555 = vadd.f32 %v1055, %v1554
        %v1556 = vpop.f32.mrb[0].mxu0
        %v1557 = vadd.f32 %v1057, %v1556
        %1558 = vdwg.mxu0
        %1559 = vmatprep.subr.bf16.mxu0 0
        %1560 = vmatpush1.bf16.msra.mxu0 %v1330
        %1561 = vmatprep.subr.bf16.mxu0 0
        %1562 = vmatpush1.bf16.msra.mxu0 %v1333
        %1563 = vmatprep.subr.bf16.mxu0 0
        %1564 = vmatpush1.bf16.msra.mxu0 %v1336
        %1565 = vmatprep.subr.bf16.mxu0 0
        %1566 = vmatpush1.bf16.msra.mxu0 %v1339
        %1567 = vmatprep.subr.bf16.mxu0 0
        %1568 = vmatpush1.bf16.msra.mxu0 %v1342
        %1569 = vmatprep.subr.bf16.mxu0 0
        %1570 = vmatpush1.bf16.msra.mxu0 %v1345
        %1571 = vmatprep.subr.bf16.mxu0 0
        %1572 = vmatpush1.bf16.msra.mxu0 %v1348
        %1573 = vmatprep.subr.bf16.mxu0 0
        %1574 = vmatpush1.bf16.msra.mxu0 %v1351
        %1575 = vmatprep.subr.bf16.mxu0 0
        %1576 = vmatpush1.bf16.msra.mxu0 0
        %1577 = vmatprep.subr.bf16.mxu0 0
        %1578 = vmatpush1.bf16.msra.mxu0 0
        %1579 = vmatprep.subr.bf16.mxu0 0
        %1580 = vmatpush1.bf16.msra.mxu0 0
        %1581 = vmatprep.subr.bf16.mxu0 0
        %1582 = vmatpush1.bf16.msra.mxu0 0
        %1583 = vmatprep.subr.bf16.mxu0 0
        %1584 = vmatpush1.bf16.msra.mxu0 0
        %1585 = vmatprep.subr.bf16.mxu0 0
        %1586 = vmatpush1.bf16.msra.mxu0 0
        %1587 = vmatprep.subr.bf16.mxu0 0
        %1588 = vmatpush1.bf16.msra.mxu0 0
        %1589 = vmatprep.subr.bf16.mxu0 0
        %1590 = vmatpush1.bf16.msra.mxu0 0
        %1591 = vmatprep.mubr.bf16.mxu0 0
        %1592 = vmatmul.mubr.bf16.gmra.mrb[0].mxu0 %v1218
        %v1593 = vpop.f32.mrb[0].mxu0
        %v1594 = vadd.f32 %v1094, %v1593
        %v1595 = vpop.f32.mrb[0].mxu0
        %v1596 = vpop.f32.mrb[0].mxu0
        %v1597 = vadd.f32 %v1097, %v1596
        %v1598 = vpop.f32.mrb[0].mxu0
        %1599 = vmatprep.mubr.bf16.mxu0 0
        %1600 = vmatmul.mubr.bf16.gmra.mrb[0].mxu0 %v1219
        %v1601 = vpop.f32.mrb[0].mxu0
        %v1602 = vadd.f32 %v1102, %v1601
        %v1603 = vpop.f32.mrb[0].mxu0
        %v1604 = vpop.f32.mrb[0].mxu0
        %v1605 = vadd.f32 %v1105, %v1604
        %v1606 = vpop.f32.mrb[0].mxu0
        %1607 = vmatprep.mubr.bf16.mxu0 0
        %1608 = vmatmul.mubr.bf16.gmra.mrb[0].mxu0 %v1220
        %v1609 = vpop.f32.mrb[0].mxu0
        %v1610 = vadd.f32 %v1110, %v1609
        %v1611 = vpop.f32.mrb[0].mxu0
        %v1612 = vpop.f32.mrb[0].mxu0
        %v1613 = vadd.f32 %v1113, %v1612
        %v1614 = vpop.f32.mrb[0].mxu0
        %1615 = vmatprep.mubr.bf16.mxu0 0
        %1616 = vmatmul.mubr.bf16.gmra.mrb[0].mxu0 %v1221
        %v1617 = vpop.f32.mrb[0].mxu0
        %v1618 = vadd.f32 %v1118, %v1617
        %v1619 = vpop.f32.mrb[0].mxu0
        %v1620 = vpop.f32.mrb[0].mxu0
        %v1621 = vadd.f32 %v1121, %v1620
        %v1622 = vpop.f32.mrb[0].mxu0
        %1623 = vmatprep.mubr.bf16.mxu0 0
        %1624 = vmatmul.mubr.bf16.gmra.mrb[0].mxu0 %v1222
        %v1625 = vpop.f32.mrb[0].mxu0
        %v1626 = vadd.f32 %v1126, %v1625
        %v1627 = vpop.f32.mrb[0].mxu0
        %v1628 = vpop.f32.mrb[0].mxu0
        %v1629 = vadd.f32 %v1129, %v1628
        %v1630 = vpop.f32.mrb[0].mxu0
        %1631 = vmatprep.mubr.bf16.mxu0 0
        %1632 = vmatmul.mubr.bf16.gmra.mrb[0].mxu0 %v1223
        %v1633 = vpop.f32.mrb[0].mxu0
        %v1634 = vadd.f32 %v1134, %v1633
        %v1635 = vpop.f32.mrb[0].mxu0
        %v1636 = vpop.f32.mrb[0].mxu0
        %v1637 = vadd.f32 %v1137, %v1636
        %v1638 = vpop.f32.mrb[0].mxu0
        %1639 = vmatprep.mubr.bf16.mxu0 0
        %1640 = vmatmul.mubr.bf16.gmra.mrb[0].mxu0 %v1224
        %v1641 = vpop.f32.mrb[0].mxu0
        %v1642 = vadd.f32 %v1142, %v1641
        %v1643 = vpop.f32.mrb[0].mxu0
        %v1644 = vpop.f32.mrb[0].mxu0
        %v1645 = vadd.f32 %v1145, %v1644
        %v1646 = vpop.f32.mrb[0].mxu0
        %1647 = vmatprep.mubr.bf16.mxu0 0
        %1648 = vmatmul.mubr.bf16.gmra.mrb[0].mxu0 %v1225
        %v1649 = vpop.f32.mrb[0].mxu0
        %v1650 = vadd.f32 %v1150, %v1649
        %v1651 = vpop.f32.mrb[0].mxu0
        %v1652 = vpop.f32.mrb[0].mxu0
        %v1653 = vadd.f32 %v1153, %v1652
        %v1654 = vpop.f32.mrb[0].mxu0
        %1655 = vmatprep.mubr.bf16.mxu0 0
        %1656 = vmatmul.mubr.bf16.gmra.mrb[0].mxu0 %v1226
        %v1657 = vpop.f32.mrb[0].mxu0
        %v1658 = vadd.f32 %v1158, %v1657
        %v1659 = vpop.f32.mrb[0].mxu0
        %v1660 = vpop.f32.mrb[0].mxu0
        %v1661 = vadd.f32 %v1161, %v1660
        %v1662 = vpop.f32.mrb[0].mxu0
        %1663 = vmatprep.mubr.bf16.mxu0 0
        %1664 = vmatmul.mubr.bf16.gmra.mrb[0].mxu0 %v1227
        %v1665 = vpop.f32.mrb[0].mxu0
        %v1666 = vadd.f32 %v1166, %v1665
        %v1667 = vpop.f32.mrb[0].mxu0
        %v1668 = vpop.f32.mrb[0].mxu0
        %v1669 = vadd.f32 %v1169, %v1668
        %v1670 = vpop.f32.mrb[0].mxu0
        %1671 = vmatprep.mubr.bf16.mxu0 0
        %1672 = vmatmul.mubr.bf16.gmra.mrb[0].mxu0 %v1228
        %v1673 = vpop.f32.mrb[0].mxu0
        %v1674 = vadd.f32 %v1174, %v1673
        %v1675 = vpop.f32.mrb[0].mxu0
        %v1676 = vpop.f32.mrb[0].mxu0
        %v1677 = vadd.f32 %v1177, %v1676
        %v1678 = vpop.f32.mrb[0].mxu0
        %1679 = vmatprep.mubr.bf16.mxu0 0
        %1680 = vmatmul.mubr.bf16.gmra.mrb[0].mxu0 %v1229
        %v1681 = vpop.f32.mrb[0].mxu0
        %v1682 = vadd.f32 %v1182, %v1681
        %v1683 = vpop.f32.mrb[0].mxu0
        %v1684 = vpop.f32.mrb[0].mxu0
        %v1685 = vadd.f32 %v1185, %v1684
        %v1686 = vpop.f32.mrb[0].mxu0
        %1687 = vmatprep.mubr.bf16.mxu0 0
        %1688 = vmatmul.mubr.bf16.gmra.mrb[0].mxu0 %v1230
        %v1689 = vpop.f32.mrb[0].mxu0
        %v1690 = vadd.f32 %v1190, %v1689
        %v1691 = vpop.f32.mrb[0].mxu0
        %v1692 = vpop.f32.mrb[0].mxu0
        %v1693 = vadd.f32 %v1193, %v1692
        %v1694 = vpop.f32.mrb[0].mxu0
        %1695 = vmatprep.mubr.bf16.mxu0 0
        %1696 = vmatmul.mubr.bf16.gmra.mrb[0].mxu0 %v1231
        %v1697 = vpop.f32.mrb[0].mxu0
        %v1698 = vadd.f32 %v1198, %v1697
        %v1699 = vpop.f32.mrb[0].mxu0
        %v1700 = vpop.f32.mrb[0].mxu0
        %v1701 = vadd.f32 %v1201, %v1700
        %v1702 = vpop.f32.mrb[0].mxu0
        %1703 = vmatprep.mubr.bf16.mxu0 0
        %1704 = vmatmul.mubr.bf16.gmra.mrb[0].mxu0 %v1232
        %v1705 = vpop.f32.mrb[0].mxu0
        %v1706 = vadd.f32 %v1206, %v1705
        %v1707 = vpop.f32.mrb[0].mxu0
        %v1708 = vpop.f32.mrb[0].mxu0
        %v1709 = vadd.f32 %v1209, %v1708
        %v1710 = vpop.f32.mrb[0].mxu0
        %1711 = vdwg.mxu0
        %s1712 = scalar_lea.vmem %s3, 384
        %v1713 = vld [vmem:[%s1712] sm:$0xff]
        %v1714 = vld [vmem:[%s1712 + $0x8] sm:$0xf]
        %v1715 = vld [vmem:[%s1712 + $0xc] sm:$0xff]
        %v1716 = vld [vmem:[%s1712 + $0x14] sm:$0xf]
        %v1717 = vld [vmem:[%s1712 + $0x18] sm:$0xff]
        %v1718 = vld [vmem:[%s1712 + $0x20] sm:$0xf]
        %v1719 = vld [vmem:[%s1712 + $0x24] sm:$0xff]
        %v1720 = vld [vmem:[%s1712 + $0x2c] sm:$0xf]
        %v1721 = vld [vmem:[%s1712 + $0x30] sm:$0xff]
        %v1722 = vld [vmem:[%s1712 + $0x38] sm:$0xf]
        %v1723 = vld [vmem:[%s1712 + $0x3c] sm:$0xff]
        %v1724 = vld [vmem:[%s1712 + $0x44] sm:$0xf]
        %v1725 = vld [vmem:[%s1712 + $0x48] sm:$0xff]
        %v1726 = vld [vmem:[%s1712 + $0x50] sm:$0xf]
        %v1727 = vld [vmem:[%s1712 + $0x54] sm:$0xff]
        %v1728 = vld [vmem:[%s1712 + $0x5c] sm:$0xf]
        %v1729 = vld [vmem:[%s1712 + $0x60] sm:$0xff]
        %v1730 = vld [vmem:[%s1712 + $0x68] sm:$0xf]
        %v1731 = vld [vmem:[%s1712 + $0x6c] sm:$0xff]
        %v1732 = vld [vmem:[%s1712 + $0x74] sm:$0xf]
        %v1733 = vld [vmem:[%s1712 + $0x78] sm:$0xff]
        %v1734 = vld [vmem:[%s1712 + $0x80] sm:$0xf]
        %v1735 = vld [vmem:[%s1712 + $0x84] sm:$0xff]
        %v1736 = vld [vmem:[%s1712 + $0x8c] sm:$0xf]
        %v1737 = vld [vmem:[%s1712 + $0x90] sm:$0xff]
        %v1738 = vld [vmem:[%s1712 + $0x98] sm:$0xf]
        %v1739 = vld [vmem:[%s1712 + $0x9c] sm:$0xff]
        %v1740 = vld [vmem:[%s1712 + $0xa4] sm:$0xf]
        %v1741 = vld [vmem:[%s1712 + $0xa8] sm:$0xff]
        %v1742 = vld [vmem:[%s1712 + $0xb0] sm:$0xf]
        %v1743 = vld [vmem:[%s1712 + $0xb4] sm:$0xff]
        %v1744 = vld [vmem:[%s1712 + $0xbc] sm:$0xf]
        %v1748 = vunpack.c.l.b16 %v590
        %v1749 = vunpack.c.l.b16 %v591
        %v1750 = vunpack.c.l.b16 %v592
        %v1751 = vpack.c.b16 %v716, %v715
        %v1752 = vpack.c.b16 %v1748, %v717
        %v1753 = vpack.c.b16 %v1750, %v1749
        %v1789 = vunpack.c.l.b16 %v1713
        %v1790 = vunpack.c.h.b16 %v1713
        %v1791 = vunpack.c.l.b16 %v1714
        %v1792 = vunpack.c.l.b16 %v1715
        %v1793 = vunpack.c.h.b16 %v1715
        %v1794 = vunpack.c.l.b16 %v1716
        %v1795 = vunpack.c.l.b16 %v1717
        %v1796 = vunpack.c.h.b16 %v1717
        %v1797 = vunpack.c.l.b16 %v1718
        %v1798 = vunpack.c.l.b16 %v1719
        %v1799 = vunpack.c.h.b16 %v1719
        %v1800 = vunpack.c.l.b16 %v1720
        %v1801 = vunpack.c.l.b16 %v1721
        %v1802 = vunpack.c.h.b16 %v1721
        %v1803 = vunpack.c.l.b16 %v1722
        %v1804 = vunpack.c.l.b16 %v1723
        %v1805 = vunpack.c.h.b16 %v1723
        %v1806 = vunpack.c.l.b16 %v1724
        %v1807 = vunpack.c.l.b16 %v1725
        %v1808 = vunpack.c.h.b16 %v1725
        %v1809 = vunpack.c.l.b16 %v1726
        %v1810 = vunpack.c.l.b16 %v1727
        %v1811 = vunpack.c.h.b16 %v1727
        %v1812 = vunpack.c.l.b16 %v1728
        %v1813 = vunpack.c.l.b16 %v1729
        %v1814 = vunpack.c.h.b16 %v1729
        %v1815 = vunpack.c.l.b16 %v1730
        %v1816 = vunpack.c.l.b16 %v1731
        %v1817 = vunpack.c.h.b16 %v1731
        %v1818 = vunpack.c.l.b16 %v1732
        %v1819 = vunpack.c.l.b16 %v1733
        %v1820 = vunpack.c.h.b16 %v1733
        %v1821 = vunpack.c.l.b16 %v1734
        %v1822 = vunpack.c.l.b16 %v1735
        %v1823 = vunpack.c.h.b16 %v1735
        %v1824 = vunpack.c.l.b16 %v1736
        %v1825 = vunpack.c.l.b16 %v1737
        %v1826 = vunpack.c.h.b16 %v1737
        %v1827 = vunpack.c.l.b16 %v1738
        %v1828 = vunpack.c.l.b16 %v1739
        %v1829 = vunpack.c.h.b16 %v1739
        %v1830 = vunpack.c.l.b16 %v1740
        %v1831 = vunpack.c.l.b16 %v1741
        %v1832 = vunpack.c.h.b16 %v1741
        %v1833 = vunpack.c.l.b16 %v1742
        %v1834 = vunpack.c.l.b16 %v1743
        %v1835 = vunpack.c.h.b16 %v1743
        %v1836 = vunpack.c.l.b16 %v1744
        %v1837 = vpack.c.b16 %v1792, %v1789
        %v1838 = vpack.c.b16 %v1793, %v1790
        %v1839 = vpack.c.b16 %v1794, %v1791
        %v1840 = vpack.c.b16 %v1798, %v1795
        %v1841 = vpack.c.b16 %v1799, %v1796
        %v1842 = vpack.c.b16 %v1800, %v1797
        %v1843 = vpack.c.b16 %v1804, %v1801
        %v1844 = vpack.c.b16 %v1805, %v1802
        %v1845 = vpack.c.b16 %v1806, %v1803
        %v1846 = vpack.c.b16 %v1810, %v1807
        %v1847 = vpack.c.b16 %v1811, %v1808
        %v1848 = vpack.c.b16 %v1812, %v1809
        %v1849 = vpack.c.b16 %v1816, %v1813
        %v1850 = vpack.c.b16 %v1817, %v1814
        %v1851 = vpack.c.b16 %v1818, %v1815
        %v1852 = vpack.c.b16 %v1822, %v1819
        %v1853 = vpack.c.b16 %v1823, %v1820
        %v1854 = vpack.c.b16 %v1824, %v1821
        %v1855 = vpack.c.b16 %v1828, %v1825
        %v1856 = vpack.c.b16 %v1829, %v1826
        %v1857 = vpack.c.b16 %v1830, %v1827
        %v1858 = vpack.c.b16 %v1834, %v1831
        %v1859 = vpack.c.b16 %v1835, %v1832
        %v1860 = vpack.c.b16 %v1836, %v1833
        %1885 = vmatprep.subr.bf16.mxu0 %v1838
        %1886 = vmatpush1.bf16.msra.mxu0 %v1837
        %1887 = vmatprep.subr.bf16.mxu0 %v1841
        %1888 = vmatpush1.bf16.msra.mxu0 %v1840
        %1889 = vmatprep.subr.bf16.mxu0 %v1844
        %1890 = vmatpush1.bf16.msra.mxu0 %v1843
        %1891 = vmatprep.subr.bf16.mxu0 %v1847
        %1892 = vmatpush1.bf16.msra.mxu0 %v1846
        %1893 = vmatprep.subr.bf16.mxu0 %v1850
        %1894 = vmatpush1.bf16.msra.mxu0 %v1849
        %1895 = vmatprep.subr.bf16.mxu0 %v1853
        %1896 = vmatpush1.bf16.msra.mxu0 %v1852
        %1897 = vmatprep.subr.bf16.mxu0 %v1856
        %1898 = vmatpush1.bf16.msra.mxu0 %v1855
        %1899 = vmatprep.subr.bf16.mxu0 %v1859
        %1900 = vmatpush1.bf16.msra.mxu0 %v1858
        %1901 = vmatprep.subr.bf16.mxu0 0
        %1902 = vmatpush1.bf16.msra.mxu0 0
        %1903 = vmatprep.subr.bf16.mxu0 0
        %1904 = vmatpush1.bf16.msra.mxu0 0
        %1905 = vmatprep.subr.bf16.mxu0 0
        %1906 = vmatpush1.bf16.msra.mxu0 0
        %1907 = vmatprep.subr.bf16.mxu0 0
        %1908 = vmatpush1.bf16.msra.mxu0 0
        %1909 = vmatprep.subr.bf16.mxu0 0
        %1910 = vmatpush1.bf16.msra.mxu0 0
        %1911 = vmatprep.subr.bf16.mxu0 0
        %1912 = vmatpush1.bf16.msra.mxu0 0
        %1913 = vmatprep.subr.bf16.mxu0 0
        %1914 = vmatpush1.bf16.msra.mxu0 0
        %1915 = vmatprep.subr.bf16.mxu0 0
        %1916 = vmatpush1.bf16.msra.mxu0 0
        %1917 = vmatprep.mubr.bf16.mxu0 0
        %1918 = vmatmul.mubr.bf16.gmra.mrb[0].mxu0 %v1221
        %v1919 = vpop.f32.mrb[0].mxu0
        %v1920 = vadd.f32 0.0, %v1919
        %v1921 = vpop.f32.mrb[0].mxu0
        %v1922 = vadd.f32 0.0, %v1921
        %v1923 = vpop.f32.mrb[0].mxu0
        %v1924 = vadd.f32 0.0, %v1923
        %v1925 = vpop.f32.mrb[0].mxu0
        %v1926 = vadd.f32 0.0, %v1925
        %1927 = vmatprep.mubr.bf16.mxu0 0
        %1928 = vmatmul.mubr.bf16.gmra.mrb[0].mxu0 %v1222
        %v1929 = vpop.f32.mrb[0].mxu0
        %v1930 = vadd.f32 0.0, %v1929
        %v1931 = vpop.f32.mrb[0].mxu0
        %v1932 = vadd.f32 0.0, %v1931
        %v1933 = vpop.f32.mrb[0].mxu0
        %v1934 = vadd.f32 0.0, %v1933
        %v1935 = vpop.f32.mrb[0].mxu0
        %v1936 = vadd.f32 0.0, %v1935
        %1937 = vmatprep.mubr.bf16.mxu0 0
        %1938 = vmatmul.mubr.bf16.gmra.mrb[0].mxu0 %v1223
        %v1939 = vpop.f32.mrb[0].mxu0
        %v1940 = vadd.f32 0.0, %v1939
        %v1941 = vpop.f32.mrb[0].mxu0
        %v1942 = vadd.f32 0.0, %v1941
        %v1943 = vpop.f32.mrb[0].mxu0
        %v1944 = vadd.f32 0.0, %v1943
        %v1945 = vpop.f32.mrb[0].mxu0
        %v1946 = vadd.f32 0.0, %v1945
        %1947 = vmatprep.mubr.bf16.mxu0 0
        %1948 = vmatmul.mubr.bf16.gmra.mrb[0].mxu0 %v1224
        %v1949 = vpop.f32.mrb[0].mxu0
        %v1950 = vadd.f32 0.0, %v1949
        %v1951 = vpop.f32.mrb[0].mxu0
        %v1952 = vadd.f32 0.0, %v1951
        %v1953 = vpop.f32.mrb[0].mxu0
        %v1954 = vadd.f32 0.0, %v1953
        %v1955 = vpop.f32.mrb[0].mxu0
        %v1956 = vadd.f32 0.0, %v1955
        %1957 = vmatprep.mubr.bf16.mxu0 0
        %1958 = vmatmul.mubr.bf16.gmra.mrb[0].mxu0 %v1225
        %v1959 = vpop.f32.mrb[0].mxu0
        %v1960 = vadd.f32 0.0, %v1959
        %v1961 = vpop.f32.mrb[0].mxu0
        %v1962 = vadd.f32 0.0, %v1961
        %v1963 = vpop.f32.mrb[0].mxu0
        %v1964 = vadd.f32 0.0, %v1963
        %v1965 = vpop.f32.mrb[0].mxu0
        %v1966 = vadd.f32 0.0, %v1965
        %1967 = vmatprep.mubr.bf16.mxu0 0
        %1968 = vmatmul.mubr.bf16.gmra.mrb[0].mxu0 %v1226
        %v1969 = vpop.f32.mrb[0].mxu0
        %v1970 = vadd.f32 0.0, %v1969
        %v1971 = vpop.f32.mrb[0].mxu0
        %v1972 = vadd.f32 0.0, %v1971
        %v1973 = vpop.f32.mrb[0].mxu0
        %v1974 = vadd.f32 0.0, %v1973
        %v1975 = vpop.f32.mrb[0].mxu0
        %v1976 = vadd.f32 0.0, %v1975
        %1977 = vmatprep.mubr.bf16.mxu0 0
        %1978 = vmatmul.mubr.bf16.gmra.mrb[0].mxu0 %v1227
        %v1979 = vpop.f32.mrb[0].mxu0
        %v1980 = vadd.f32 0.0, %v1979
        %v1981 = vpop.f32.mrb[0].mxu0
        %v1982 = vadd.f32 0.0, %v1981
        %v1983 = vpop.f32.mrb[0].mxu0
        %v1984 = vadd.f32 0.0, %v1983
        %v1985 = vpop.f32.mrb[0].mxu0
        %v1986 = vadd.f32 0.0, %v1985
        %1987 = vmatprep.mubr.bf16.mxu0 0
        %1988 = vmatmul.mubr.bf16.gmra.mrb[0].mxu0 %v1228
        %v1989 = vpop.f32.mrb[0].mxu0
        %v1990 = vadd.f32 0.0, %v1989
        %v1991 = vpop.f32.mrb[0].mxu0
        %v1992 = vadd.f32 0.0, %v1991
        %v1993 = vpop.f32.mrb[0].mxu0
        %v1994 = vadd.f32 0.0, %v1993
        %v1995 = vpop.f32.mrb[0].mxu0
        %v1996 = vadd.f32 0.0, %v1995
        %1997 = vmatprep.mubr.bf16.mxu0 0
        %1998 = vmatmul.mubr.bf16.gmra.mrb[0].mxu0 %v1229
        %v1999 = vpop.f32.mrb[0].mxu0
        %v2000 = vadd.f32 0.0, %v1999
        %v2001 = vpop.f32.mrb[0].mxu0
        %v2002 = vadd.f32 0.0, %v2001
        %v2003 = vpop.f32.mrb[0].mxu0
        %v2004 = vadd.f32 0.0, %v2003
        %v2005 = vpop.f32.mrb[0].mxu0
        %v2006 = vadd.f32 0.0, %v2005
        %2007 = vmatprep.mubr.bf16.mxu0 0
        %2008 = vmatmul.mubr.bf16.gmra.mrb[0].mxu0 %v1230
        %v2009 = vpop.f32.mrb[0].mxu0
        %v2010 = vadd.f32 0.0, %v2009
        %v2011 = vpop.f32.mrb[0].mxu0
        %v2012 = vadd.f32 0.0, %v2011
        %v2013 = vpop.f32.mrb[0].mxu0
        %v2014 = vadd.f32 0.0, %v2013
        %v2015 = vpop.f32.mrb[0].mxu0
        %v2016 = vadd.f32 0.0, %v2015
        %2017 = vmatprep.mubr.bf16.mxu0 0
        %2018 = vmatmul.mubr.bf16.gmra.mrb[0].mxu0 %v1231
        %v2019 = vpop.f32.mrb[0].mxu0
        %v2020 = vadd.f32 0.0, %v2019
        %v2021 = vpop.f32.mrb[0].mxu0
        %v2022 = vadd.f32 0.0, %v2021
        %v2023 = vpop.f32.mrb[0].mxu0
        %v2024 = vadd.f32 0.0, %v2023
        %v2025 = vpop.f32.mrb[0].mxu0
        %v2026 = vadd.f32 0.0, %v2025
        %2027 = vmatprep.mubr.bf16.mxu0 0
        %2028 = vmatmul.mubr.bf16.gmra.mrb[0].mxu0 %v1232
        %v2029 = vpop.f32.mrb[0].mxu0
        %v2030 = vadd.f32 0.0, %v2029
        %v2031 = vpop.f32.mrb[0].mxu0
        %v2032 = vadd.f32 0.0, %v2031
        %v2033 = vpop.f32.mrb[0].mxu0
        %v2034 = vadd.f32 0.0, %v2033
        %v2035 = vpop.f32.mrb[0].mxu0
        %v2036 = vadd.f32 0.0, %v2035
        %2037 = vmatprep.mubr.bf16.mxu0 0
        %2038 = vmatmul.mubr.bf16.gmra.mrb[0].mxu0 %v1751
        %v2039 = vpop.f32.mrb[0].mxu0
        %v2040 = vadd.f32 0.0, %v2039
        %v2041 = vpop.f32.mrb[0].mxu0
        %v2042 = vadd.f32 0.0, %v2041
        %v2043 = vpop.f32.mrb[0].mxu0
        %v2044 = vadd.f32 0.0, %v2043
        %v2045 = vpop.f32.mrb[0].mxu0
        %v2046 = vadd.f32 0.0, %v2045
        %2047 = vmatprep.mubr.bf16.mxu0 0
        %2048 = vmatmul.mubr.bf16.gmra.mrb[0].mxu0 %v1752
        %v2049 = vpop.f32.mrb[0].mxu0
        %v2050 = vadd.f32 0.0, %v2049
        %v2051 = vpop.f32.mrb[0].mxu0
        %v2052 = vadd.f32 0.0, %v2051
        %v2053 = vpop.f32.mrb[0].mxu0
        %v2054 = vadd.f32 0.0, %v2053
        %v2055 = vpop.f32.mrb[0].mxu0
        %v2056 = vadd.f32 0.0, %v2055
        %2057 = vmatprep.mubr.bf16.mxu0 0
        %2058 = vmatmul.mubr.bf16.gmra.mrb[0].mxu0 %v1753
        %v2059 = vpop.f32.mrb[0].mxu0
        %v2060 = vadd.f32 0.0, %v2059
        %v2061 = vpop.f32.mrb[0].mxu0
        %v2062 = vadd.f32 0.0, %v2061
        %v2063 = vpop.f32.mrb[0].mxu0
        %v2064 = vadd.f32 0.0, %v2063
        %v2065 = vpop.f32.mrb[0].mxu0
        %v2066 = vadd.f32 0.0, %v2065
        %2067 = vdwg.mxu0
        %2068 = vmatprep.subr.bf16.mxu0 0
        %2069 = vmatpush1.bf16.msra.mxu0 %v1839
        %2070 = vmatprep.subr.bf16.mxu0 0
        %2071 = vmatpush1.bf16.msra.mxu0 %v1842
        %2072 = vmatprep.subr.bf16.mxu0 0
        %2073 = vmatpush1.bf16.msra.mxu0 %v1845
        %2074 = vmatprep.subr.bf16.mxu0 0
        %2075 = vmatpush1.bf16.msra.mxu0 %v1848
        %2076 = vmatprep.subr.bf16.mxu0 0
        %2077 = vmatpush1.bf16.msra.mxu0 %v1851
        %2078 = vmatprep.subr.bf16.mxu0 0
        %2079 = vmatpush1.bf16.msra.mxu0 %v1854
        %2080 = vmatprep.subr.bf16.mxu0 0
        %2081 = vmatpush1.bf16.msra.mxu0 %v1857
        %2082 = vmatprep.subr.bf16.mxu0 0
        %2083 = vmatpush1.bf16.msra.mxu0 %v1860
        %2084 = vmatprep.subr.bf16.mxu0 0
        %2085 = vmatpush1.bf16.msra.mxu0 0
        %2086 = vmatprep.subr.bf16.mxu0 0
        %2087 = vmatpush1.bf16.msra.mxu0 0
        %2088 = vmatprep.subr.bf16.mxu0 0
        %2089 = vmatpush1.bf16.msra.mxu0 0
        %2090 = vmatprep.subr.bf16.mxu0 0
        %2091 = vmatpush1.bf16.msra.mxu0 0
        %2092 = vmatprep.subr.bf16.mxu0 0
        %2093 = vmatpush1.bf16.msra.mxu0 0
        %2094 = vmatprep.subr.bf16.mxu0 0
        %2095 = vmatpush1.bf16.msra.mxu0 0
        %2096 = vmatprep.subr.bf16.mxu0 0
        %2097 = vmatpush1.bf16.msra.mxu0 0
        %2098 = vmatprep.subr.bf16.mxu0 0
        %2099 = vmatpush1.bf16.msra.mxu0 0
        %2100 = vmatprep.mubr.bf16.mxu0 0
        %2101 = vmatmul.mubr.bf16.gmra.mrb[0].mxu0 %v1221
        %v2102 = vpop.f32.mrb[0].mxu0
        %v2103 = vadd.f32 0.0, %v2102
        %v2104 = vpop.f32.mrb[0].mxu0
        %v2105 = vpop.f32.mrb[0].mxu0
        %v2106 = vadd.f32 0.0, %v2105
        %v2107 = vpop.f32.mrb[0].mxu0
        %2108 = vmatprep.mubr.bf16.mxu0 0
        %2109 = vmatmul.mubr.bf16.gmra.mrb[0].mxu0 %v1222
        %v2110 = vpop.f32.mrb[0].mxu0
        %v2111 = vadd.f32 0.0, %v2110
        %v2112 = vpop.f32.mrb[0].mxu0
        %v2113 = vpop.f32.mrb[0].mxu0
        %v2114 = vadd.f32 0.0, %v2113
        %v2115 = vpop.f32.mrb[0].mxu0
        %2116 = vmatprep.mubr.bf16.mxu0 0
        %2117 = vmatmul.mubr.bf16.gmra.mrb[0].mxu0 %v1223
        %v2118 = vpop.f32.mrb[0].mxu0
        %v2119 = vadd.f32 0.0, %v2118
        %v2120 = vpop.f32.mrb[0].mxu0
        %v2121 = vpop.f32.mrb[0].mxu0
        %v2122 = vadd.f32 0.0, %v2121
        %v2123 = vpop.f32.mrb[0].mxu0
        %2124 = vmatprep.mubr.bf16.mxu0 0
        %2125 = vmatmul.mubr.bf16.gmra.mrb[0].mxu0 %v1224
        %v2126 = vpop.f32.mrb[0].mxu0
        %v2127 = vadd.f32 0.0, %v2126
        %v2128 = vpop.f32.mrb[0].mxu0
        %v2129 = vpop.f32.mrb[0].mxu0
        %v2130 = vadd.f32 0.0, %v2129
        %v2131 = vpop.f32.mrb[0].mxu0
        %2132 = vmatprep.mubr.bf16.mxu0 0
        %2133 = vmatmul.mubr.bf16.gmra.mrb[0].mxu0 %v1225
        %v2134 = vpop.f32.mrb[0].mxu0
        %v2135 = vadd.f32 0.0, %v2134
        %v2136 = vpop.f32.mrb[0].mxu0
        %v2137 = vpop.f32.mrb[0].mxu0
        %v2138 = vadd.f32 0.0, %v2137
        %v2139 = vpop.f32.mrb[0].mxu0
        %2140 = vmatprep.mubr.bf16.mxu0 0
        %2141 = vmatmul.mubr.bf16.gmra.mrb[0].mxu0 %v1226
        %v2142 = vpop.f32.mrb[0].mxu0
        %v2143 = vadd.f32 0.0, %v2142
        %v2144 = vpop.f32.mrb[0].mxu0
        %v2145 = vpop.f32.mrb[0].mxu0
        %v2146 = vadd.f32 0.0, %v2145
        %v2147 = vpop.f32.mrb[0].mxu0
        %2148 = vmatprep.mubr.bf16.mxu0 0
        %2149 = vmatmul.mubr.bf16.gmra.mrb[0].mxu0 %v1227
        %v2150 = vpop.f32.mrb[0].mxu0
        %v2151 = vadd.f32 0.0, %v2150
        %v2152 = vpop.f32.mrb[0].mxu0
        %v2153 = vpop.f32.mrb[0].mxu0
        %v2154 = vadd.f32 0.0, %v2153
        %v2155 = vpop.f32.mrb[0].mxu0
        %2156 = vmatprep.mubr.bf16.mxu0 0
        %2157 = vmatmul.mubr.bf16.gmra.mrb[0].mxu0 %v1228
        %v2158 = vpop.f32.mrb[0].mxu0
        %v2159 = vadd.f32 0.0, %v2158
        %v2160 = vpop.f32.mrb[0].mxu0
        %v2161 = vpop.f32.mrb[0].mxu0
        %v2162 = vadd.f32 0.0, %v2161
        %v2163 = vpop.f32.mrb[0].mxu0
        %2164 = vmatprep.mubr.bf16.mxu0 0
        %2165 = vmatmul.mubr.bf16.gmra.mrb[0].mxu0 %v1229
        %v2166 = vpop.f32.mrb[0].mxu0
        %v2167 = vadd.f32 0.0, %v2166
        %v2168 = vpop.f32.mrb[0].mxu0
        %v2169 = vpop.f32.mrb[0].mxu0
        %v2170 = vadd.f32 0.0, %v2169
        %v2171 = vpop.f32.mrb[0].mxu0
        %2172 = vmatprep.mubr.bf16.mxu0 0
        %2173 = vmatmul.mubr.bf16.gmra.mrb[0].mxu0 %v1230
        %v2174 = vpop.f32.mrb[0].mxu0
        %v2175 = vadd.f32 0.0, %v2174
        %v2176 = vpop.f32.mrb[0].mxu0
        %v2177 = vpop.f32.mrb[0].mxu0
        %v2178 = vadd.f32 0.0, %v2177
        %v2179 = vpop.f32.mrb[0].mxu0
        %2180 = vmatprep.mubr.bf16.mxu0 0
        %2181 = vmatmul.mubr.bf16.gmra.mrb[0].mxu0 %v1231
        %v2182 = vpop.f32.mrb[0].mxu0
        %v2183 = vadd.f32 0.0, %v2182
        %v2184 = vpop.f32.mrb[0].mxu0
        %v2185 = vpop.f32.mrb[0].mxu0
        %v2186 = vadd.f32 0.0, %v2185
        %v2187 = vpop.f32.mrb[0].mxu0
        %2188 = vmatprep.mubr.bf16.mxu0 0
        %2189 = vmatmul.mubr.bf16.gmra.mrb[0].mxu0 %v1232
        %v2190 = vpop.f32.mrb[0].mxu0
        %v2191 = vadd.f32 0.0, %v2190
        %v2192 = vpop.f32.mrb[0].mxu0
        %v2193 = vpop.f32.mrb[0].mxu0
        %v2194 = vadd.f32 0.0, %v2193
        %v2195 = vpop.f32.mrb[0].mxu0
        %2196 = vmatprep.mubr.bf16.mxu0 0
        %2197 = vmatmul.mubr.bf16.gmra.mrb[0].mxu0 %v1751
        %v2198 = vpop.f32.mrb[0].mxu0
        %v2199 = vadd.f32 0.0, %v2198
        %v2200 = vpop.f32.mrb[0].mxu0
        %v2201 = vpop.f32.mrb[0].mxu0
        %v2202 = vadd.f32 0.0, %v2201
        %v2203 = vpop.f32.mrb[0].mxu0
        %2204 = vmatprep.mubr.bf16.mxu0 0
        %2205 = vmatmul.mubr.bf16.gmra.mrb[0].mxu0 %v1752
        %v2206 = vpop.f32.mrb[0].mxu0
        %v2207 = vadd.f32 0.0, %v2206
        %v2208 = vpop.f32.mrb[0].mxu0
        %v2209 = vpop.f32.mrb[0].mxu0
        %v2210 = vadd.f32 0.0, %v2209
        %v2211 = vpop.f32.mrb[0].mxu0
        %2212 = vmatprep.mubr.bf16.mxu0 0
        %2213 = vmatmul.mubr.bf16.gmra.mrb[0].mxu0 %v1753
        %v2214 = vpop.f32.mrb[0].mxu0
        %v2215 = vadd.f32 0.0, %v2214
        %v2216 = vpop.f32.mrb[0].mxu0
        %v2217 = vpop.f32.mrb[0].mxu0
        %v2218 = vadd.f32 0.0, %v2217
        %v2219 = vpop.f32.mrb[0].mxu0
        %2220 = vdwg.mxu0
        %v2221 = vadd.f32 %v1411, %v1920
        %v2222 = vadd.f32 %v1413, %v1922
        %v2223 = vadd.f32 %v1594, %v2103
        %v2224 = vadd.f32 %v1415, %v1924
        %v2225 = vadd.f32 %v1417, %v1926
        %v2226 = vadd.f32 %v1597, %v2106
        %v2227 = vadd.f32 %v1421, %v1930
        %v2228 = vadd.f32 %v1423, %v1932
        %v2229 = vadd.f32 %v1602, %v2111
        %v2230 = vadd.f32 %v1425, %v1934
        %v2231 = vadd.f32 %v1427, %v1936
        %v2232 = vadd.f32 %v1605, %v2114
        %v2233 = vadd.f32 %v1431, %v1940
        %v2234 = vadd.f32 %v1433, %v1942
        %v2235 = vadd.f32 %v1610, %v2119
        %v2236 = vadd.f32 %v1435, %v1944
        %v2237 = vadd.f32 %v1437, %v1946
        %v2238 = vadd.f32 %v1613, %v2122
        %v2239 = vadd.f32 %v1441, %v1950
        %v2240 = vadd.f32 %v1443, %v1952
        %v2241 = vadd.f32 %v1618, %v2127
        %v2242 = vadd.f32 %v1445, %v1954
        %v2243 = vadd.f32 %v1447, %v1956
        %v2244 = vadd.f32 %v1621, %v2130
        %v2245 = vadd.f32 %v1451, %v1960
        %v2246 = vadd.f32 %v1453, %v1962
        %v2247 = vadd.f32 %v1626, %v2135
        %v2248 = vadd.f32 %v1455, %v1964
        %v2249 = vadd.f32 %v1457, %v1966
        %v2250 = vadd.f32 %v1629, %v2138
        %v2251 = vadd.f32 %v1461, %v1970
        %v2252 = vadd.f32 %v1463, %v1972
        %v2253 = vadd.f32 %v1634, %v2143
        %v2254 = vadd.f32 %v1465, %v1974
        %v2255 = vadd.f32 %v1467, %v1976
        %v2256 = vadd.f32 %v1637, %v2146
        %v2257 = vadd.f32 %v1471, %v1980
        %v2258 = vadd.f32 %v1473, %v1982
        %v2259 = vadd.f32 %v1642, %v2151
        %v2260 = vadd.f32 %v1475, %v1984
        %v2261 = vadd.f32 %v1477, %v1986
        %v2262 = vadd.f32 %v1645, %v2154
        %v2263 = vadd.f32 %v1481, %v1990
        %v2264 = vadd.f32 %v1483, %v1992
        %v2265 = vadd.f32 %v1650, %v2159
        %v2266 = vadd.f32 %v1485, %v1994
        %v2267 = vadd.f32 %v1487, %v1996
        %v2268 = vadd.f32 %v1653, %v2162
        %v2269 = vadd.f32 %v1491, %v2000
        %v2270 = vadd.f32 %v1493, %v2002
        %v2271 = vadd.f32 %v1658, %v2167
        %v2272 = vadd.f32 %v1495, %v2004
        %v2273 = vadd.f32 %v1497, %v2006
        %v2274 = vadd.f32 %v1661, %v2170
        %v2275 = vadd.f32 %v1501, %v2010
        %v2276 = vadd.f32 %v1503, %v2012
        %v2277 = vadd.f32 %v1666, %v2175
        %v2278 = vadd.f32 %v1505, %v2014
        %v2279 = vadd.f32 %v1507, %v2016
        %v2280 = vadd.f32 %v1669, %v2178
        %v2281 = vadd.f32 %v1511, %v2020
        %v2282 = vadd.f32 %v1513, %v2022
        %v2283 = vadd.f32 %v1674, %v2183
        %v2284 = vadd.f32 %v1515, %v2024
        %v2285 = vadd.f32 %v1517, %v2026
        %v2286 = vadd.f32 %v1677, %v2186
        %v2287 = vadd.f32 %v1521, %v2030
        %v2288 = vadd.f32 %v1523, %v2032
        %v2289 = vadd.f32 %v1682, %v2191
        %v2290 = vadd.f32 %v1525, %v2034
        %v2291 = vadd.f32 %v1527, %v2036
        %v2292 = vadd.f32 %v1685, %v2194
        %v2293 = vadd.f32 %v1531, %v2040
        %v2294 = vadd.f32 %v1533, %v2042
        %v2295 = vadd.f32 %v1690, %v2199
        %v2296 = vadd.f32 %v1535, %v2044
        %v2297 = vadd.f32 %v1537, %v2046
        %v2298 = vadd.f32 %v1693, %v2202
        %v2299 = vadd.f32 %v1541, %v2050
        %v2300 = vadd.f32 %v1543, %v2052
        %v2301 = vadd.f32 %v1698, %v2207
        %v2302 = vadd.f32 %v1545, %v2054
        %v2303 = vadd.f32 %v1547, %v2056
        %v2304 = vadd.f32 %v1701, %v2210
        %v2305 = vadd.f32 %v1551, %v2060
        %v2306 = vadd.f32 %v1553, %v2062
        %v2307 = vadd.f32 %v1706, %v2215
        %v2308 = vadd.f32 %v1555, %v2064
        %v2309 = vadd.f32 %v1557, %v2066
        %v2310 = vadd.f32 %v1709, %v2218
        %v2311 = vrot.slane %v2221, 7
        %v2312 = vrot.slane %v2224, 7
        %v2313 = vrot.slane %v2227, 7
        %v2314 = vrot.slane %v2230, 7
        %v2315 = vrot.slane %v2233, 7
        %v2316 = vrot.slane %v2236, 7
        %v2317 = vrot.slane %v2239, 7
        %v2318 = vrot.slane %v2242, 7
        %v2319 = vrot.slane %v2245, 7
        %v2320 = vrot.slane %v2248, 7
        %v2321 = vrot.slane %v2251, 7
        %v2322 = vrot.slane %v2254, 7
        %v2323 = vrot.slane %v2257, 7
        %v2324 = vrot.slane %v2260, 7
        %v2325 = vrot.slane %v2263, 7
        %v2326 = vrot.slane %v2266, 7
        %v2327 = vrot.slane %v2269, 7
        %v2328 = vrot.slane %v2272, 7
        %v2329 = vrot.slane %v2275, 7
        %v2330 = vrot.slane %v2278, 7
        %v2331 = vrot.slane %v2281, 7
        %v2332 = vrot.slane %v2284, 7
        %v2333 = vrot.slane %v2287, 7
        %v2334 = vrot.slane %v2290, 7
        %v2335 = vrot.slane %v2293, 7
        %v2336 = vrot.slane %v2296, 7
        %v2337 = vrot.slane %v2299, 7
        %v2338 = vrot.slane %v2302, 7
        %v2339 = vrot.slane %v2305, 7
        %v2340 = vrot.slane %v2308, 7
        %v2341 = vlaneseq
        %v2342 = vshrl.u32 %v2341, 7
        %vm2343 = vcmp.lt.s32.totalorder %v2342, 1
        %v2344 = vsel %vm2343, %v2339, %v2340
        %v2345 = vsel %vm2343, %v2338, %v2339
        %v2346 = vsel %vm2343, %v2337, %v2338
        %v2347 = vsel %vm2343, %v2336, %v2337
        %v2348 = vsel %vm2343, %v2335, %v2336
        %v2349 = vsel %vm2343, %v2334, %v2335
        %v2350 = vsel %vm2343, %v2333, %v2334
        %v2351 = vsel %vm2343, %v2332, %v2333
        %v2352 = vsel %vm2343, %v2331, %v2332
        %v2353 = vsel %vm2343, %v2330, %v2331
        %v2354 = vsel %vm2343, %v2329, %v2330
        %v2355 = vsel %vm2343, %v2328, %v2329
        %v2356 = vsel %vm2343, %v2327, %v2328
        %v2357 = vsel %vm2343, %v2326, %v2327
        %v2358 = vsel %vm2343, %v2325, %v2326
        %v2359 = vsel %vm2343, %v2324, %v2325
        %v2360 = vsel %vm2343, %v2323, %v2324
        %v2361 = vsel %vm2343, %v2322, %v2323
        %v2362 = vsel %vm2343, %v2321, %v2322
        %v2363 = vsel %vm2343, %v2320, %v2321
        %v2364 = vsel %vm2343, %v2319, %v2320
        %v2365 = vsel %vm2343, %v2318, %v2319
        %v2366 = vsel %vm2343, %v2317, %v2318
        %v2367 = vsel %vm2343, %v2316, %v2317
        %v2368 = vsel %vm2343, %v2315, %v2316
        %v2369 = vsel %vm2343, %v2314, %v2315
        %v2370 = vsel %vm2343, %v2313, %v2314
        %v2371 = vsel %vm2343, %v2312, %v2313
        %v2372 = vsel %vm2343, %v2311, %v2312
        %v2373 = vsel %vm2343, %v2340, %v2311
        %v2374 = vadd.f32 %v2222, %v2373
        %v2375 = vadd.f32 %v2225, %v2372
        %v2376 = vadd.f32 %v2228, %v2371
        %v2377 = vadd.f32 %v2231, %v2370
        %v2378 = vadd.f32 %v2234, %v2369
        %v2379 = vadd.f32 %v2237, %v2368
        %v2380 = vadd.f32 %v2240, %v2367
        %v2381 = vadd.f32 %v2243, %v2366
        %v2382 = vadd.f32 %v2246, %v2365
        %v2383 = vadd.f32 %v2249, %v2364
        %v2384 = vadd.f32 %v2252, %v2363
        %v2385 = vadd.f32 %v2255, %v2362
        %v2386 = vadd.f32 %v2258, %v2361
        %v2387 = vadd.f32 %v2261, %v2360
        %v2388 = vadd.f32 %v2264, %v2359
        %v2389 = vadd.f32 %v2267, %v2358
        %v2390 = vadd.f32 %v2270, %v2357
        %v2391 = vadd.f32 %v2273, %v2356
        %v2392 = vadd.f32 %v2276, %v2355
        %v2393 = vadd.f32 %v2279, %v2354
        %v2394 = vadd.f32 %v2282, %v2353
        %v2395 = vadd.f32 %v2285, %v2352
        %v2396 = vadd.f32 %v2288, %v2351
        %v2397 = vadd.f32 %v2291, %v2350
        %v2398 = vadd.f32 %v2294, %v2349
        %v2399 = vadd.f32 %v2297, %v2348
        %v2400 = vadd.f32 %v2300, %v2347
        %v2401 = vadd.f32 %v2303, %v2346
        %v2402 = vadd.f32 %v2306, %v2345
        %v2403 = vadd.f32 %v2309, %v2344
        %v2404 = vrot.slane %v2223, 1
        %v2405 = vrot.slane %v2226, 1
        %v2406 = vrot.slane %v2229, 1
        %v2407 = vrot.slane %v2232, 1
        %v2408 = vrot.slane %v2235, 1
        %v2409 = vrot.slane %v2238, 1
        %v2410 = vrot.slane %v2241, 1
        %v2411 = vrot.slane %v2244, 1
        %v2412 = vrot.slane %v2247, 1
        %v2413 = vrot.slane %v2250, 1
        %v2414 = vrot.slane %v2253, 1
        %v2415 = vrot.slane %v2256, 1
        %v2416 = vrot.slane %v2259, 1
        %v2417 = vrot.slane %v2262, 1
        %v2418 = vrot.slane %v2265, 1
        %v2419 = vrot.slane %v2268, 1
        %v2420 = vrot.slane %v2271, 1
        %v2421 = vrot.slane %v2274, 1
        %v2422 = vrot.slane %v2277, 1
        %v2423 = vrot.slane %v2280, 1
        %v2424 = vrot.slane %v2283, 1
        %v2425 = vrot.slane %v2286, 1
        %v2426 = vrot.slane %v2289, 1
        %v2427 = vrot.slane %v2292, 1
        %v2428 = vrot.slane %v2295, 1
        %v2429 = vrot.slane %v2298, 1
        %v2430 = vrot.slane %v2301, 1
        %v2431 = vrot.slane %v2304, 1
        %v2432 = vrot.slane %v2307, 1
        %v2433 = vrot.slane %v2310, 1
        %vm2434 = vcmp.lt.s32.totalorder %v2342, 7
        %v2435 = vsel %vm2434, %v2432, %v2433
        %v2436 = vsel %vm2434, %v2431, %v2432
        %v2437 = vsel %vm2434, %v2430, %v2431
        %v2438 = vsel %vm2434, %v2429, %v2430
        %v2439 = vsel %vm2434, %v2428, %v2429
        %v2440 = vsel %vm2434, %v2427, %v2428
        %v2441 = vsel %vm2434, %v2426, %v2427
        %v2442 = vsel %vm2434, %v2425, %v2426
        %v2443 = vsel %vm2434, %v2424, %v2425
        %v2444 = vsel %vm2434, %v2423, %v2424
        %v2445 = vsel %vm2434, %v2422, %v2423
        %v2446 = vsel %vm2434, %v2421, %v2422
        %v2447 = vsel %vm2434, %v2420, %v2421
        %v2448 = vsel %vm2434, %v2419, %v2420
        %v2449 = vsel %vm2434, %v2418, %v2419
        %v2450 = vsel %vm2434, %v2417, %v2418
        %v2451 = vsel %vm2434, %v2416, %v2417
        %v2452 = vsel %vm2434, %v2415, %v2416
        %v2453 = vsel %vm2434, %v2414, %v2415
        %v2454 = vsel %vm2434, %v2413, %v2414
        %v2455 = vsel %vm2434, %v2412, %v2413
        %v2456 = vsel %vm2434, %v2411, %v2412
        %v2457 = vsel %vm2434, %v2410, %v2411
        %v2458 = vsel %vm2434, %v2409, %v2410
        %v2459 = vsel %vm2434, %v2408, %v2409
        %v2460 = vsel %vm2434, %v2407, %v2408
        %v2461 = vsel %vm2434, %v2406, %v2407
        %v2462 = vsel %vm2434, %v2405, %v2406
        %v2463 = vsel %vm2434, %v2404, %v2405
        %v2464 = vsel %vm2434, %v2433, %v2404
        %v2465 = vadd.f32 %v2374, %v2463
        %v2466 = vadd.f32 %v2375, %v2462
        %v2467 = vadd.f32 %v2376, %v2461
        %v2468 = vadd.f32 %v2377, %v2460
        %v2469 = vadd.f32 %v2378, %v2459
        %v2470 = vadd.f32 %v2379, %v2458
        %v2471 = vadd.f32 %v2380, %v2457
        %v2472 = vadd.f32 %v2381, %v2456
        %v2473 = vadd.f32 %v2382, %v2455
        %v2474 = vadd.f32 %v2383, %v2454
        %v2475 = vadd.f32 %v2384, %v2453
        %v2476 = vadd.f32 %v2385, %v2452
        %v2477 = vadd.f32 %v2386, %v2451
        %v2478 = vadd.f32 %v2387, %v2450
        %v2479 = vadd.f32 %v2388, %v2449
        %v2480 = vadd.f32 %v2389, %v2448
        %v2481 = vadd.f32 %v2390, %v2447
        %v2482 = vadd.f32 %v2391, %v2446
        %v2483 = vadd.f32 %v2392, %v2445
        %v2484 = vadd.f32 %v2393, %v2444
        %v2485 = vadd.f32 %v2394, %v2443
        %v2486 = vadd.f32 %v2395, %v2442
        %v2487 = vadd.f32 %v2396, %v2441
        %v2488 = vadd.f32 %v2397, %v2440
        %v2489 = vadd.f32 %v2398, %v2439
        %v2490 = vadd.f32 %v2399, %v2438
        %v2491 = vadd.f32 %v2400, %v2437
        %v2492 = vadd.f32 %v2401, %v2436
        %v2493 = vadd.f32 %v2402, %v2435
        %v2494 = vadd.f32 %v2403, %v2464
        %v2495 = vld [vmem:[%s5] sm:$0x1]
        %v2496 = vlaneseq
        %v2497 = vshrl.u32 %v2496, 7
        %v2498 = vsub.s32 0, %v2497
        %v2499 = vrot.slane %v2495, %v2498
        %v2500 = vmul.f32 %v2465, %v2499
        %v2501 = vmul.f32 %v2466, %v2499
        %v2502 = vmul.f32 %v2467, %v2499
        %v2503 = vmul.f32 %v2468, %v2499
        %v2504 = vmul.f32 %v2469, %v2499
        %v2505 = vmul.f32 %v2470, %v2499
        %v2506 = vmul.f32 %v2471, %v2499
        %v2507 = vmul.f32 %v2472, %v2499
        %v2508 = vmul.f32 %v2473, %v2499
        %v2509 = vmul.f32 %v2474, %v2499
        %v2510 = vmul.f32 %v2475, %v2499
        %v2511 = vmul.f32 %v2476, %v2499
        %v2512 = vmul.f32 %v2477, %v2499
        %v2513 = vmul.f32 %v2478, %v2499
        %v2514 = vmul.f32 %v2479, %v2499
        %v2515 = vmul.f32 %v2480, %v2499
        %v2516 = vmul.f32 %v2481, %v2499
        %v2517 = vmul.f32 %v2482, %v2499
        %v2518 = vmul.f32 %v2483, %v2499
        %v2519 = vmul.f32 %v2484, %v2499
        %v2520 = vmul.f32 %v2485, %v2499
        %v2521 = vmul.f32 %v2486, %v2499
        %v2522 = vmul.f32 %v2487, %v2499
        %v2523 = vmul.f32 %v2488, %v2499
        %v2524 = vmul.f32 %v2489, %v2499
        %v2525 = vmul.f32 %v2490, %v2499
        %v2526 = vmul.f32 %v2491, %v2499
        %v2527 = vmul.f32 %v2492, %v2499
        %v2528 = vmul.f32 %v2493, %v2499
        %v2529 = vmul.f32 %v2494, %v2499
        %v2530 = vld [vmem:[%s5 + $0x1] sm:$0x1]
        %v2531 = vlaneseq
        %v2532 = vshrl.u32 %v2531, 7
        %v2533 = vsub.s32 0, %v2532
        %v2534 = vrot.slane %v2530, %v2533
        %v2535 = vadd.f32 %v2500, %v2534
        %v2536 = vadd.f32 %v2501, %v2534
        %v2537 = vadd.f32 %v2502, %v2534
        %v2538 = vadd.f32 %v2503, %v2534
        %v2539 = vadd.f32 %v2504, %v2534
        %v2540 = vadd.f32 %v2505, %v2534
        %v2541 = vadd.f32 %v2506, %v2534
        %v2542 = vadd.f32 %v2507, %v2534
        %v2543 = vadd.f32 %v2508, %v2534
        %v2544 = vadd.f32 %v2509, %v2534
        %v2545 = vadd.f32 %v2510, %v2534
        %v2546 = vadd.f32 %v2511, %v2534
        %v2547 = vadd.f32 %v2512, %v2534
        %v2548 = vadd.f32 %v2513, %v2534
        %v2549 = vadd.f32 %v2514, %v2534
        %v2550 = vadd.f32 %v2515, %v2534
        %v2551 = vadd.f32 %v2516, %v2534
        %v2552 = vadd.f32 %v2517, %v2534
        %v2553 = vadd.f32 %v2518, %v2534
        %v2554 = vadd.f32 %v2519, %v2534
        %v2555 = vadd.f32 %v2520, %v2534
        %v2556 = vadd.f32 %v2521, %v2534
        %v2557 = vadd.f32 %v2522, %v2534
        %v2558 = vadd.f32 %v2523, %v2534
        %v2559 = vadd.f32 %v2524, %v2534
        %v2560 = vadd.f32 %v2525, %v2534
        %v2561 = vadd.f32 %v2526, %v2534
        %v2562 = vadd.f32 %v2527, %v2534
        %v2563 = vadd.f32 %v2528, %v2534
        %v2564 = vadd.f32 %v2529, %v2534
        %v2565 = vmax.f32 %v2535, 0.0
        %v2566 = vmax.f32 %v2536, 0.0
        %v2567 = vmax.f32 %v2537, 0.0
        %v2568 = vmax.f32 %v2538, 0.0
        %v2569 = vmax.f32 %v2539, 0.0
        %v2570 = vmax.f32 %v2540, 0.0
        %v2571 = vmax.f32 %v2541, 0.0
        %v2572 = vmax.f32 %v2542, 0.0
        %v2573 = vmax.f32 %v2543, 0.0
        %v2574 = vmax.f32 %v2544, 0.0
        %v2575 = vmax.f32 %v2545, 0.0
        %v2576 = vmax.f32 %v2546, 0.0
        %v2577 = vmax.f32 %v2547, 0.0
        %v2578 = vmax.f32 %v2548, 0.0
        %v2579 = vmax.f32 %v2549, 0.0
        %v2580 = vmax.f32 %v2550, 0.0
        %v2581 = vmax.f32 %v2551, 0.0
        %v2582 = vmax.f32 %v2552, 0.0
        %v2583 = vmax.f32 %v2553, 0.0
        %v2584 = vmax.f32 %v2554, 0.0
        %v2585 = vmax.f32 %v2555, 0.0
        %v2586 = vmax.f32 %v2556, 0.0
        %v2587 = vmax.f32 %v2557, 0.0
        %v2588 = vmax.f32 %v2558, 0.0
        %v2589 = vmax.f32 %v2559, 0.0
        %v2590 = vmax.f32 %v2560, 0.0
        %v2591 = vmax.f32 %v2561, 0.0
        %v2592 = vmax.f32 %v2562, 0.0
        %v2593 = vmax.f32 %v2563, 0.0
        %v2594 = vmax.f32 %v2564, 0.0
        %v2595 = vpack.c.bf16 %v2566, %v2565
        %v2596 = vpack.c.bf16 %v2568, %v2567
        %v2597 = vpack.c.bf16 %v2570, %v2569
        %v2598 = vpack.c.bf16 %v2572, %v2571
        %v2599 = vpack.c.bf16 %v2574, %v2573
        %v2600 = vpack.c.bf16 %v2576, %v2575
        %v2601 = vpack.c.bf16 %v2578, %v2577
        %v2602 = vpack.c.bf16 %v2580, %v2579
        %v2603 = vpack.c.bf16 %v2582, %v2581
        %v2604 = vpack.c.bf16 %v2584, %v2583
        %v2605 = vpack.c.bf16 %v2586, %v2585
        %v2606 = vpack.c.bf16 %v2588, %v2587
        %v2607 = vpack.c.bf16 %v2590, %v2589
        %v2608 = vpack.c.bf16 %v2592, %v2591
        %v2609 = vpack.c.bf16 %v2594, %v2593
        %v2625 = vunpack.c.l.b16 %v2595
        %v2626 = vunpack.c.h.b16 %v2595
        %v2627 = vunpack.c.l.b16 %v2596
        %v2628 = vunpack.c.h.b16 %v2596
        %v2629 = vunpack.c.l.b16 %v2597
        %v2630 = vunpack.c.h.b16 %v2597
        %v2631 = vunpack.c.l.b16 %v2598
        %v2632 = vunpack.c.h.b16 %v2598
        %v2633 = vunpack.c.l.b16 %v2599
        %v2634 = vunpack.c.h.b16 %v2599
        %v2635 = vunpack.c.l.b16 %v2600
        %v2636 = vunpack.c.h.b16 %v2600
        %v2637 = vunpack.c.l.b16 %v2601
        %v2638 = vunpack.c.h.b16 %v2601
        %v2639 = vunpack.c.l.b16 %v2602
        %v2640 = vunpack.c.h.b16 %v2602
        %v2641 = vunpack.c.l.b16 %v2603
        %v2642 = vunpack.c.h.b16 %v2603
        %v2643 = vunpack.c.l.b16 %v2604
        %v2644 = vunpack.c.h.b16 %v2604
        %v2645 = vunpack.c.l.b16 %v2605
        %v2646 = vunpack.c.h.b16 %v2605
        %v2647 = vunpack.c.l.b16 %v2606
        %v2648 = vunpack.c.h.b16 %v2606
        %v2649 = vunpack.c.l.b16 %v2607
        %v2650 = vunpack.c.h.b16 %v2607
        %v2651 = vunpack.c.l.b16 %v2608
        %v2652 = vunpack.c.h.b16 %v2608
        %v2653 = vunpack.c.l.b16 %v2609
        %v2654 = vunpack.c.h.b16 %v2609
        %v2655 = vpack.c.b16 %v2625, %v2625
        %v2656 = vpack.c.b16 %v2626, %v2626
        %v2657 = vpack.c.b16 %v2627, %v2627
        %v2658 = vpack.c.b16 %v2628, %v2628
        %v2659 = vpack.c.b16 %v2629, %v2629
        %v2660 = vpack.c.b16 %v2630, %v2630
        %v2661 = vpack.c.b16 %v2631, %v2631
        %v2662 = vpack.c.b16 %v2632, %v2632
        %v2663 = vpack.c.b16 %v2633, %v2633
        %v2664 = vpack.c.b16 %v2634, %v2634
        %v2665 = vpack.c.b16 %v2635, %v2635
        %v2666 = vpack.c.b16 %v2636, %v2636
        %v2667 = vpack.c.b16 %v2637, %v2637
        %v2668 = vpack.c.b16 %v2638, %v2638
        %v2669 = vpack.c.b16 %v2639, %v2639
        %v2670 = vpack.c.b16 %v2640, %v2640
        %v2671 = vpack.c.b16 %v2641, %v2641
        %v2672 = vpack.c.b16 %v2642, %v2642
        %v2673 = vpack.c.b16 %v2643, %v2643
        %v2674 = vpack.c.b16 %v2644, %v2644
        %v2675 = vpack.c.b16 %v2645, %v2645
        %v2676 = vpack.c.b16 %v2646, %v2646
        %v2677 = vpack.c.b16 %v2647, %v2647
        %v2678 = vpack.c.b16 %v2648, %v2648
        %v2679 = vpack.c.b16 %v2649, %v2649
        %v2680 = vpack.c.b16 %v2650, %v2650
        %v2681 = vpack.c.b16 %v2651, %v2651
        %v2682 = vpack.c.b16 %v2652, %v2652
        %v2683 = vpack.c.b16 %v2653, %v2653
        %v2684 = vpack.c.b16 %v2654, %v2654
        %2715 = vst [vmem:[#allocation3] sm:$0xf] %v2655
        %2716 = vst [vmem:[#allocation3 + $0x4] sm:$0xf] %v2656
        %2717 = vst [vmem:[#allocation3 + $0x8] sm:$0xf] %v2657
        %2718 = vst [vmem:[#allocation3 + $0xc] sm:$0xf] %v2658
        %2719 = vst [vmem:[#allocation3 + $0x10] sm:$0xf] %v2659
        %2720 = vst [vmem:[#allocation3 + $0x14] sm:$0xf] %v2660
        %2721 = vst [vmem:[#allocation3 + $0x18] sm:$0xf] %v2661
        %2722 = vst [vmem:[#allocation3 + $0x1c] sm:$0xf] %v2662
        %2723 = vst [vmem:[#allocation3 + $0x20] sm:$0xf] %v2663
        %2724 = vst [vmem:[#allocation3 + $0x24] sm:$0xf] %v2664
        %2725 = vst [vmem:[#allocation3 + $0x28] sm:$0xf] %v2665
        %2726 = vst [vmem:[#allocation3 + $0x2c] sm:$0xf] %v2666
        %2727 = vst [vmem:[#allocation3 + $0x30] sm:$0xf] %v2667
        %2728 = vst [vmem:[#allocation3 + $0x34] sm:$0xf] %v2668
        %2729 = vst [vmem:[#allocation3 + $0x38] sm:$0xf] %v2669
        %2730 = vst [vmem:[#allocation3 + $0x3c] sm:$0xf] %v2670
        %2731 = vst [vmem:[#allocation3 + $0x40] sm:$0xf] %v2671
        %2732 = vst [vmem:[#allocation3 + $0x44] sm:$0xf] %v2672
        %2733 = vst [vmem:[#allocation3 + $0x48] sm:$0xf] %v2673
        %2734 = vst [vmem:[#allocation3 + $0x4c] sm:$0xf] %v2674
        %2735 = vst [vmem:[#allocation3 + $0x50] sm:$0xf] %v2675
        %2736 = vst [vmem:[#allocation3 + $0x54] sm:$0xf] %v2676
        %2737 = vst [vmem:[#allocation3 + $0x58] sm:$0xf] %v2677
        %2738 = vst [vmem:[#allocation3 + $0x5c] sm:$0xf] %v2678
        %2739 = vst [vmem:[#allocation3 + $0x60] sm:$0xf] %v2679
        %2740 = vst [vmem:[#allocation3 + $0x64] sm:$0xf] %v2680
        %2741 = vst [vmem:[#allocation3 + $0x68] sm:$0xf] %v2681
        %2742 = vst [vmem:[#allocation3 + $0x6c] sm:$0xf] %v2682
        %2743 = vst [vmem:[#allocation3 + $0x70] sm:$0xf] %v2683
        %2744 = vst [vmem:[#allocation3 + $0x74] sm:$0xf] %v2684
        %2745 = vst [vmem:[#allocation3 + $0x8] sm:$0xf] 0
        %2746 = vst [vmem:[#allocation3 + $0x14] sm:$0xf] 0
        %2747 = vst [vmem:[#allocation3 + $0x20] sm:$0xf] 0
        %2748 = vst [vmem:[#allocation3 + $0x2c] sm:$0xf] 0
        %2749 = vst [vmem:[#allocation3 + $0x38] sm:$0xf] 0
        %2750 = vst [vmem:[#allocation3 + $0x44] sm:$0xf] 0
        %2751 = vst [vmem:[#allocation3 + $0x50] sm:$0xf] 0
        %2752 = vst [vmem:[#allocation3 + $0x5c] sm:$0xf] 0
        %2753 = vst [vmem:[#allocation3 + $0x68] sm:$0xf] 0
        %2754 = vst [vmem:[#allocation3 + $0x74] sm:$0xf] 0
        %p2755 = scmp.eq.s32.totalorder %s26, 0
        // Predicated region
        $region57: #{tpu_custom_call.1} parent=43 // pred_check
          %p2756 = pneg %p2755
        $region58: #{tpu_custom_call.1} parent=43 // pred_check_branch
          %2758 = sbr.rel (%p2756) target = $region60
        $region59: #{tpu_custom_call.1} parent=43 // pred_region
          %2759 = vst [vmem:[#allocation3] sm:$0xf] 0
          %2760 = vst [vmem:[#allocation3 + $0x4] sm:$0xf] 0
          %2761 = vst [vmem:[#allocation3 + $0x8] sm:$0xf] 0
        $region60: #{tpu_custom_call.1} parent=43 // pred_fallthru
          _
        %p2762 = scmp.eq.s32.totalorder %s26, 1
        // Predicated region
        $region61: #{tpu_custom_call.1} parent=43 // pred_check
          %p2763 = pneg %p2762
        $region62: #{tpu_custom_call.1} parent=43 // pred_check_branch
          %2765 = sbr.rel (%p2763) target = $region64
        $region63: #{tpu_custom_call.1} parent=43 // pred_region
          %s2766 = scalar_lea.vmem [#allocation3], 108
          %2767 = vst [vmem:[%s2766] sm:$0xf] 0
          %2768 = vst [vmem:[%s2766 + $0x4] sm:$0xf] 0
          %2769 = vst [vmem:[%s2766 + $0x8] sm:$0xf] 0
        $region64: #{tpu_custom_call.1} parent=43 // pred_fallthru
          _
        %v2770 = vld [vmem:[#allocation3] sm:$0xf]
        %v2771 = vld [vmem:[#allocation3 + $0x4] sm:$0xf]
        %v2772 = vld [vmem:[#allocation3 + $0x8] sm:$0xf]
        %v2773 = vld [vmem:[#allocation3 + $0xc] sm:$0xf]
        %v2774 = vld [vmem:[#allocation3 + $0x10] sm:$0xf]
        %v2775 = vld [vmem:[#allocation3 + $0x14] sm:$0xf]
        %v2776 = vld [vmem:[#allocation3 + $0x18] sm:$0xf]
        %v2777 = vld [vmem:[#allocation3 + $0x1c] sm:$0xf]
        %v2778 = vld [vmem:[#allocation3 + $0x20] sm:$0xf]
        %v2779 = vld [vmem:[#allocation3 + $0x24] sm:$0xf]
        %v2780 = vld [vmem:[#allocation3 + $0x28] sm:$0xf]
        %v2781 = vld [vmem:[#allocation3 + $0x2c] sm:$0xf]
        %v2782 = vld [vmem:[#allocation3 + $0x30] sm:$0xf]
        %v2783 = vld [vmem:[#allocation3 + $0x34] sm:$0xf]
        %v2784 = vld [vmem:[#allocation3 + $0x38] sm:$0xf]
        %v2785 = vld [vmem:[#allocation3 + $0x3c] sm:$0xf]
        %v2786 = vld [vmem:[#allocation3 + $0x40] sm:$0xf]
        %v2787 = vld [vmem:[#allocation3 + $0x44] sm:$0xf]
        %v2788 = vld [vmem:[#allocation3 + $0x48] sm:$0xf]
        %v2789 = vld [vmem:[#allocation3 + $0x4c] sm:$0xf]
        %v2790 = vld [vmem:[#allocation3 + $0x50] sm:$0xf]
        %v2791 = vld [vmem:[#allocation3 + $0x54] sm:$0xf]
        %v2792 = vld [vmem:[#allocation3 + $0x58] sm:$0xf]
        %v2793 = vld [vmem:[#allocation3 + $0x5c] sm:$0xf]
        %v2794 = vld [vmem:[#allocation3 + $0x60] sm:$0xf]
        %v2795 = vld [vmem:[#allocation3 + $0x64] sm:$0xf]
        %v2796 = vld [vmem:[#allocation3 + $0x68] sm:$0xf]
        %v2797 = vld [vmem:[#allocation3 + $0x6c] sm:$0xf]
        %v2798 = vld [vmem:[#allocation3 + $0x70] sm:$0xf]
        %v2799 = vld [vmem:[#allocation3 + $0x74] sm:$0xf]
        %v2800 = vld [vmem:[#allocation4] sm:$0xff]
        %v2801 = vld [vmem:[#allocation4 + $0x8] sm:$0xf]
        %v2802 = vld [vmem:[#allocation4 + $0xc] sm:$0xff]
        %v2803 = vld [vmem:[#allocation4 + $0x14] sm:$0xf]
        %v2804 = vld [vmem:[#allocation4 + $0x18] sm:$0xff]
        %v2805 = vld [vmem:[#allocation4 + $0x20] sm:$0xf]
        %v2806 = vld [vmem:[#allocation4 + $0x24] sm:$0xff]
        %v2807 = vld [vmem:[#allocation4 + $0x2c] sm:$0xf]
        %v2808 = vld [vmem:[#allocation4 + $0x30] sm:$0xff]
        %v2809 = vld [vmem:[#allocation4 + $0x38] sm:$0xf]
        %v2810 = vld [vmem:[#allocation4 + $0x3c] sm:$0xff]
        %v2811 = vld [vmem:[#allocation4 + $0x44] sm:$0xf]
        %v2812 = vld [vmem:[#allocation4 + $0x48] sm:$0xff]
        %v2813 = vld [vmem:[#allocation4 + $0x50] sm:$0xf]
        %v2814 = vld [vmem:[#allocation4 + $0x54] sm:$0xff]
        %v2815 = vld [vmem:[#allocation4 + $0x5c] sm:$0xf]
        %v2816 = vld [vmem:[#allocation4 + $0x60] sm:$0xff]
        %v2817 = vld [vmem:[#allocation4 + $0x68] sm:$0xf]
        %v2818 = vld [vmem:[#allocation4 + $0x6c] sm:$0xff]
        %v2819 = vld [vmem:[#allocation4 + $0x74] sm:$0xf]
        %v2820 = vld [vmem:[#allocation4 + $0x78] sm:$0xff]
        %v2821 = vld [vmem:[#allocation4 + $0x80] sm:$0xf]
        %v2822 = vld [vmem:[#allocation4 + $0x84] sm:$0xff]
        %v2823 = vld [vmem:[#allocation4 + $0x8c] sm:$0xf]
        %v2824 = vld [vmem:[#allocation4 + $0x90] sm:$0xff]
        %v2825 = vld [vmem:[#allocation4 + $0x98] sm:$0xf]
        %v2826 = vld [vmem:[#allocation4 + $0x9c] sm:$0xff]
        %v2827 = vld [vmem:[#allocation4 + $0xa4] sm:$0xf]
        %v2828 = vld [vmem:[#allocation4 + $0xa8] sm:$0xff]
        %v2829 = vld [vmem:[#allocation4 + $0xb0] sm:$0xf]
        %v2830 = vld [vmem:[#allocation4 + $0xb4] sm:$0xff]
        %v2831 = vld [vmem:[#allocation4 + $0xbc] sm:$0xf]
        %s2832 = scalar_lea.vmem [#allocation4], 192
        %v2833 = vld [vmem:[%s2832] sm:$0xff]
        %v2834 = vld [vmem:[%s2832 + $0x8] sm:$0xf]
        %v2835 = vld [vmem:[%s2832 + $0xc] sm:$0xff]
        %v2836 = vld [vmem:[%s2832 + $0x14] sm:$0xf]
        %v2837 = vld [vmem:[%s2832 + $0x18] sm:$0xff]
        %v2838 = vld [vmem:[%s2832 + $0x20] sm:$0xf]
        %v2839 = vld [vmem:[%s2832 + $0x24] sm:$0xff]
        %v2840 = vld [vmem:[%s2832 + $0x2c] sm:$0xf]
        %v2841 = vld [vmem:[%s2832 + $0x30] sm:$0xff]
        %v2842 = vld [vmem:[%s2832 + $0x38] sm:$0xf]
        %v2843 = vld [vmem:[%s2832 + $0x3c] sm:$0xff]
        %v2844 = vld [vmem:[%s2832 + $0x44] sm:$0xf]
        %v2845 = vld [vmem:[%s2832 + $0x48] sm:$0xff]
        %v2846 = vld [vmem:[%s2832 + $0x50] sm:$0xf]
        %v2847 = vld [vmem:[%s2832 + $0x54] sm:$0xff]
        %v2848 = vld [vmem:[%s2832 + $0x5c] sm:$0xf]
        %v2849 = vld [vmem:[%s2832 + $0x60] sm:$0xff]
        %v2850 = vld [vmem:[%s2832 + $0x68] sm:$0xf]
        %v2851 = vld [vmem:[%s2832 + $0x6c] sm:$0xff]
        %v2852 = vld [vmem:[%s2832 + $0x74] sm:$0xf]
        %v2853 = vld [vmem:[%s2832 + $0x78] sm:$0xff]
        %v2854 = vld [vmem:[%s2832 + $0x80] sm:$0xf]
        %v2855 = vld [vmem:[%s2832 + $0x84] sm:$0xff]
        %v2856 = vld [vmem:[%s2832 + $0x8c] sm:$0xf]
        %v2857 = vld [vmem:[%s2832 + $0x90] sm:$0xff]
        %v2858 = vld [vmem:[%s2832 + $0x98] sm:$0xf]
        %v2859 = vld [vmem:[%s2832 + $0x9c] sm:$0xff]
        %v2860 = vld [vmem:[%s2832 + $0xa4] sm:$0xf]
        %v2861 = vld [vmem:[%s2832 + $0xa8] sm:$0xff]
        %v2862 = vld [vmem:[%s2832 + $0xb0] sm:$0xf]
        %v2863 = vld [vmem:[%s2832 + $0xb4] sm:$0xff]
        %v2864 = vld [vmem:[%s2832 + $0xbc] sm:$0xf]
        %v2889 = vunpack.c.l.b16 %v2773
        %v2890 = vunpack.c.l.b16 %v2774
        %v2891 = vunpack.c.l.b16 %v2775
        %v2892 = vunpack.c.l.b16 %v2776
        %v2893 = vunpack.c.l.b16 %v2777
        %v2894 = vunpack.c.l.b16 %v2778
        %v2895 = vunpack.c.l.b16 %v2779
        %v2896 = vunpack.c.l.b16 %v2780
        %v2897 = vunpack.c.l.b16 %v2781
        %v2898 = vunpack.c.l.b16 %v2782
        %v2899 = vunpack.c.l.b16 %v2783
        %v2900 = vunpack.c.l.b16 %v2784
        %v2901 = vunpack.c.l.b16 %v2785
        %v2902 = vunpack.c.l.b16 %v2786
        %v2903 = vunpack.c.l.b16 %v2787
        %v2904 = vunpack.c.l.b16 %v2788
        %v2905 = vunpack.c.l.b16 %v2789
        %v2906 = vunpack.c.l.b16 %v2790
        %v2907 = vunpack.c.l.b16 %v2791
        %v2908 = vunpack.c.l.b16 %v2792
        %v2909 = vunpack.c.l.b16 %v2793
        %v2910 = vunpack.c.l.b16 %v2794
        %v2911 = vunpack.c.l.b16 %v2795
        %v2912 = vunpack.c.l.b16 %v2796
        %v2913 = vpack.c.b16 %v2890, %v2889
        %v2914 = vpack.c.b16 %v2892, %v2891
        %v2915 = vpack.c.b16 %v2894, %v2893
        %v2916 = vpack.c.b16 %v2896, %v2895
        %v2917 = vpack.c.b16 %v2898, %v2897
        %v2918 = vpack.c.b16 %v2900, %v2899
        %v2919 = vpack.c.b16 %v2902, %v2901
        %v2920 = vpack.c.b16 %v2904, %v2903
        %v2921 = vpack.c.b16 %v2906, %v2905
        %v2922 = vpack.c.b16 %v2908, %v2907
        %v2923 = vpack.c.b16 %v2910, %v2909
        %v2924 = vpack.c.b16 %v2912, %v2911
        %v2969 = vunpack.c.l.b16 %v2833
        %v2970 = vunpack.c.h.b16 %v2833
        %v2971 = vunpack.c.l.b16 %v2834
        %v2972 = vunpack.c.l.b16 %v2835
        %v2973 = vunpack.c.h.b16 %v2835
        %v2974 = vunpack.c.l.b16 %v2836
        %v2975 = vunpack.c.l.b16 %v2837
        %v2976 = vunpack.c.h.b16 %v2837
        %v2977 = vunpack.c.l.b16 %v2838
        %v2978 = vunpack.c.l.b16 %v2839
        %v2979 = vunpack.c.h.b16 %v2839
        %v2980 = vunpack.c.l.b16 %v2840
        %v2981 = vunpack.c.l.b16 %v2841
        %v2982 = vunpack.c.h.b16 %v2841
        %v2983 = vunpack.c.l.b16 %v2842
        %v2984 = vunpack.c.l.b16 %v2843
        %v2985 = vunpack.c.h.b16 %v2843
        %v2986 = vunpack.c.l.b16 %v2844
        %v2987 = vunpack.c.l.b16 %v2845
        %v2988 = vunpack.c.h.b16 %v2845
        %v2989 = vunpack.c.l.b16 %v2846
        %v2990 = vunpack.c.l.b16 %v2847
        %v2991 = vunpack.c.h.b16 %v2847
        %v2992 = vunpack.c.l.b16 %v2848
        %v2993 = vunpack.c.l.b16 %v2849
        %v2994 = vunpack.c.h.b16 %v2849
        %v2995 = vunpack.c.l.b16 %v2850
        %v2996 = vunpack.c.l.b16 %v2851
        %v2997 = vunpack.c.h.b16 %v2851
        %v2998 = vunpack.c.l.b16 %v2852
        %v2999 = vunpack.c.l.b16 %v2853
        %v3000 = vunpack.c.h.b16 %v2853
        %v3001 = vunpack.c.l.b16 %v2854
        %v3002 = vunpack.c.l.b16 %v2855
        %v3003 = vunpack.c.h.b16 %v2855
        %v3004 = vunpack.c.l.b16 %v2856
        %v3005 = vunpack.c.l.b16 %v2857
        %v3006 = vunpack.c.h.b16 %v2857
        %v3007 = vunpack.c.l.b16 %v2858
        %v3008 = vunpack.c.l.b16 %v2859
        %v3009 = vunpack.c.h.b16 %v2859
        %v3010 = vunpack.c.l.b16 %v2860
        %v3011 = vunpack.c.l.b16 %v2861
        %v3012 = vunpack.c.h.b16 %v2861
        %v3013 = vunpack.c.l.b16 %v2862
        %v3014 = vunpack.c.l.b16 %v2863
        %v3015 = vunpack.c.h.b16 %v2863
        %v3016 = vunpack.c.l.b16 %v2864
        %v3017 = vpack.c.b16 %v2972, %v2969
        %v3018 = vpack.c.b16 %v2973, %v2970
        %v3019 = vpack.c.b16 %v2974, %v2971
        %v3020 = vpack.c.b16 %v2978, %v2975
        %v3021 = vpack.c.b16 %v2979, %v2976
        %v3022 = vpack.c.b16 %v2980, %v2977
        %v3023 = vpack.c.b16 %v2984, %v2981
        %v3024 = vpack.c.b16 %v2985, %v2982
        %v3025 = vpack.c.b16 %v2986, %v2983
        %v3026 = vpack.c.b16 %v2990, %v2987
        %v3027 = vpack.c.b16 %v2991, %v2988
        %v3028 = vpack.c.b16 %v2992, %v2989
        %v3029 = vpack.c.b16 %v2996, %v2993
        %v3030 = vpack.c.b16 %v2997, %v2994
        %v3031 = vpack.c.b16 %v2998, %v2995
        %v3032 = vpack.c.b16 %v3002, %v2999
        %v3033 = vpack.c.b16 %v3003, %v3000
        %v3034 = vpack.c.b16 %v3004, %v3001
        %v3035 = vpack.c.b16 %v3008, %v3005
        %v3036 = vpack.c.b16 %v3009, %v3006
        %v3037 = vpack.c.b16 %v3010, %v3007
        %v3038 = vpack.c.b16 %v3014, %v3011
        %v3039 = vpack.c.b16 %v3015, %v3012
        %v3040 = vpack.c.b16 %v3016, %v3013
        %3065 = vmatprep.subr.bf16.mxu0 %v3018
        %3066 = vmatpush1.bf16.msra.mxu0 %v3017
        %3067 = vmatprep.subr.bf16.mxu0 %v3021
        %3068 = vmatpush1.bf16.msra.mxu0 %v3020
        %3069 = vmatprep.subr.bf16.mxu0 %v3024
        %3070 = vmatpush1.bf16.msra.mxu0 %v3023
        %3071 = vmatprep.subr.bf16.mxu0 %v3027
        %3072 = vmatpush1.bf16.msra.mxu0 %v3026
        %3073 = vmatprep.subr.bf16.mxu0 %v3030
        %3074 = vmatpush1.bf16.msra.mxu0 %v3029
        %3075 = vmatprep.subr.bf16.mxu0 %v3033
        %3076 = vmatpush1.bf16.msra.mxu0 %v3032
        %3077 = vmatprep.subr.bf16.mxu0 %v3036
        %3078 = vmatpush1.bf16.msra.mxu0 %v3035
        %3079 = vmatprep.subr.bf16.mxu0 %v3039
        %3080 = vmatpush1.bf16.msra.mxu0 %v3038
        %3081 = vmatprep.subr.bf16.mxu0 0
        %3082 = vmatpush1.bf16.msra.mxu0 0
        %3083 = vmatprep.subr.bf16.mxu0 0
        %3084 = vmatpush1.bf16.msra.mxu0 0
        %3085 = vmatprep.subr.bf16.mxu0 0
        %3086 = vmatpush1.bf16.msra.mxu0 0
        %3087 = vmatprep.subr.bf16.mxu0 0
        %3088 = vmatpush1.bf16.msra.mxu0 0
        %3089 = vmatprep.subr.bf16.mxu0 0
        %3090 = vmatpush1.bf16.msra.mxu0 0
        %3091 = vmatprep.subr.bf16.mxu0 0
        %3092 = vmatpush1.bf16.msra.mxu0 0
        %3093 = vmatprep.subr.bf16.mxu0 0
        %3094 = vmatpush1.bf16.msra.mxu0 0
        %3095 = vmatprep.subr.bf16.mxu0 0
        %3096 = vmatpush1.bf16.msra.mxu0 0
        %3097 = vmatprep.mubr.bf16.mxu0 0
        %3098 = vmatmul.mubr.bf16.gmra.mrb[0].mxu0 %v2913
        %v3099 = vpop.f32.mrb[0].mxu0
        %v3100 = vadd.f32 0.0, %v3099
        %v3101 = vpop.f32.mrb[0].mxu0
        %v3102 = vadd.f32 0.0, %v3101
        %v3103 = vpop.f32.mrb[0].mxu0
        %v3104 = vadd.f32 0.0, %v3103
        %v3105 = vpop.f32.mrb[0].mxu0
        %v3106 = vadd.f32 0.0, %v3105
        %3107 = vmatprep.mubr.bf16.mxu0 0
        %3108 = vmatmul.mubr.bf16.gmra.mrb[0].mxu0 %v2914
        %v3109 = vpop.f32.mrb[0].mxu0
        %v3110 = vadd.f32 0.0, %v3109
        %v3111 = vpop.f32.mrb[0].mxu0
        %v3112 = vadd.f32 0.0, %v3111
        %v3113 = vpop.f32.mrb[0].mxu0
        %v3114 = vadd.f32 0.0, %v3113
        %v3115 = vpop.f32.mrb[0].mxu0
        %v3116 = vadd.f32 0.0, %v3115
        %3117 = vmatprep.mubr.bf16.mxu0 0
        %3118 = vmatmul.mubr.bf16.gmra.mrb[0].mxu0 %v2915
        %v3119 = vpop.f32.mrb[0].mxu0
        %v3120 = vadd.f32 0.0, %v3119
        %v3121 = vpop.f32.mrb[0].mxu0
        %v3122 = vadd.f32 0.0, %v3121
        %v3123 = vpop.f32.mrb[0].mxu0
        %v3124 = vadd.f32 0.0, %v3123
        %v3125 = vpop.f32.mrb[0].mxu0
        %v3126 = vadd.f32 0.0, %v3125
        %3127 = vmatprep.mubr.bf16.mxu0 0
        %3128 = vmatmul.mubr.bf16.gmra.mrb[0].mxu0 %v2916
        %v3129 = vpop.f32.mrb[0].mxu0
        %v3130 = vadd.f32 0.0, %v3129
        %v3131 = vpop.f32.mrb[0].mxu0
        %v3132 = vadd.f32 0.0, %v3131
        %v3133 = vpop.f32.mrb[0].mxu0
        %v3134 = vadd.f32 0.0, %v3133
        %v3135 = vpop.f32.mrb[0].mxu0
        %v3136 = vadd.f32 0.0, %v3135
        %3137 = vmatprep.mubr.bf16.mxu0 0
        %3138 = vmatmul.mubr.bf16.gmra.mrb[0].mxu0 %v2917
        %v3139 = vpop.f32.mrb[0].mxu0
        %v3140 = vadd.f32 0.0, %v3139
        %v3141 = vpop.f32.mrb[0].mxu0
        %v3142 = vadd.f32 0.0, %v3141
        %v3143 = vpop.f32.mrb[0].mxu0
        %v3144 = vadd.f32 0.0, %v3143
        %v3145 = vpop.f32.mrb[0].mxu0
        %v3146 = vadd.f32 0.0, %v3145
        %3147 = vmatprep.mubr.bf16.mxu0 0
        %3148 = vmatmul.mubr.bf16.gmra.mrb[0].mxu0 %v2918
        %v3149 = vpop.f32.mrb[0].mxu0
        %v3150 = vadd.f32 0.0, %v3149
        %v3151 = vpop.f32.mrb[0].mxu0
        %v3152 = vadd.f32 0.0, %v3151
        %v3153 = vpop.f32.mrb[0].mxu0
        %v3154 = vadd.f32 0.0, %v3153
        %v3155 = vpop.f32.mrb[0].mxu0
        %v3156 = vadd.f32 0.0, %v3155
        %3157 = vmatprep.mubr.bf16.mxu0 0
        %3158 = vmatmul.mubr.bf16.gmra.mrb[0].mxu0 %v2919
        %v3159 = vpop.f32.mrb[0].mxu0
        %v3160 = vadd.f32 0.0, %v3159
        %v3161 = vpop.f32.mrb[0].mxu0
        %v3162 = vadd.f32 0.0, %v3161
        %v3163 = vpop.f32.mrb[0].mxu0
        %v3164 = vadd.f32 0.0, %v3163
        %v3165 = vpop.f32.mrb[0].mxu0
        %v3166 = vadd.f32 0.0, %v3165
        %3167 = vmatprep.mubr.bf16.mxu0 0
        %3168 = vmatmul.mubr.bf16.gmra.mrb[0].mxu0 %v2920
        %v3169 = vpop.f32.mrb[0].mxu0
        %v3170 = vadd.f32 0.0, %v3169
        %v3171 = vpop.f32.mrb[0].mxu0
        %v3172 = vadd.f32 0.0, %v3171
        %v3173 = vpop.f32.mrb[0].mxu0
        %v3174 = vadd.f32 0.0, %v3173
        %v3175 = vpop.f32.mrb[0].mxu0
        %v3176 = vadd.f32 0.0, %v3175
        %3177 = vmatprep.mubr.bf16.mxu0 0
        %3178 = vmatmul.mubr.bf16.gmra.mrb[0].mxu0 %v2921
        %v3179 = vpop.f32.mrb[0].mxu0
        %v3180 = vadd.f32 0.0, %v3179
        %v3181 = vpop.f32.mrb[0].mxu0
        %v3182 = vadd.f32 0.0, %v3181
        %v3183 = vpop.f32.mrb[0].mxu0
        %v3184 = vadd.f32 0.0, %v3183
        %v3185 = vpop.f32.mrb[0].mxu0
        %v3186 = vadd.f32 0.0, %v3185
        %3187 = vmatprep.mubr.bf16.mxu0 0
        %3188 = vmatmul.mubr.bf16.gmra.mrb[0].mxu0 %v2922
        %v3189 = vpop.f32.mrb[0].mxu0
        %v3190 = vadd.f32 0.0, %v3189
        %v3191 = vpop.f32.mrb[0].mxu0
        %v3192 = vadd.f32 0.0, %v3191
        %v3193 = vpop.f32.mrb[0].mxu0
        %v3194 = vadd.f32 0.0, %v3193
        %v3195 = vpop.f32.mrb[0].mxu0
        %v3196 = vadd.f32 0.0, %v3195
        %3197 = vmatprep.mubr.bf16.mxu0 0
        %3198 = vmatmul.mubr.bf16.gmra.mrb[0].mxu0 %v2923
        %v3199 = vpop.f32.mrb[0].mxu0
        %v3200 = vadd.f32 0.0, %v3199
        %v3201 = vpop.f32.mrb[0].mxu0
        %v3202 = vadd.f32 0.0, %v3201
        %v3203 = vpop.f32.mrb[0].mxu0
        %v3204 = vadd.f32 0.0, %v3203
        %v3205 = vpop.f32.mrb[0].mxu0
        %v3206 = vadd.f32 0.0, %v3205
        %3207 = vmatprep.mubr.bf16.mxu0 0
        %3208 = vmatmul.mubr.bf16.gmra.mrb[0].mxu0 %v2924
        %v3209 = vpop.f32.mrb[0].mxu0
        %v3210 = vadd.f32 0.0, %v3209
        %v3211 = vpop.f32.mrb[0].mxu0
        %v3212 = vadd.f32 0.0, %v3211
        %v3213 = vpop.f32.mrb[0].mxu0
        %v3214 = vadd.f32 0.0, %v3213
        %v3215 = vpop.f32.mrb[0].mxu0
        %v3216 = vadd.f32 0.0, %v3215
        %3217 = vdwg.mxu0
        %3218 = vmatprep.subr.bf16.mxu0 0
        %3219 = vmatpush1.bf16.msra.mxu0 %v3019
        %3220 = vmatprep.subr.bf16.mxu0 0
        %3221 = vmatpush1.bf16.msra.mxu0 %v3022
        %3222 = vmatprep.subr.bf16.mxu0 0
        %3223 = vmatpush1.bf16.msra.mxu0 %v3025
        %3224 = vmatprep.subr.bf16.mxu0 0
        %3225 = vmatpush1.bf16.msra.mxu0 %v3028
        %3226 = vmatprep.subr.bf16.mxu0 0
        %3227 = vmatpush1.bf16.msra.mxu0 %v3031
        %3228 = vmatprep.subr.bf16.mxu0 0
        %3229 = vmatpush1.bf16.msra.mxu0 %v3034
        %3230 = vmatprep.subr.bf16.mxu0 0
        %3231 = vmatpush1.bf16.msra.mxu0 %v3037
        %3232 = vmatprep.subr.bf16.mxu0 0
        %3233 = vmatpush1.bf16.msra.mxu0 %v3040
        %3234 = vmatprep.subr.bf16.mxu0 0
        %3235 = vmatpush1.bf16.msra.mxu0 0
        %3236 = vmatprep.subr.bf16.mxu0 0
        %3237 = vmatpush1.bf16.msra.mxu0 0
        %3238 = vmatprep.subr.bf16.mxu0 0
        %3239 = vmatpush1.bf16.msra.mxu0 0
        %3240 = vmatprep.subr.bf16.mxu0 0
        %3241 = vmatpush1.bf16.msra.mxu0 0
        %3242 = vmatprep.subr.bf16.mxu0 0
        %3243 = vmatpush1.bf16.msra.mxu0 0
        %3244 = vmatprep.subr.bf16.mxu0 0
        %3245 = vmatpush1.bf16.msra.mxu0 0
        %3246 = vmatprep.subr.bf16.mxu0 0
        %3247 = vmatpush1.bf16.msra.mxu0 0
        %3248 = vmatprep.subr.bf16.mxu0 0
        %3249 = vmatpush1.bf16.msra.mxu0 0
        %3250 = vmatprep.mubr.bf16.mxu0 0
        %3251 = vmatmul.mubr.bf16.gmra.mrb[0].mxu0 %v2913
        %v3252 = vpop.f32.mrb[0].mxu0
        %v3253 = vadd.f32 0.0, %v3252
        %v3254 = vpop.f32.mrb[0].mxu0
        %v3255 = vpop.f32.mrb[0].mxu0
        %v3256 = vadd.f32 0.0, %v3255
        %v3257 = vpop.f32.mrb[0].mxu0
        %3258 = vmatprep.mubr.bf16.mxu0 0
        %3259 = vmatmul.mubr.bf16.gmra.mrb[0].mxu0 %v2914
        %v3260 = vpop.f32.mrb[0].mxu0
        %v3261 = vadd.f32 0.0, %v3260
        %v3262 = vpop.f32.mrb[0].mxu0
        %v3263 = vpop.f32.mrb[0].mxu0
        %v3264 = vadd.f32 0.0, %v3263
        %v3265 = vpop.f32.mrb[0].mxu0
        %3266 = vmatprep.mubr.bf16.mxu0 0
        %3267 = vmatmul.mubr.bf16.gmra.mrb[0].mxu0 %v2915
        %v3268 = vpop.f32.mrb[0].mxu0
        %v3269 = vadd.f32 0.0, %v3268
        %v3270 = vpop.f32.mrb[0].mxu0
        %v3271 = vpop.f32.mrb[0].mxu0
        %v3272 = vadd.f32 0.0, %v3271
        %v3273 = vpop.f32.mrb[0].mxu0
        %3274 = vmatprep.mubr.bf16.mxu0 0
        %3275 = vmatmul.mubr.bf16.gmra.mrb[0].mxu0 %v2916
        %v3276 = vpop.f32.mrb[0].mxu0
        %v3277 = vadd.f32 0.0, %v3276
        %v3278 = vpop.f32.mrb[0].mxu0
        %v3279 = vpop.f32.mrb[0].mxu0
        %v3280 = vadd.f32 0.0, %v3279
        %v3281 = vpop.f32.mrb[0].mxu0
        %3282 = vmatprep.mubr.bf16.mxu0 0
        %3283 = vmatmul.mubr.bf16.gmra.mrb[0].mxu0 %v2917
        %v3284 = vpop.f32.mrb[0].mxu0
        %v3285 = vadd.f32 0.0, %v3284
        %v3286 = vpop.f32.mrb[0].mxu0
        %v3287 = vpop.f32.mrb[0].mxu0
        %v3288 = vadd.f32 0.0, %v3287
        %v3289 = vpop.f32.mrb[0].mxu0
        %3290 = vmatprep.mubr.bf16.mxu0 0
        %3291 = vmatmul.mubr.bf16.gmra.mrb[0].mxu0 %v2918
        %v3292 = vpop.f32.mrb[0].mxu0
        %v3293 = vadd.f32 0.0, %v3292
        %v3294 = vpop.f32.mrb[0].mxu0
        %v3295 = vpop.f32.mrb[0].mxu0
        %v3296 = vadd.f32 0.0, %v3295
        %v3297 = vpop.f32.mrb[0].mxu0
        %3298 = vmatprep.mubr.bf16.mxu0 0
        %3299 = vmatmul.mubr.bf16.gmra.mrb[0].mxu0 %v2919
        %v3300 = vpop.f32.mrb[0].mxu0
        %v3301 = vadd.f32 0.0, %v3300
        %v3302 = vpop.f32.mrb[0].mxu0
        %v3303 = vpop.f32.mrb[0].mxu0
        %v3304 = vadd.f32 0.0, %v3303
        %v3305 = vpop.f32.mrb[0].mxu0
        %3306 = vmatprep.mubr.bf16.mxu0 0
        %3307 = vmatmul.mubr.bf16.gmra.mrb[0].mxu0 %v2920
        %v3308 = vpop.f32.mrb[0].mxu0
        %v3309 = vadd.f32 0.0, %v3308
        %v3310 = vpop.f32.mrb[0].mxu0
        %v3311 = vpop.f32.mrb[0].mxu0
        %v3312 = vadd.f32 0.0, %v3311
        %v3313 = vpop.f32.mrb[0].mxu0
        %3314 = vmatprep.mubr.bf16.mxu0 0
        %3315 = vmatmul.mubr.bf16.gmra.mrb[0].mxu0 %v2921
        %v3316 = vpop.f32.mrb[0].mxu0
        %v3317 = vadd.f32 0.0, %v3316
        %v3318 = vpop.f32.mrb[0].mxu0
        %v3319 = vpop.f32.mrb[0].mxu0
        %v3320 = vadd.f32 0.0, %v3319
        %v3321 = vpop.f32.mrb[0].mxu0
        %3322 = vmatprep.mubr.bf16.mxu0 0
        %3323 = vmatmul.mubr.bf16.gmra.mrb[0].mxu0 %v2922
        %v3324 = vpop.f32.mrb[0].mxu0
        %v3325 = vadd.f32 0.0, %v3324
        %v3326 = vpop.f32.mrb[0].mxu0
        %v3327 = vpop.f32.mrb[0].mxu0
        %v3328 = vadd.f32 0.0, %v3327
        %v3329 = vpop.f32.mrb[0].mxu0
        %3330 = vmatprep.mubr.bf16.mxu0 0
        %3331 = vmatmul.mubr.bf16.gmra.mrb[0].mxu0 %v2923
        %v3332 = vpop.f32.mrb[0].mxu0
        %v3333 = vadd.f32 0.0, %v3332
        %v3334 = vpop.f32.mrb[0].mxu0
        %v3335 = vpop.f32.mrb[0].mxu0
        %v3336 = vadd.f32 0.0, %v3335
        %v3337 = vpop.f32.mrb[0].mxu0
        %3338 = vmatprep.mubr.bf16.mxu0 0
        %3339 = vmatmul.mubr.bf16.gmra.mrb[0].mxu0 %v2924
        %v3340 = vpop.f32.mrb[0].mxu0
        %v3341 = vadd.f32 0.0, %v3340
        %v3342 = vpop.f32.mrb[0].mxu0
        %v3343 = vpop.f32.mrb[0].mxu0
        %v3344 = vadd.f32 0.0, %v3343
        %v3345 = vpop.f32.mrb[0].mxu0
        %3346 = vdwg.mxu0
        %v3350 = vunpack.c.l.b16 %v2770
        %v3351 = vunpack.c.l.b16 %v2771
        %v3352 = vunpack.c.l.b16 %v2772
        %v3353 = vpack.c.b16 %v3351, %v3350
        %v3354 = vpack.c.b16 %v2889, %v3352
        %v3355 = vpack.c.b16 %v2891, %v2890
        %v3356 = vpack.c.b16 %v2893, %v2892
        %v3357 = vpack.c.b16 %v2895, %v2894
        %v3358 = vpack.c.b16 %v2897, %v2896
        %v3359 = vpack.c.b16 %v2899, %v2898
        %v3360 = vpack.c.b16 %v2901, %v2900
        %v3361 = vpack.c.b16 %v2903, %v2902
        %v3362 = vpack.c.b16 %v2905, %v2904
        %v3363 = vpack.c.b16 %v2907, %v2906
        %v3364 = vpack.c.b16 %v2909, %v2908
        %v3409 = vunpack.c.l.b16 %v2800
        %v3410 = vunpack.c.h.b16 %v2800
        %v3411 = vunpack.c.l.b16 %v2801
        %v3412 = vunpack.c.l.b16 %v2802
        %v3413 = vunpack.c.h.b16 %v2802
        %v3414 = vunpack.c.l.b16 %v2803
        %v3415 = vunpack.c.l.b16 %v2804
        %v3416 = vunpack.c.h.b16 %v2804
        %v3417 = vunpack.c.l.b16 %v2805
        %v3418 = vunpack.c.l.b16 %v2806
        %v3419 = vunpack.c.h.b16 %v2806
        %v3420 = vunpack.c.l.b16 %v2807
        %v3421 = vunpack.c.l.b16 %v2808
        %v3422 = vunpack.c.h.b16 %v2808
        %v3423 = vunpack.c.l.b16 %v2809
        %v3424 = vunpack.c.l.b16 %v2810
        %v3425 = vunpack.c.h.b16 %v2810
        %v3426 = vunpack.c.l.b16 %v2811
        %v3427 = vunpack.c.l.b16 %v2812
        %v3428 = vunpack.c.h.b16 %v2812
        %v3429 = vunpack.c.l.b16 %v2813
        %v3430 = vunpack.c.l.b16 %v2814
        %v3431 = vunpack.c.h.b16 %v2814
        %v3432 = vunpack.c.l.b16 %v2815
        %v3433 = vunpack.c.l.b16 %v2816
        %v3434 = vunpack.c.h.b16 %v2816
        %v3435 = vunpack.c.l.b16 %v2817
        %v3436 = vunpack.c.l.b16 %v2818
        %v3437 = vunpack.c.h.b16 %v2818
        %v3438 = vunpack.c.l.b16 %v2819
        %v3439 = vunpack.c.l.b16 %v2820
        %v3440 = vunpack.c.h.b16 %v2820
        %v3441 = vunpack.c.l.b16 %v2821
        %v3442 = vunpack.c.l.b16 %v2822
        %v3443 = vunpack.c.h.b16 %v2822
        %v3444 = vunpack.c.l.b16 %v2823
        %v3445 = vunpack.c.l.b16 %v2824
        %v3446 = vunpack.c.h.b16 %v2824
        %v3447 = vunpack.c.l.b16 %v2825
        %v3448 = vunpack.c.l.b16 %v2826
        %v3449 = vunpack.c.h.b16 %v2826
        %v3450 = vunpack.c.l.b16 %v2827
        %v3451 = vunpack.c.l.b16 %v2828
        %v3452 = vunpack.c.h.b16 %v2828
        %v3453 = vunpack.c.l.b16 %v2829
        %v3454 = vunpack.c.l.b16 %v2830
        %v3455 = vunpack.c.h.b16 %v2830
        %v3456 = vunpack.c.l.b16 %v2831
        %v3457 = vpack.c.b16 %v3412, %v3409
        %v3458 = vpack.c.b16 %v3413, %v3410
        %v3459 = vpack.c.b16 %v3414, %v3411
        %v3460 = vpack.c.b16 %v3418, %v3415
        %v3461 = vpack.c.b16 %v3419, %v3416
        %v3462 = vpack.c.b16 %v3420, %v3417
        %v3463 = vpack.c.b16 %v3424, %v3421
        %v3464 = vpack.c.b16 %v3425, %v3422
        %v3465 = vpack.c.b16 %v3426, %v3423
        %v3466 = vpack.c.b16 %v3430, %v3427
        %v3467 = vpack.c.b16 %v3431, %v3428
        %v3468 = vpack.c.b16 %v3432, %v3429
        %v3469 = vpack.c.b16 %v3436, %v3433
        %v3470 = vpack.c.b16 %v3437, %v3434
        %v3471 = vpack.c.b16 %v3438, %v3435
        %v3472 = vpack.c.b16 %v3442, %v3439
        %v3473 = vpack.c.b16 %v3443, %v3440
        %v3474 = vpack.c.b16 %v3444, %v3441
        %v3475 = vpack.c.b16 %v3448, %v3445
        %v3476 = vpack.c.b16 %v3449, %v3446
        %v3477 = vpack.c.b16 %v3450, %v3447
        %v3478 = vpack.c.b16 %v3454, %v3451
        %v3479 = vpack.c.b16 %v3455, %v3452
        %v3480 = vpack.c.b16 %v3456, %v3453
        %3505 = vmatprep.subr.bf16.mxu0 %v3458
        %3506 = vmatpush1.bf16.msra.mxu0 %v3457
        %3507 = vmatprep.subr.bf16.mxu0 %v3461
        %3508 = vmatpush1.bf16.msra.mxu0 %v3460
        %3509 = vmatprep.subr.bf16.mxu0 %v3464
        %3510 = vmatpush1.bf16.msra.mxu0 %v3463
        %3511 = vmatprep.subr.bf16.mxu0 %v3467
        %3512 = vmatpush1.bf16.msra.mxu0 %v3466
        %3513 = vmatprep.subr.bf16.mxu0 %v3470
        %3514 = vmatpush1.bf16.msra.mxu0 %v3469
        %3515 = vmatprep.subr.bf16.mxu0 %v3473
        %3516 = vmatpush1.bf16.msra.mxu0 %v3472
        %3517 = vmatprep.subr.bf16.mxu0 %v3476
        %3518 = vmatpush1.bf16.msra.mxu0 %v3475
        %3519 = vmatprep.subr.bf16.mxu0 %v3479
        %3520 = vmatpush1.bf16.msra.mxu0 %v3478
        %3521 = vmatprep.subr.bf16.mxu0 0
        %3522 = vmatpush1.bf16.msra.mxu0 0
        %3523 = vmatprep.subr.bf16.mxu0 0
        %3524 = vmatpush1.bf16.msra.mxu0 0
        %3525 = vmatprep.subr.bf16.mxu0 0
        %3526 = vmatpush1.bf16.msra.mxu0 0
        %3527 = vmatprep.subr.bf16.mxu0 0
        %3528 = vmatpush1.bf16.msra.mxu0 0
        %3529 = vmatprep.subr.bf16.mxu0 0
        %3530 = vmatpush1.bf16.msra.mxu0 0
        %3531 = vmatprep.subr.bf16.mxu0 0
        %3532 = vmatpush1.bf16.msra.mxu0 0
        %3533 = vmatprep.subr.bf16.mxu0 0
        %3534 = vmatpush1.bf16.msra.mxu0 0
        %3535 = vmatprep.subr.bf16.mxu0 0
        %3536 = vmatpush1.bf16.msra.mxu0 0
        %3537 = vmatprep.mubr.bf16.mxu0 0
        %3538 = vmatmul.mubr.bf16.gmra.mrb[0].mxu0 %v3353
        %v3539 = vpop.f32.mrb[0].mxu0
        %v3540 = vadd.f32 %v3100, %v3539
        %v3541 = vpop.f32.mrb[0].mxu0
        %v3542 = vadd.f32 %v3102, %v3541
        %v3543 = vpop.f32.mrb[0].mxu0
        %v3544 = vadd.f32 %v3104, %v3543
        %v3545 = vpop.f32.mrb[0].mxu0
        %v3546 = vadd.f32 %v3106, %v3545
        %3547 = vmatprep.mubr.bf16.mxu0 0
        %3548 = vmatmul.mubr.bf16.gmra.mrb[0].mxu0 %v3354
        %v3549 = vpop.f32.mrb[0].mxu0
        %v3550 = vadd.f32 %v3110, %v3549
        %v3551 = vpop.f32.mrb[0].mxu0
        %v3552 = vadd.f32 %v3112, %v3551
        %v3553 = vpop.f32.mrb[0].mxu0
        %v3554 = vadd.f32 %v3114, %v3553
        %v3555 = vpop.f32.mrb[0].mxu0
        %v3556 = vadd.f32 %v3116, %v3555
        %3557 = vmatprep.mubr.bf16.mxu0 0
        %3558 = vmatmul.mubr.bf16.gmra.mrb[0].mxu0 %v3355
        %v3559 = vpop.f32.mrb[0].mxu0
        %v3560 = vadd.f32 %v3120, %v3559
        %v3561 = vpop.f32.mrb[0].mxu0
        %v3562 = vadd.f32 %v3122, %v3561
        %v3563 = vpop.f32.mrb[0].mxu0
        %v3564 = vadd.f32 %v3124, %v3563
        %v3565 = vpop.f32.mrb[0].mxu0
        %v3566 = vadd.f32 %v3126, %v3565
        %3567 = vmatprep.mubr.bf16.mxu0 0
        %3568 = vmatmul.mubr.bf16.gmra.mrb[0].mxu0 %v3356
        %v3569 = vpop.f32.mrb[0].mxu0
        %v3570 = vadd.f32 %v3130, %v3569
        %v3571 = vpop.f32.mrb[0].mxu0
        %v3572 = vadd.f32 %v3132, %v3571
        %v3573 = vpop.f32.mrb[0].mxu0
        %v3574 = vadd.f32 %v3134, %v3573
        %v3575 = vpop.f32.mrb[0].mxu0
        %v3576 = vadd.f32 %v3136, %v3575
        %3577 = vmatprep.mubr.bf16.mxu0 0
        %3578 = vmatmul.mubr.bf16.gmra.mrb[0].mxu0 %v3357
        %v3579 = vpop.f32.mrb[0].mxu0
        %v3580 = vadd.f32 %v3140, %v3579
        %v3581 = vpop.f32.mrb[0].mxu0
        %v3582 = vadd.f32 %v3142, %v3581
        %v3583 = vpop.f32.mrb[0].mxu0
        %v3584 = vadd.f32 %v3144, %v3583
        %v3585 = vpop.f32.mrb[0].mxu0
        %v3586 = vadd.f32 %v3146, %v3585
        %3587 = vmatprep.mubr.bf16.mxu0 0
        %3588 = vmatmul.mubr.bf16.gmra.mrb[0].mxu0 %v3358
        %v3589 = vpop.f32.mrb[0].mxu0
        %v3590 = vadd.f32 %v3150, %v3589
        %v3591 = vpop.f32.mrb[0].mxu0
        %v3592 = vadd.f32 %v3152, %v3591
        %v3593 = vpop.f32.mrb[0].mxu0
        %v3594 = vadd.f32 %v3154, %v3593
        %v3595 = vpop.f32.mrb[0].mxu0
        %v3596 = vadd.f32 %v3156, %v3595
        %3597 = vmatprep.mubr.bf16.mxu0 0
        %3598 = vmatmul.mubr.bf16.gmra.mrb[0].mxu0 %v3359
        %v3599 = vpop.f32.mrb[0].mxu0
        %v3600 = vadd.f32 %v3160, %v3599
        %v3601 = vpop.f32.mrb[0].mxu0
        %v3602 = vadd.f32 %v3162, %v3601
        %v3603 = vpop.f32.mrb[0].mxu0
        %v3604 = vadd.f32 %v3164, %v3603
        %v3605 = vpop.f32.mrb[0].mxu0
        %v3606 = vadd.f32 %v3166, %v3605
        %3607 = vmatprep.mubr.bf16.mxu0 0
        %3608 = vmatmul.mubr.bf16.gmra.mrb[0].mxu0 %v3360
        %v3609 = vpop.f32.mrb[0].mxu0
        %v3610 = vadd.f32 %v3170, %v3609
        %v3611 = vpop.f32.mrb[0].mxu0
        %v3612 = vadd.f32 %v3172, %v3611
        %v3613 = vpop.f32.mrb[0].mxu0
        %v3614 = vadd.f32 %v3174, %v3613
        %v3615 = vpop.f32.mrb[0].mxu0
        %v3616 = vadd.f32 %v3176, %v3615
        %3617 = vmatprep.mubr.bf16.mxu0 0
        %3618 = vmatmul.mubr.bf16.gmra.mrb[0].mxu0 %v3361
        %v3619 = vpop.f32.mrb[0].mxu0
        %v3620 = vadd.f32 %v3180, %v3619
        %v3621 = vpop.f32.mrb[0].mxu0
        %v3622 = vadd.f32 %v3182, %v3621
        %v3623 = vpop.f32.mrb[0].mxu0
        %v3624 = vadd.f32 %v3184, %v3623
        %v3625 = vpop.f32.mrb[0].mxu0
        %v3626 = vadd.f32 %v3186, %v3625
        %3627 = vmatprep.mubr.bf16.mxu0 0
        %3628 = vmatmul.mubr.bf16.gmra.mrb[0].mxu0 %v3362
        %v3629 = vpop.f32.mrb[0].mxu0
        %v3630 = vadd.f32 %v3190, %v3629
        %v3631 = vpop.f32.mrb[0].mxu0
        %v3632 = vadd.f32 %v3192, %v3631
        %v3633 = vpop.f32.mrb[0].mxu0
        %v3634 = vadd.f32 %v3194, %v3633
        %v3635 = vpop.f32.mrb[0].mxu0
        %v3636 = vadd.f32 %v3196, %v3635
        %3637 = vmatprep.mubr.bf16.mxu0 0
        %3638 = vmatmul.mubr.bf16.gmra.mrb[0].mxu0 %v3363
        %v3639 = vpop.f32.mrb[0].mxu0
        %v3640 = vadd.f32 %v3200, %v3639
        %v3641 = vpop.f32.mrb[0].mxu0
        %v3642 = vadd.f32 %v3202, %v3641
        %v3643 = vpop.f32.mrb[0].mxu0
        %v3644 = vadd.f32 %v3204, %v3643
        %v3645 = vpop.f32.mrb[0].mxu0
        %v3646 = vadd.f32 %v3206, %v3645
        %3647 = vmatprep.mubr.bf16.mxu0 0
        %3648 = vmatmul.mubr.bf16.gmra.mrb[0].mxu0 %v3364
        %v3649 = vpop.f32.mrb[0].mxu0
        %v3650 = vadd.f32 %v3210, %v3649
        %v3651 = vpop.f32.mrb[0].mxu0
        %v3652 = vadd.f32 %v3212, %v3651
        %v3653 = vpop.f32.mrb[0].mxu0
        %v3654 = vadd.f32 %v3214, %v3653
        %v3655 = vpop.f32.mrb[0].mxu0
        %v3656 = vadd.f32 %v3216, %v3655
        %3657 = vdwg.mxu0
        %3658 = vmatprep.subr.bf16.mxu0 0
        %3659 = vmatpush1.bf16.msra.mxu0 %v3459
        %3660 = vmatprep.subr.bf16.mxu0 0
        %3661 = vmatpush1.bf16.msra.mxu0 %v3462
        %3662 = vmatprep.subr.bf16.mxu0 0
        %3663 = vmatpush1.bf16.msra.mxu0 %v3465
        %3664 = vmatprep.subr.bf16.mxu0 0
        %3665 = vmatpush1.bf16.msra.mxu0 %v3468
        %3666 = vmatprep.subr.bf16.mxu0 0
        %3667 = vmatpush1.bf16.msra.mxu0 %v3471
        %3668 = vmatprep.subr.bf16.mxu0 0
        %3669 = vmatpush1.bf16.msra.mxu0 %v3474
        %3670 = vmatprep.subr.bf16.mxu0 0
        %3671 = vmatpush1.bf16.msra.mxu0 %v3477
        %3672 = vmatprep.subr.bf16.mxu0 0
        %3673 = vmatpush1.bf16.msra.mxu0 %v3480
        %3674 = vmatprep.subr.bf16.mxu0 0
        %3675 = vmatpush1.bf16.msra.mxu0 0
        %3676 = vmatprep.subr.bf16.mxu0 0
        %3677 = vmatpush1.bf16.msra.mxu0 0
        %3678 = vmatprep.subr.bf16.mxu0 0
        %3679 = vmatpush1.bf16.msra.mxu0 0
        %3680 = vmatprep.subr.bf16.mxu0 0
        %3681 = vmatpush1.bf16.msra.mxu0 0
        %3682 = vmatprep.subr.bf16.mxu0 0
        %3683 = vmatpush1.bf16.msra.mxu0 0
        %3684 = vmatprep.subr.bf16.mxu0 0
        %3685 = vmatpush1.bf16.msra.mxu0 0
        %3686 = vmatprep.subr.bf16.mxu0 0
        %3687 = vmatpush1.bf16.msra.mxu0 0
        %3688 = vmatprep.subr.bf16.mxu0 0
        %3689 = vmatpush1.bf16.msra.mxu0 0
        %3690 = vmatprep.mubr.bf16.mxu0 0
        %3691 = vmatmul.mubr.bf16.gmra.mrb[0].mxu0 %v3353
        %v3692 = vpop.f32.mrb[0].mxu0
        %v3693 = vadd.f32 %v3253, %v3692
        %v3694 = vpop.f32.mrb[0].mxu0
        %v3695 = vpop.f32.mrb[0].mxu0
        %v3696 = vadd.f32 %v3256, %v3695
        %v3697 = vpop.f32.mrb[0].mxu0
        %3698 = vmatprep.mubr.bf16.mxu0 0
        %3699 = vmatmul.mubr.bf16.gmra.mrb[0].mxu0 %v3354
        %v3700 = vpop.f32.mrb[0].mxu0
        %v3701 = vadd.f32 %v3261, %v3700
        %v3702 = vpop.f32.mrb[0].mxu0
        %v3703 = vpop.f32.mrb[0].mxu0
        %v3704 = vadd.f32 %v3264, %v3703
        %v3705 = vpop.f32.mrb[0].mxu0
        %3706 = vmatprep.mubr.bf16.mxu0 0
        %3707 = vmatmul.mubr.bf16.gmra.mrb[0].mxu0 %v3355
        %v3708 = vpop.f32.mrb[0].mxu0
        %v3709 = vadd.f32 %v3269, %v3708
        %v3710 = vpop.f32.mrb[0].mxu0
        %v3711 = vpop.f32.mrb[0].mxu0
        %v3712 = vadd.f32 %v3272, %v3711
        %v3713 = vpop.f32.mrb[0].mxu0
        %3714 = vmatprep.mubr.bf16.mxu0 0
        %3715 = vmatmul.mubr.bf16.gmra.mrb[0].mxu0 %v3356
        %v3716 = vpop.f32.mrb[0].mxu0
        %v3717 = vadd.f32 %v3277, %v3716
        %v3718 = vpop.f32.mrb[0].mxu0
        %v3719 = vpop.f32.mrb[0].mxu0
        %v3720 = vadd.f32 %v3280, %v3719
        %v3721 = vpop.f32.mrb[0].mxu0
        %3722 = vmatprep.mubr.bf16.mxu0 0
        %3723 = vmatmul.mubr.bf16.gmra.mrb[0].mxu0 %v3357
        %v3724 = vpop.f32.mrb[0].mxu0
        %v3725 = vadd.f32 %v3285, %v3724
        %v3726 = vpop.f32.mrb[0].mxu0
        %v3727 = vpop.f32.mrb[0].mxu0
        %v3728 = vadd.f32 %v3288, %v3727
        %v3729 = vpop.f32.mrb[0].mxu0
        %3730 = vmatprep.mubr.bf16.mxu0 0
        %3731 = vmatmul.mubr.bf16.gmra.mrb[0].mxu0 %v3358
        %v3732 = vpop.f32.mrb[0].mxu0
        %v3733 = vadd.f32 %v3293, %v3732
        %v3734 = vpop.f32.mrb[0].mxu0
        %v3735 = vpop.f32.mrb[0].mxu0
        %v3736 = vadd.f32 %v3296, %v3735
        %v3737 = vpop.f32.mrb[0].mxu0
        %3738 = vmatprep.mubr.bf16.mxu0 0
        %3739 = vmatmul.mubr.bf16.gmra.mrb[0].mxu0 %v3359
        %v3740 = vpop.f32.mrb[0].mxu0
        %v3741 = vadd.f32 %v3301, %v3740
        %v3742 = vpop.f32.mrb[0].mxu0
        %v3743 = vpop.f32.mrb[0].mxu0
        %v3744 = vadd.f32 %v3304, %v3743
        %v3745 = vpop.f32.mrb[0].mxu0
        %3746 = vmatprep.mubr.bf16.mxu0 0
        %3747 = vmatmul.mubr.bf16.gmra.mrb[0].mxu0 %v3360
        %v3748 = vpop.f32.mrb[0].mxu0
        %v3749 = vadd.f32 %v3309, %v3748
        %v3750 = vpop.f32.mrb[0].mxu0
        %v3751 = vpop.f32.mrb[0].mxu0
        %v3752 = vadd.f32 %v3312, %v3751
        %v3753 = vpop.f32.mrb[0].mxu0
        %3754 = vmatprep.mubr.bf16.mxu0 0
        %3755 = vmatmul.mubr.bf16.gmra.mrb[0].mxu0 %v3361
        %v3756 = vpop.f32.mrb[0].mxu0
        %v3757 = vadd.f32 %v3317, %v3756
        %v3758 = vpop.f32.mrb[0].mxu0
        %v3759 = vpop.f32.mrb[0].mxu0
        %v3760 = vadd.f32 %v3320, %v3759
        %v3761 = vpop.f32.mrb[0].mxu0
        %3762 = vmatprep.mubr.bf16.mxu0 0
        %3763 = vmatmul.mubr.bf16.gmra.mrb[0].mxu0 %v3362
        %v3764 = vpop.f32.mrb[0].mxu0
        %v3765 = vadd.f32 %v3325, %v3764
        %v3766 = vpop.f32.mrb[0].mxu0
        %v3767 = vpop.f32.mrb[0].mxu0
        %v3768 = vadd.f32 %v3328, %v3767
        %v3769 = vpop.f32.mrb[0].mxu0
        %3770 = vmatprep.mubr.bf16.mxu0 0
        %3771 = vmatmul.mubr.bf16.gmra.mrb[0].mxu0 %v3363
        %v3772 = vpop.f32.mrb[0].mxu0
        %v3773 = vadd.f32 %v3333, %v3772
        %v3774 = vpop.f32.mrb[0].mxu0
        %v3775 = vpop.f32.mrb[0].mxu0
        %v3776 = vadd.f32 %v3336, %v3775
        %v3777 = vpop.f32.mrb[0].mxu0
        %3778 = vmatprep.mubr.bf16.mxu0 0
        %3779 = vmatmul.mubr.bf16.gmra.mrb[0].mxu0 %v3364
        %v3780 = vpop.f32.mrb[0].mxu0
        %v3781 = vadd.f32 %v3341, %v3780
        %v3782 = vpop.f32.mrb[0].mxu0
        %v3783 = vpop.f32.mrb[0].mxu0
        %v3784 = vadd.f32 %v3344, %v3783
        %v3785 = vpop.f32.mrb[0].mxu0
        %3786 = vdwg.mxu0
        %s3787 = scalar_lea.vmem [#allocation4], 384
        %v3788 = vld [vmem:[%s3787] sm:$0xff]
        %v3789 = vld [vmem:[%s3787 + $0x8] sm:$0xf]
        %v3790 = vld [vmem:[%s3787 + $0xc] sm:$0xff]
        %v3791 = vld [vmem:[%s3787 + $0x14] sm:$0xf]
        %v3792 = vld [vmem:[%s3787 + $0x18] sm:$0xff]
        %v3793 = vld [vmem:[%s3787 + $0x20] sm:$0xf]
        %v3794 = vld [vmem:[%s3787 + $0x24] sm:$0xff]
        %v3795 = vld [vmem:[%s3787 + $0x2c] sm:$0xf]
        %v3796 = vld [vmem:[%s3787 + $0x30] sm:$0xff]
        %v3797 = vld [vmem:[%s3787 + $0x38] sm:$0xf]
        %v3798 = vld [vmem:[%s3787 + $0x3c] sm:$0xff]
        %v3799 = vld [vmem:[%s3787 + $0x44] sm:$0xf]
        %v3800 = vld [vmem:[%s3787 + $0x48] sm:$0xff]
        %v3801 = vld [vmem:[%s3787 + $0x50] sm:$0xf]
        %v3802 = vld [vmem:[%s3787 + $0x54] sm:$0xff]
        %v3803 = vld [vmem:[%s3787 + $0x5c] sm:$0xf]
        %v3804 = vld [vmem:[%s3787 + $0x60] sm:$0xff]
        %v3805 = vld [vmem:[%s3787 + $0x68] sm:$0xf]
        %v3806 = vld [vmem:[%s3787 + $0x6c] sm:$0xff]
        %v3807 = vld [vmem:[%s3787 + $0x74] sm:$0xf]
        %v3808 = vld [vmem:[%s3787 + $0x78] sm:$0xff]
        %v3809 = vld [vmem:[%s3787 + $0x80] sm:$0xf]
        %v3810 = vld [vmem:[%s3787 + $0x84] sm:$0xff]
        %v3811 = vld [vmem:[%s3787 + $0x8c] sm:$0xf]
        %v3812 = vld [vmem:[%s3787 + $0x90] sm:$0xff]
        %v3813 = vld [vmem:[%s3787 + $0x98] sm:$0xf]
        %v3814 = vld [vmem:[%s3787 + $0x9c] sm:$0xff]
        %v3815 = vld [vmem:[%s3787 + $0xa4] sm:$0xf]
        %v3816 = vld [vmem:[%s3787 + $0xa8] sm:$0xff]
        %v3817 = vld [vmem:[%s3787 + $0xb0] sm:$0xf]
        %v3818 = vld [vmem:[%s3787 + $0xb4] sm:$0xff]
        %v3819 = vld [vmem:[%s3787 + $0xbc] sm:$0xf]
        %v3823 = vunpack.c.l.b16 %v2797
        %v3824 = vunpack.c.l.b16 %v2798
        %v3825 = vunpack.c.l.b16 %v2799
        %v3826 = vpack.c.b16 %v2911, %v2910
        %v3827 = vpack.c.b16 %v3823, %v2912
        %v3828 = vpack.c.b16 %v3825, %v3824
        %v3864 = vunpack.c.l.b16 %v3788
        %v3865 = vunpack.c.h.b16 %v3788
        %v3866 = vunpack.c.l.b16 %v3789
        %v3867 = vunpack.c.l.b16 %v3790
        %v3868 = vunpack.c.h.b16 %v3790
        %v3869 = vunpack.c.l.b16 %v3791
        %v3870 = vunpack.c.l.b16 %v3792
        %v3871 = vunpack.c.h.b16 %v3792
        %v3872 = vunpack.c.l.b16 %v3793
        %v3873 = vunpack.c.l.b16 %v3794
        %v3874 = vunpack.c.h.b16 %v3794
        %v3875 = vunpack.c.l.b16 %v3795
        %v3876 = vunpack.c.l.b16 %v3796
        %v3877 = vunpack.c.h.b16 %v3796
        %v3878 = vunpack.c.l.b16 %v3797
        %v3879 = vunpack.c.l.b16 %v3798
        %v3880 = vunpack.c.h.b16 %v3798
        %v3881 = vunpack.c.l.b16 %v3799
        %v3882 = vunpack.c.l.b16 %v3800
        %v3883 = vunpack.c.h.b16 %v3800
        %v3884 = vunpack.c.l.b16 %v3801
        %v3885 = vunpack.c.l.b16 %v3802
        %v3886 = vunpack.c.h.b16 %v3802
        %v3887 = vunpack.c.l.b16 %v3803
        %v3888 = vunpack.c.l.b16 %v3804
        %v3889 = vunpack.c.h.b16 %v3804
        %v3890 = vunpack.c.l.b16 %v3805
        %v3891 = vunpack.c.l.b16 %v3806
        %v3892 = vunpack.c.h.b16 %v3806
        %v3893 = vunpack.c.l.b16 %v3807
        %v3894 = vunpack.c.l.b16 %v3808
        %v3895 = vunpack.c.h.b16 %v3808
        %v3896 = vunpack.c.l.b16 %v3809
        %v3897 = vunpack.c.l.b16 %v3810
        %v3898 = vunpack.c.h.b16 %v3810
        %v3899 = vunpack.c.l.b16 %v3811
        %v3900 = vunpack.c.l.b16 %v3812
        %v3901 = vunpack.c.h.b16 %v3812
        %v3902 = vunpack.c.l.b16 %v3813
        %v3903 = vunpack.c.l.b16 %v3814
        %v3904 = vunpack.c.h.b16 %v3814
        %v3905 = vunpack.c.l.b16 %v3815
        %v3906 = vunpack.c.l.b16 %v3816
        %v3907 = vunpack.c.h.b16 %v3816
        %v3908 = vunpack.c.l.b16 %v3817
        %v3909 = vunpack.c.l.b16 %v3818
        %v3910 = vunpack.c.h.b16 %v3818
        %v3911 = vunpack.c.l.b16 %v3819
        %v3912 = vpack.c.b16 %v3867, %v3864
        %v3913 = vpack.c.b16 %v3868, %v3865
        %v3914 = vpack.c.b16 %v3869, %v3866
        %v3915 = vpack.c.b16 %v3873, %v3870
        %v3916 = vpack.c.b16 %v3874, %v3871
        %v3917 = vpack.c.b16 %v3875, %v3872
        %v3918 = vpack.c.b16 %v3879, %v3876
        %v3919 = vpack.c.b16 %v3880, %v3877
        %v3920 = vpack.c.b16 %v3881, %v3878
        %v3921 = vpack.c.b16 %v3885, %v3882
        %v3922 = vpack.c.b16 %v3886, %v3883
        %v3923 = vpack.c.b16 %v3887, %v3884
        %v3924 = vpack.c.b16 %v3891, %v3888
        %v3925 = vpack.c.b16 %v3892, %v3889
        %v3926 = vpack.c.b16 %v3893, %v3890
        %v3927 = vpack.c.b16 %v3897, %v3894
        %v3928 = vpack.c.b16 %v3898, %v3895
        %v3929 = vpack.c.b16 %v3899, %v3896
        %v3930 = vpack.c.b16 %v3903, %v3900
        %v3931 = vpack.c.b16 %v3904, %v3901
        %v3932 = vpack.c.b16 %v3905, %v3902
        %v3933 = vpack.c.b16 %v3909, %v3906
        %v3934 = vpack.c.b16 %v3910, %v3907
        %v3935 = vpack.c.b16 %v3911, %v3908
        %3960 = vmatprep.subr.bf16.mxu0 %v3913
        %3961 = vmatpush1.bf16.msra.mxu0 %v3912
        %3962 = vmatprep.subr.bf16.mxu0 %v3916
        %3963 = vmatpush1.bf16.msra.mxu0 %v3915
        %3964 = vmatprep.subr.bf16.mxu0 %v3919
        %3965 = vmatpush1.bf16.msra.mxu0 %v3918
        %3966 = vmatprep.subr.bf16.mxu0 %v3922
        %3967 = vmatpush1.bf16.msra.mxu0 %v3921
        %3968 = vmatprep.subr.bf16.mxu0 %v3925
        %3969 = vmatpush1.bf16.msra.mxu0 %v3924
        %3970 = vmatprep.subr.bf16.mxu0 %v3928
        %3971 = vmatpush1.bf16.msra.mxu0 %v3927
        %3972 = vmatprep.subr.bf16.mxu0 %v3931
        %3973 = vmatpush1.bf16.msra.mxu0 %v3930
        %3974 = vmatprep.subr.bf16.mxu0 %v3934
        %3975 = vmatpush1.bf16.msra.mxu0 %v3933
        %3976 = vmatprep.subr.bf16.mxu0 0
        %3977 = vmatpush1.bf16.msra.mxu0 0
        %3978 = vmatprep.subr.bf16.mxu0 0
        %3979 = vmatpush1.bf16.msra.mxu0 0
        %3980 = vmatprep.subr.bf16.mxu0 0
        %3981 = vmatpush1.bf16.msra.mxu0 0
        %3982 = vmatprep.subr.bf16.mxu0 0
        %3983 = vmatpush1.bf16.msra.mxu0 0
        %3984 = vmatprep.subr.bf16.mxu0 0
        %3985 = vmatpush1.bf16.msra.mxu0 0
        %3986 = vmatprep.subr.bf16.mxu0 0
        %3987 = vmatpush1.bf16.msra.mxu0 0
        %3988 = vmatprep.subr.bf16.mxu0 0
        %3989 = vmatpush1.bf16.msra.mxu0 0
        %3990 = vmatprep.subr.bf16.mxu0 0
        %3991 = vmatpush1.bf16.msra.mxu0 0
        %3992 = vmatprep.mubr.bf16.mxu0 0
        %3993 = vmatmul.mubr.bf16.gmra.mrb[0].mxu0 %v3356
        %v3994 = vpop.f32.mrb[0].mxu0
        %v3995 = vadd.f32 0.0, %v3994
        %v3996 = vpop.f32.mrb[0].mxu0
        %v3997 = vadd.f32 0.0, %v3996
        %v3998 = vpop.f32.mrb[0].mxu0
        %v3999 = vadd.f32 0.0, %v3998
        %v4000 = vpop.f32.mrb[0].mxu0
        %v4001 = vadd.f32 0.0, %v4000
        %4002 = vmatprep.mubr.bf16.mxu0 0
        %4003 = vmatmul.mubr.bf16.gmra.mrb[0].mxu0 %v3357
        %v4004 = vpop.f32.mrb[0].mxu0
        %v4005 = vadd.f32 0.0, %v4004
        %v4006 = vpop.f32.mrb[0].mxu0
        %v4007 = vadd.f32 0.0, %v4006
        %v4008 = vpop.f32.mrb[0].mxu0
        %v4009 = vadd.f32 0.0, %v4008
        %v4010 = vpop.f32.mrb[0].mxu0
        %v4011 = vadd.f32 0.0, %v4010
        %4012 = vmatprep.mubr.bf16.mxu0 0
        %4013 = vmatmul.mubr.bf16.gmra.mrb[0].mxu0 %v3358
        %v4014 = vpop.f32.mrb[0].mxu0
        %v4015 = vadd.f32 0.0, %v4014
        %v4016 = vpop.f32.mrb[0].mxu0
        %v4017 = vadd.f32 0.0, %v4016
        %v4018 = vpop.f32.mrb[0].mxu0
        %v4019 = vadd.f32 0.0, %v4018
        %v4020 = vpop.f32.mrb[0].mxu0
        %v4021 = vadd.f32 0.0, %v4020
        %4022 = vmatprep.mubr.bf16.mxu0 0
        %4023 = vmatmul.mubr.bf16.gmra.mrb[0].mxu0 %v3359
        %v4024 = vpop.f32.mrb[0].mxu0
        %v4025 = vadd.f32 0.0, %v4024
        %v4026 = vpop.f32.mrb[0].mxu0
        %v4027 = vadd.f32 0.0, %v4026
        %v4028 = vpop.f32.mrb[0].mxu0
        %v4029 = vadd.f32 0.0, %v4028
        %v4030 = vpop.f32.mrb[0].mxu0
        %v4031 = vadd.f32 0.0, %v4030
        %4032 = vmatprep.mubr.bf16.mxu0 0
        %4033 = vmatmul.mubr.bf16.gmra.mrb[0].mxu0 %v3360
        %v4034 = vpop.f32.mrb[0].mxu0
        %v4035 = vadd.f32 0.0, %v4034
        %v4036 = vpop.f32.mrb[0].mxu0
        %v4037 = vadd.f32 0.0, %v4036
        %v4038 = vpop.f32.mrb[0].mxu0
        %v4039 = vadd.f32 0.0, %v4038
        %v4040 = vpop.f32.mrb[0].mxu0
        %v4041 = vadd.f32 0.0, %v4040
        %4042 = vmatprep.mubr.bf16.mxu0 0
        %4043 = vmatmul.mubr.bf16.gmra.mrb[0].mxu0 %v3361
        %v4044 = vpop.f32.mrb[0].mxu0
        %v4045 = vadd.f32 0.0, %v4044
        %v4046 = vpop.f32.mrb[0].mxu0
        %v4047 = vadd.f32 0.0, %v4046
        %v4048 = vpop.f32.mrb[0].mxu0
        %v4049 = vadd.f32 0.0, %v4048
        %v4050 = vpop.f32.mrb[0].mxu0
        %v4051 = vadd.f32 0.0, %v4050
        %4052 = vmatprep.mubr.bf16.mxu0 0
        %4053 = vmatmul.mubr.bf16.gmra.mrb[0].mxu0 %v3362
        %v4054 = vpop.f32.mrb[0].mxu0
        %v4055 = vadd.f32 0.0, %v4054
        %v4056 = vpop.f32.mrb[0].mxu0
        %v4057 = vadd.f32 0.0, %v4056
        %v4058 = vpop.f32.mrb[0].mxu0
        %v4059 = vadd.f32 0.0, %v4058
        %v4060 = vpop.f32.mrb[0].mxu0
        %v4061 = vadd.f32 0.0, %v4060
        %4062 = vmatprep.mubr.bf16.mxu0 0
        %4063 = vmatmul.mubr.bf16.gmra.mrb[0].mxu0 %v3363
        %v4064 = vpop.f32.mrb[0].mxu0
        %v4065 = vadd.f32 0.0, %v4064
        %v4066 = vpop.f32.mrb[0].mxu0
        %v4067 = vadd.f32 0.0, %v4066
        %v4068 = vpop.f32.mrb[0].mxu0
        %v4069 = vadd.f32 0.0, %v4068
        %v4070 = vpop.f32.mrb[0].mxu0
        %v4071 = vadd.f32 0.0, %v4070
        %4072 = vmatprep.mubr.bf16.mxu0 0
        %4073 = vmatmul.mubr.bf16.gmra.mrb[0].mxu0 %v3364
        %v4074 = vpop.f32.mrb[0].mxu0
        %v4075 = vadd.f32 0.0, %v4074
        %v4076 = vpop.f32.mrb[0].mxu0
        %v4077 = vadd.f32 0.0, %v4076
        %v4078 = vpop.f32.mrb[0].mxu0
        %v4079 = vadd.f32 0.0, %v4078
        %v4080 = vpop.f32.mrb[0].mxu0
        %v4081 = vadd.f32 0.0, %v4080
        %4082 = vmatprep.mubr.bf16.mxu0 0
        %4083 = vmatmul.mubr.bf16.gmra.mrb[0].mxu0 %v3826
        %v4084 = vpop.f32.mrb[0].mxu0
        %v4085 = vadd.f32 0.0, %v4084
        %v4086 = vpop.f32.mrb[0].mxu0
        %v4087 = vadd.f32 0.0, %v4086
        %v4088 = vpop.f32.mrb[0].mxu0
        %v4089 = vadd.f32 0.0, %v4088
        %v4090 = vpop.f32.mrb[0].mxu0
        %v4091 = vadd.f32 0.0, %v4090
        %4092 = vmatprep.mubr.bf16.mxu0 0
        %4093 = vmatmul.mubr.bf16.gmra.mrb[0].mxu0 %v3827
        %v4094 = vpop.f32.mrb[0].mxu0
        %v4095 = vadd.f32 0.0, %v4094
        %v4096 = vpop.f32.mrb[0].mxu0
        %v4097 = vadd.f32 0.0, %v4096
        %v4098 = vpop.f32.mrb[0].mxu0
        %v4099 = vadd.f32 0.0, %v4098
        %v4100 = vpop.f32.mrb[0].mxu0
        %v4101 = vadd.f32 0.0, %v4100
        %4102 = vmatprep.mubr.bf16.mxu0 0
        %4103 = vmatmul.mubr.bf16.gmra.mrb[0].mxu0 %v3828
        %v4104 = vpop.f32.mrb[0].mxu0
        %v4105 = vadd.f32 0.0, %v4104
        %v4106 = vpop.f32.mrb[0].mxu0
        %v4107 = vadd.f32 0.0, %v4106
        %v4108 = vpop.f32.mrb[0].mxu0
        %v4109 = vadd.f32 0.0, %v4108
        %v4110 = vpop.f32.mrb[0].mxu0
        %v4111 = vadd.f32 0.0, %v4110
        %4112 = vdwg.mxu0
        %4113 = vmatprep.subr.bf16.mxu0 0
        %4114 = vmatpush1.bf16.msra.mxu0 %v3914
        %4115 = vmatprep.subr.bf16.mxu0 0
        %4116 = vmatpush1.bf16.msra.mxu0 %v3917
        %4117 = vmatprep.subr.bf16.mxu0 0
        %4118 = vmatpush1.bf16.msra.mxu0 %v3920
        %4119 = vmatprep.subr.bf16.mxu0 0
        %4120 = vmatpush1.bf16.msra.mxu0 %v3923
        %4121 = vmatprep.subr.bf16.mxu0 0
        %4122 = vmatpush1.bf16.msra.mxu0 %v3926
        %4123 = vmatprep.subr.bf16.mxu0 0
        %4124 = vmatpush1.bf16.msra.mxu0 %v3929
        %4125 = vmatprep.subr.bf16.mxu0 0
        %4126 = vmatpush1.bf16.msra.mxu0 %v3932
        %4127 = vmatprep.subr.bf16.mxu0 0
        %4128 = vmatpush1.bf16.msra.mxu0 %v3935
        %4129 = vmatprep.subr.bf16.mxu0 0
        %4130 = vmatpush1.bf16.msra.mxu0 0
        %4131 = vmatprep.subr.bf16.mxu0 0
        %4132 = vmatpush1.bf16.msra.mxu0 0
        %4133 = vmatprep.subr.bf16.mxu0 0
        %4134 = vmatpush1.bf16.msra.mxu0 0
        %4135 = vmatprep.subr.bf16.mxu0 0
        %4136 = vmatpush1.bf16.msra.mxu0 0
        %4137 = vmatprep.subr.bf16.mxu0 0
        %4138 = vmatpush1.bf16.msra.mxu0 0
        %4139 = vmatprep.subr.bf16.mxu0 0
        %4140 = vmatpush1.bf16.msra.mxu0 0
        %4141 = vmatprep.subr.bf16.mxu0 0
        %4142 = vmatpush1.bf16.msra.mxu0 0
        %4143 = vmatprep.subr.bf16.mxu0 0
        %4144 = vmatpush1.bf16.msra.mxu0 0
        %4145 = vmatprep.mubr.bf16.mxu0 0
        %4146 = vmatmul.mubr.bf16.gmra.mrb[0].mxu0 %v3356
        %v4147 = vpop.f32.mrb[0].mxu0
        %v4148 = vadd.f32 0.0, %v4147
        %v4149 = vpop.f32.mrb[0].mxu0
        %v4150 = vpop.f32.mrb[0].mxu0
        %v4151 = vadd.f32 0.0, %v4150
        %v4152 = vpop.f32.mrb[0].mxu0
        %4153 = vmatprep.mubr.bf16.mxu0 0
        %4154 = vmatmul.mubr.bf16.gmra.mrb[0].mxu0 %v3357
        %v4155 = vpop.f32.mrb[0].mxu0
        %v4156 = vadd.f32 0.0, %v4155
        %v4157 = vpop.f32.mrb[0].mxu0
        %v4158 = vpop.f32.mrb[0].mxu0
        %v4159 = vadd.f32 0.0, %v4158
        %v4160 = vpop.f32.mrb[0].mxu0
        %4161 = vmatprep.mubr.bf16.mxu0 0
        %4162 = vmatmul.mubr.bf16.gmra.mrb[0].mxu0 %v3358
        %v4163 = vpop.f32.mrb[0].mxu0
        %v4164 = vadd.f32 0.0, %v4163
        %v4165 = vpop.f32.mrb[0].mxu0
        %v4166 = vpop.f32.mrb[0].mxu0
        %v4167 = vadd.f32 0.0, %v4166
        %v4168 = vpop.f32.mrb[0].mxu0
        %4169 = vmatprep.mubr.bf16.mxu0 0
        %4170 = vmatmul.mubr.bf16.gmra.mrb[0].mxu0 %v3359
        %v4171 = vpop.f32.mrb[0].mxu0
        %v4172 = vadd.f32 0.0, %v4171
        %v4173 = vpop.f32.mrb[0].mxu0
        %v4174 = vpop.f32.mrb[0].mxu0
        %v4175 = vadd.f32 0.0, %v4174
        %v4176 = vpop.f32.mrb[0].mxu0
        %4177 = vmatprep.mubr.bf16.mxu0 0
        %4178 = vmatmul.mubr.bf16.gmra.mrb[0].mxu0 %v3360
        %v4179 = vpop.f32.mrb[0].mxu0
        %v4180 = vadd.f32 0.0, %v4179
        %v4181 = vpop.f32.mrb[0].mxu0
        %v4182 = vpop.f32.mrb[0].mxu0
        %v4183 = vadd.f32 0.0, %v4182
        %v4184 = vpop.f32.mrb[0].mxu0
        %4185 = vmatprep.mubr.bf16.mxu0 0
        %4186 = vmatmul.mubr.bf16.gmra.mrb[0].mxu0 %v3361
        %v4187 = vpop.f32.mrb[0].mxu0
        %v4188 = vadd.f32 0.0, %v4187
        %v4189 = vpop.f32.mrb[0].mxu0
        %v4190 = vpop.f32.mrb[0].mxu0
        %v4191 = vadd.f32 0.0, %v4190
        %v4192 = vpop.f32.mrb[0].mxu0
        %4193 = vmatprep.mubr.bf16.mxu0 0
        %4194 = vmatmul.mubr.bf16.gmra.mrb[0].mxu0 %v3362
        %v4195 = vpop.f32.mrb[0].mxu0
        %v4196 = vadd.f32 0.0, %v4195
        %v4197 = vpop.f32.mrb[0].mxu0
        %v4198 = vpop.f32.mrb[0].mxu0
        %v4199 = vadd.f32 0.0, %v4198
        %v4200 = vpop.f32.mrb[0].mxu0
        %4201 = vmatprep.mubr.bf16.mxu0 0
        %4202 = vmatmul.mubr.bf16.gmra.mrb[0].mxu0 %v3363
        %v4203 = vpop.f32.mrb[0].mxu0
        %v4204 = vadd.f32 0.0, %v4203
        %v4205 = vpop.f32.mrb[0].mxu0
        %v4206 = vpop.f32.mrb[0].mxu0
        %v4207 = vadd.f32 0.0, %v4206
        %v4208 = vpop.f32.mrb[0].mxu0
        %4209 = vmatprep.mubr.bf16.mxu0 0
        %4210 = vmatmul.mubr.bf16.gmra.mrb[0].mxu0 %v3364
        %v4211 = vpop.f32.mrb[0].mxu0
        %v4212 = vadd.f32 0.0, %v4211
        %v4213 = vpop.f32.mrb[0].mxu0
        %v4214 = vpop.f32.mrb[0].mxu0
        %v4215 = vadd.f32 0.0, %v4214
        %v4216 = vpop.f32.mrb[0].mxu0
        %4217 = vmatprep.mubr.bf16.mxu0 0
        %4218 = vmatmul.mubr.bf16.gmra.mrb[0].mxu0 %v3826
        %v4219 = vpop.f32.mrb[0].mxu0
        %v4220 = vadd.f32 0.0, %v4219
        %v4221 = vpop.f32.mrb[0].mxu0
        %v4222 = vpop.f32.mrb[0].mxu0
        %v4223 = vadd.f32 0.0, %v4222
        %v4224 = vpop.f32.mrb[0].mxu0
        %4225 = vmatprep.mubr.bf16.mxu0 0
        %4226 = vmatmul.mubr.bf16.gmra.mrb[0].mxu0 %v3827
        %v4227 = vpop.f32.mrb[0].mxu0
        %v4228 = vadd.f32 0.0, %v4227
        %v4229 = vpop.f32.mrb[0].mxu0
        %v4230 = vpop.f32.mrb[0].mxu0
        %v4231 = vadd.f32 0.0, %v4230
        %v4232 = vpop.f32.mrb[0].mxu0
        %4233 = vmatprep.mubr.bf16.mxu0 0
        %4234 = vmatmul.mubr.bf16.gmra.mrb[0].mxu0 %v3828
        %v4235 = vpop.f32.mrb[0].mxu0
        %v4236 = vadd.f32 0.0, %v4235
        %v4237 = vpop.f32.mrb[0].mxu0
        %v4238 = vpop.f32.mrb[0].mxu0
        %v4239 = vadd.f32 0.0, %v4238
        %v4240 = vpop.f32.mrb[0].mxu0
        %4241 = vdwg.mxu0
        %v4242 = vadd.f32 %v3540, %v3995
        %v4243 = vadd.f32 %v3542, %v3997
        %v4244 = vadd.f32 %v3693, %v4148
        %v4245 = vadd.f32 %v3544, %v3999
        %v4246 = vadd.f32 %v3546, %v4001
        %v4247 = vadd.f32 %v3696, %v4151
        %v4248 = vadd.f32 %v3550, %v4005
        %v4249 = vadd.f32 %v3552, %v4007
        %v4250 = vadd.f32 %v3701, %v4156
        %v4251 = vadd.f32 %v3554, %v4009
        %v4252 = vadd.f32 %v3556, %v4011
        %v4253 = vadd.f32 %v3704, %v4159
        %v4254 = vadd.f32 %v3560, %v4015
        %v4255 = vadd.f32 %v3562, %v4017
        %v4256 = vadd.f32 %v3709, %v4164
        %v4257 = vadd.f32 %v3564, %v4019
        %v4258 = vadd.f32 %v3566, %v4021
        %v4259 = vadd.f32 %v3712, %v4167
        %v4260 = vadd.f32 %v3570, %v4025
        %v4261 = vadd.f32 %v3572, %v4027
        %v4262 = vadd.f32 %v3717, %v4172
        %v4263 = vadd.f32 %v3574, %v4029
        %v4264 = vadd.f32 %v3576, %v4031
        %v4265 = vadd.f32 %v3720, %v4175
        %v4266 = vadd.f32 %v3580, %v4035
        %v4267 = vadd.f32 %v3582, %v4037
        %v4268 = vadd.f32 %v3725, %v4180
        %v4269 = vadd.f32 %v3584, %v4039
        %v4270 = vadd.f32 %v3586, %v4041
        %v4271 = vadd.f32 %v3728, %v4183
        %v4272 = vadd.f32 %v3590, %v4045
        %v4273 = vadd.f32 %v3592, %v4047
        %v4274 = vadd.f32 %v3733, %v4188
        %v4275 = vadd.f32 %v3594, %v4049
        %v4276 = vadd.f32 %v3596, %v4051
        %v4277 = vadd.f32 %v3736, %v4191
        %v4278 = vadd.f32 %v3600, %v4055
        %v4279 = vadd.f32 %v3602, %v4057
        %v4280 = vadd.f32 %v3741, %v4196
        %v4281 = vadd.f32 %v3604, %v4059
        %v4282 = vadd.f32 %v3606, %v4061
        %v4283 = vadd.f32 %v3744, %v4199
        %v4284 = vadd.f32 %v3610, %v4065
        %v4285 = vadd.f32 %v3612, %v4067
        %v4286 = vadd.f32 %v3749, %v4204
        %v4287 = vadd.f32 %v3614, %v4069
        %v4288 = vadd.f32 %v3616, %v4071
        %v4289 = vadd.f32 %v3752, %v4207
        %v4290 = vadd.f32 %v3620, %v4075
        %v4291 = vadd.f32 %v3622, %v4077
        %v4292 = vadd.f32 %v3757, %v4212
        %v4293 = vadd.f32 %v3624, %v4079
        %v4294 = vadd.f32 %v3626, %v4081
        %v4295 = vadd.f32 %v3760, %v4215
        %v4296 = vadd.f32 %v3630, %v4085
        %v4297 = vadd.f32 %v3632, %v4087
        %v4298 = vadd.f32 %v3765, %v4220
        %v4299 = vadd.f32 %v3634, %v4089
        %v4300 = vadd.f32 %v3636, %v4091
        %v4301 = vadd.f32 %v3768, %v4223
        %v4302 = vadd.f32 %v3640, %v4095
        %v4303 = vadd.f32 %v3642, %v4097
        %v4304 = vadd.f32 %v3773, %v4228
        %v4305 = vadd.f32 %v3644, %v4099
        %v4306 = vadd.f32 %v3646, %v4101
        %v4307 = vadd.f32 %v3776, %v4231
        %v4308 = vadd.f32 %v3650, %v4105
        %v4309 = vadd.f32 %v3652, %v4107
        %v4310 = vadd.f32 %v3781, %v4236
        %v4311 = vadd.f32 %v3654, %v4109
        %v4312 = vadd.f32 %v3656, %v4111
        %v4313 = vadd.f32 %v3784, %v4239
        %v4314 = vrot.slane %v4242, 7
        %v4315 = vrot.slane %v4245, 7
        %v4316 = vrot.slane %v4248, 7
        %v4317 = vrot.slane %v4251, 7
        %v4318 = vrot.slane %v4254, 7
        %v4319 = vrot.slane %v4257, 7
        %v4320 = vrot.slane %v4260, 7
        %v4321 = vrot.slane %v4263, 7
        %v4322 = vrot.slane %v4266, 7
        %v4323 = vrot.slane %v4269, 7
        %v4324 = vrot.slane %v4272, 7
        %v4325 = vrot.slane %v4275, 7
        %v4326 = vrot.slane %v4278, 7
        %v4327 = vrot.slane %v4281, 7
        %v4328 = vrot.slane %v4284, 7
        %v4329 = vrot.slane %v4287, 7
        %v4330 = vrot.slane %v4290, 7
        %v4331 = vrot.slane %v4293, 7
        %v4332 = vrot.slane %v4296, 7
        %v4333 = vrot.slane %v4299, 7
        %v4334 = vrot.slane %v4302, 7
        %v4335 = vrot.slane %v4305, 7
        %v4336 = vrot.slane %v4308, 7
        %v4337 = vrot.slane %v4311, 7
        %v4338 = vsel %vm2343, %v4336, %v4337
        %v4339 = vsel %vm2343, %v4335, %v4336
        %v4340 = vsel %vm2343, %v4334, %v4335
        %v4341 = vsel %vm2343, %v4333, %v4334
        %v4342 = vsel %vm2343, %v4332, %v4333
        %v4343 = vsel %vm2343, %v4331, %v4332
        %v4344 = vsel %vm2343, %v4330, %v4331
        %v4345 = vsel %vm2343, %v4329, %v4330
        %v4346 = vsel %vm2343, %v4328, %v4329
        %v4347 = vsel %vm2343, %v4327, %v4328
        %v4348 = vsel %vm2343, %v4326, %v4327
        %v4349 = vsel %vm2343, %v4325, %v4326
        %v4350 = vsel %vm2343, %v4324, %v4325
        %v4351 = vsel %vm2343, %v4323, %v4324
        %v4352 = vsel %vm2343, %v4322, %v4323
        %v4353 = vsel %vm2343, %v4321, %v4322
        %v4354 = vsel %vm2343, %v4320, %v4321
        %v4355 = vsel %vm2343, %v4319, %v4320
        %v4356 = vsel %vm2343, %v4318, %v4319
        %v4357 = vsel %vm2343, %v4317, %v4318
        %v4358 = vsel %vm2343, %v4316, %v4317
        %v4359 = vsel %vm2343, %v4315, %v4316
        %v4360 = vsel %vm2343, %v4314, %v4315
        %v4361 = vsel %vm2343, %v4337, %v4314
        %v4362 = vadd.f32 %v4243, %v4361
        %v4363 = vadd.f32 %v4246, %v4360
        %v4364 = vadd.f32 %v4249, %v4359
        %v4365 = vadd.f32 %v4252, %v4358
        %v4366 = vadd.f32 %v4255, %v4357
        %v4367 = vadd.f32 %v4258, %v4356
        %v4368 = vadd.f32 %v4261, %v4355
        %v4369 = vadd.f32 %v4264, %v4354
        %v4370 = vadd.f32 %v4267, %v4353
        %v4371 = vadd.f32 %v4270, %v4352
        %v4372 = vadd.f32 %v4273, %v4351
        %v4373 = vadd.f32 %v4276, %v4350
        %v4374 = vadd.f32 %v4279, %v4349
        %v4375 = vadd.f32 %v4282, %v4348
        %v4376 = vadd.f32 %v4285, %v4347
        %v4377 = vadd.f32 %v4288, %v4346
        %v4378 = vadd.f32 %v4291, %v4345
        %v4379 = vadd.f32 %v4294, %v4344
        %v4380 = vadd.f32 %v4297, %v4343
        %v4381 = vadd.f32 %v4300, %v4342
        %v4382 = vadd.f32 %v4303, %v4341
        %v4383 = vadd.f32 %v4306, %v4340
        %v4384 = vadd.f32 %v4309, %v4339
        %v4385 = vadd.f32 %v4312, %v4338
        %v4386 = vrot.slane %v4244, 1
        %v4387 = vrot.slane %v4247, 1
        %v4388 = vrot.slane %v4250, 1
        %v4389 = vrot.slane %v4253, 1
        %v4390 = vrot.slane %v4256, 1
        %v4391 = vrot.slane %v4259, 1
        %v4392 = vrot.slane %v4262, 1
        %v4393 = vrot.slane %v4265, 1
        %v4394 = vrot.slane %v4268, 1
        %v4395 = vrot.slane %v4271, 1
        %v4396 = vrot.slane %v4274, 1
        %v4397 = vrot.slane %v4277, 1
        %v4398 = vrot.slane %v4280, 1
        %v4399 = vrot.slane %v4283, 1
        %v4400 = vrot.slane %v4286, 1
        %v4401 = vrot.slane %v4289, 1
        %v4402 = vrot.slane %v4292, 1
        %v4403 = vrot.slane %v4295, 1
        %v4404 = vrot.slane %v4298, 1
        %v4405 = vrot.slane %v4301, 1
        %v4406 = vrot.slane %v4304, 1
        %v4407 = vrot.slane %v4307, 1
        %v4408 = vrot.slane %v4310, 1
        %v4409 = vrot.slane %v4313, 1
        %v4410 = vsel %vm2434, %v4408, %v4409
        %v4411 = vsel %vm2434, %v4407, %v4408
        %v4412 = vsel %vm2434, %v4406, %v4407
        %v4413 = vsel %vm2434, %v4405, %v4406
        %v4414 = vsel %vm2434, %v4404, %v4405
        %v4415 = vsel %vm2434, %v4403, %v4404
        %v4416 = vsel %vm2434, %v4402, %v4403
        %v4417 = vsel %vm2434, %v4401, %v4402
        %v4418 = vsel %vm2434, %v4400, %v4401
        %v4419 = vsel %vm2434, %v4399, %v4400
        %v4420 = vsel %vm2434, %v4398, %v4399
        %v4421 = vsel %vm2434, %v4397, %v4398
        %v4422 = vsel %vm2434, %v4396, %v4397
        %v4423 = vsel %vm2434, %v4395, %v4396
        %v4424 = vsel %vm2434, %v4394, %v4395
        %v4425 = vsel %vm2434, %v4393, %v4394
        %v4426 = vsel %vm2434, %v4392, %v4393
        %v4427 = vsel %vm2434, %v4391, %v4392
        %v4428 = vsel %vm2434, %v4390, %v4391
        %v4429 = vsel %vm2434, %v4389, %v4390
        %v4430 = vsel %vm2434, %v4388, %v4389
        %v4431 = vsel %vm2434, %v4387, %v4388
        %v4432 = vsel %vm2434, %v4386, %v4387
        %v4433 = vsel %vm2434, %v4409, %v4386
        %v4434 = vadd.f32 %v4362, %v4432
        %v4435 = vadd.f32 %v4363, %v4431
        %v4436 = vadd.f32 %v4364, %v4430
        %v4437 = vadd.f32 %v4365, %v4429
        %v4438 = vadd.f32 %v4366, %v4428
        %v4439 = vadd.f32 %v4367, %v4427
        %v4440 = vadd.f32 %v4368, %v4426
        %v4441 = vadd.f32 %v4369, %v4425
        %v4442 = vadd.f32 %v4370, %v4424
        %v4443 = vadd.f32 %v4371, %v4423
        %v4444 = vadd.f32 %v4372, %v4422
        %v4445 = vadd.f32 %v4373, %v4421
        %v4446 = vadd.f32 %v4374, %v4420
        %v4447 = vadd.f32 %v4375, %v4419
        %v4448 = vadd.f32 %v4376, %v4418
        %v4449 = vadd.f32 %v4377, %v4417
        %v4450 = vadd.f32 %v4378, %v4416
        %v4451 = vadd.f32 %v4379, %v4415
        %v4452 = vadd.f32 %v4380, %v4414
        %v4453 = vadd.f32 %v4381, %v4413
        %v4454 = vadd.f32 %v4382, %v4412
        %v4455 = vadd.f32 %v4383, %v4411
        %v4456 = vadd.f32 %v4384, %v4410
        %v4457 = vadd.f32 %v4385, %v4433
        %v4458 = vld [vmem:[%s5 + $0x2] sm:$0x1]
        %v4459 = vlaneseq
        %v4460 = vshrl.u32 %v4459, 7
        %v4461 = vsub.s32 0, %v4460
        %v4462 = vrot.slane %v4458, %v4461
        %v4463 = vmul.f32 %v4434, %v4462
        %v4464 = vmul.f32 %v4435, %v4462
        %v4465 = vmul.f32 %v4436, %v4462
        %v4466 = vmul.f32 %v4437, %v4462
        %v4467 = vmul.f32 %v4438, %v4462
        %v4468 = vmul.f32 %v4439, %v4462
        %v4469 = vmul.f32 %v4440, %v4462
        %v4470 = vmul.f32 %v4441, %v4462
        %v4471 = vmul.f32 %v4442, %v4462
        %v4472 = vmul.f32 %v4443, %v4462
        %v4473 = vmul.f32 %v4444, %v4462
        %v4474 = vmul.f32 %v4445, %v4462
        %v4475 = vmul.f32 %v4446, %v4462
        %v4476 = vmul.f32 %v4447, %v4462
        %v4477 = vmul.f32 %v4448, %v4462
        %v4478 = vmul.f32 %v4449, %v4462
        %v4479 = vmul.f32 %v4450, %v4462
        %v4480 = vmul.f32 %v4451, %v4462
        %v4481 = vmul.f32 %v4452, %v4462
        %v4482 = vmul.f32 %v4453, %v4462
        %v4483 = vmul.f32 %v4454, %v4462
        %v4484 = vmul.f32 %v4455, %v4462
        %v4485 = vmul.f32 %v4456, %v4462
        %v4486 = vmul.f32 %v4457, %v4462
        %v4487 = vld [vmem:[%s5 + $0x3] sm:$0x1]
        %v4488 = vlaneseq
        %v4489 = vshrl.u32 %v4488, 7
        %v4490 = vsub.s32 0, %v4489
        %v4491 = vrot.slane %v4487, %v4490
        %v4492 = vadd.f32 %v4463, %v4491
        %v4493 = vadd.f32 %v4464, %v4491
        %v4494 = vadd.f32 %v4465, %v4491
        %v4495 = vadd.f32 %v4466, %v4491
        %v4496 = vadd.f32 %v4467, %v4491
        %v4497 = vadd.f32 %v4468, %v4491
        %v4498 = vadd.f32 %v4469, %v4491
        %v4499 = vadd.f32 %v4470, %v4491
        %v4500 = vadd.f32 %v4471, %v4491
        %v4501 = vadd.f32 %v4472, %v4491
        %v4502 = vadd.f32 %v4473, %v4491
        %v4503 = vadd.f32 %v4474, %v4491
        %v4504 = vadd.f32 %v4475, %v4491
        %v4505 = vadd.f32 %v4476, %v4491
        %v4506 = vadd.f32 %v4477, %v4491
        %v4507 = vadd.f32 %v4478, %v4491
        %v4508 = vadd.f32 %v4479, %v4491
        %v4509 = vadd.f32 %v4480, %v4491
        %v4510 = vadd.f32 %v4481, %v4491
        %v4511 = vadd.f32 %v4482, %v4491
        %v4512 = vadd.f32 %v4483, %v4491
        %v4513 = vadd.f32 %v4484, %v4491
        %v4514 = vadd.f32 %v4485, %v4491
        %v4515 = vadd.f32 %v4486, %v4491
        %v4516 = vmax.f32 %v4492, 0.0
        %v4517 = vmax.f32 %v4493, 0.0
        %v4518 = vmax.f32 %v4494, 0.0
        %v4519 = vmax.f32 %v4495, 0.0
        %v4520 = vmax.f32 %v4496, 0.0
        %v4521 = vmax.f32 %v4497, 0.0
        %v4522 = vmax.f32 %v4498, 0.0
        %v4523 = vmax.f32 %v4499, 0.0
        %v4524 = vmax.f32 %v4500, 0.0
        %v4525 = vmax.f32 %v4501, 0.0
        %v4526 = vmax.f32 %v4502, 0.0
        %v4527 = vmax.f32 %v4503, 0.0
        %v4528 = vmax.f32 %v4504, 0.0
        %v4529 = vmax.f32 %v4505, 0.0
        %v4530 = vmax.f32 %v4506, 0.0
        %v4531 = vmax.f32 %v4507, 0.0
        %v4532 = vmax.f32 %v4508, 0.0
        %v4533 = vmax.f32 %v4509, 0.0
        %v4534 = vmax.f32 %v4510, 0.0
        %v4535 = vmax.f32 %v4511, 0.0
        %v4536 = vmax.f32 %v4512, 0.0
        %v4537 = vmax.f32 %v4513, 0.0
        %v4538 = vmax.f32 %v4514, 0.0
        %v4539 = vmax.f32 %v4515, 0.0
        %v4540 = vpack.c.bf16 %v4517, %v4516
        %v4541 = vpack.c.bf16 %v4519, %v4518
        %v4542 = vpack.c.bf16 %v4521, %v4520
        %v4543 = vpack.c.bf16 %v4523, %v4522
        %v4544 = vpack.c.bf16 %v4525, %v4524
        %v4545 = vpack.c.bf16 %v4527, %v4526
        %v4546 = vpack.c.bf16 %v4529, %v4528
        %v4547 = vpack.c.bf16 %v4531, %v4530
        %v4548 = vpack.c.bf16 %v4533, %v4532
        %v4549 = vpack.c.bf16 %v4535, %v4534
        %v4550 = vpack.c.bf16 %v4537, %v4536
        %v4551 = vpack.c.bf16 %v4539, %v4538
        %v4564 = vunpack.c.l.b16 %v4540
        %v4565 = vunpack.c.h.b16 %v4540
        %v4566 = vunpack.c.h.b16 %v4541
        %v4567 = vunpack.c.l.b16 %v4542
        %v4568 = vunpack.c.l.b16 %v4543
        %v4569 = vunpack.c.h.b16 %v4543
        %v4570 = vunpack.c.h.b16 %v4544
        %v4571 = vunpack.c.l.b16 %v4545
        %v4572 = vunpack.c.l.b16 %v4546
        %v4573 = vunpack.c.h.b16 %v4546
        %v4574 = vunpack.c.h.b16 %v4547
        %v4575 = vunpack.c.l.b16 %v4548
        %v4576 = vunpack.c.l.b16 %v4549
        %v4577 = vunpack.c.h.b16 %v4549
        %v4578 = vunpack.c.h.b16 %v4550
        %v4579 = vunpack.c.l.b16 %v4551
        %v4580 = vpack.c.b16 %v4564, %v4564
        %v4581 = vpack.c.b16 %v4565, %v4565
        %v4582 = vpack.c.b16 %v4566, %v4566
        %v4583 = vpack.c.b16 %v4567, %v4567
        %v4584 = vpack.c.b16 %v4568, %v4568
        %v4585 = vpack.c.b16 %v4569, %v4569
        %v4586 = vpack.c.b16 %v4570, %v4570
        %v4587 = vpack.c.b16 %v4571, %v4571
        %v4588 = vpack.c.b16 %v4572, %v4572
        %v4589 = vpack.c.b16 %v4573, %v4573
        %v4590 = vpack.c.b16 %v4574, %v4574
        %v4591 = vpack.c.b16 %v4575, %v4575
        %v4592 = vpack.c.b16 %v4576, %v4576
        %v4593 = vpack.c.b16 %v4577, %v4577
        %v4594 = vpack.c.b16 %v4578, %v4578
        %v4595 = vpack.c.b16 %v4579, %v4579
        %4612 = vst [vmem:[%s402] sm:$0xf] %v4580
        %4613 = vst [vmem:[%s402 + $0x4] sm:$0xf] %v4581
        %4614 = vst [vmem:[%s402 + $0x8] sm:$0xf] %v4582
        %4615 = vst [vmem:[%s402 + $0xc] sm:$0xf] %v4583
        %4616 = vst [vmem:[%s402 + $0x10] sm:$0xf] %v4584
        %4617 = vst [vmem:[%s402 + $0x14] sm:$0xf] %v4585
        %4618 = vst [vmem:[%s402 + $0x18] sm:$0xf] %v4586
        %4619 = vst [vmem:[%s402 + $0x1c] sm:$0xf] %v4587
        %4620 = vst [vmem:[%s402 + $0x20] sm:$0xf] %v4588
        %4621 = vst [vmem:[%s402 + $0x24] sm:$0xf] %v4589
        %4622 = vst [vmem:[%s402 + $0x28] sm:$0xf] %v4590
        %4623 = vst [vmem:[%s402 + $0x2c] sm:$0xf] %v4591
        %4624 = vst [vmem:[%s402 + $0x30] sm:$0xf] %v4592
        %4625 = vst [vmem:[%s402 + $0x34] sm:$0xf] %v4593
        %4626 = vst [vmem:[%s402 + $0x38] sm:$0xf] %v4594
        %4627 = vst [vmem:[%s402 + $0x3c] sm:$0xf] %v4595
        %s4628 = sand.u32 %s214, 1
        %s4629 = scalar_lea.sflag [#allocation6], %s4628
        %s4630 = sand.u32 %s214, 1
        %s4631 = smul.addr %s4630, 64
        %s4632 = scalar_lea.vmem [#allocation7], %s4631
        // Predicated region
        $region65: #{tpu_custom_call.1} parent=43 // pred_check
          %p4633 = pneg %p224
        $region66: #{tpu_custom_call.1} parent=43 // pred_check_branch
          %4635 = sbr.rel (%p4633) target = $region68
        $region67: #{tpu_custom_call.1} parent=43 // pred_region
          %s4636 = smul.u32 8, %s26
          %s4638 = ssub.s32 1024, 1024
          %4639 = vsyncadd %s4629, %s4638
          %s4640 = smul.addr %s4636, 2
          %s4641 = smul.addr %s25, 32
          %s4642 = sadd.s32 %s4640, %s4641
          %s4643 = smul.addr %s4642, 64
          %s4644 = scalar_lea.hbm %s6, %s4643
          %s4645 = sshll.u32 %s4632, 4
          %s4646 = int_to_ptr.vmem [resolvable:$true] %s4645
          %4651 = dma.vmem_to_hbm [thread:$0]  %s4646, 1024, %s4644, %s4629, 64, 64, 4
        $region68: #{tpu_custom_call.1} parent=43 // pred_fallthru
          _
      $region44: #{tpu_custom_call.1} parent=5 // pred_fallthru
        _
      %p4652 = scmp.le.s32.totalorder 2, %s16
      // Predicated region
      $region69: #{tpu_custom_call.1} parent=5 // pred_check
        %p4653 = pneg %p4652
      $region70: #{tpu_custom_call.1} parent=5 // pred_check_branch
        %4655 = sbr.rel (%p4653) target = $region72
      $region71: #{tpu_custom_call.1} parent=5 // pred_region
        %s4656 = ssub.s32 %s16, 2
        // Predicated region
        $region73: #{tpu_custom_call.1} parent=71 // pred_check
          %p4657 = pneg %p230
        $region74: #{tpu_custom_call.1} parent=71 // pred_check_branch
          %4659 = sbr.rel (%p4657) target = $region76
        $region75: #{tpu_custom_call.1} parent=71 // pred_region
          %s4660 = sand.u32 %s215, 1
          %s4661 = scalar_lea.sflag [#allocation6], %s4660
          %s4662 = sand.u32 %s215, 1
          %s4663 = smul.addr %s4662, 64
          %s4664 = scalar_lea.vmem [#allocation7], %s4663
          %4665 = dma.done %s4661, 1024
        $region76: #{tpu_custom_call.1} parent=71 // pred_fallthru
          _
      $region72: #{tpu_custom_call.1} parent=5 // pred_fallthru
        _
    $region6: #{tpu_custom_call.1} parent=1 // loop_footer
      %s20 = sadd.s32 1, %s16
    $region7: #{tpu_custom_call.1} parent=1 // loop_footer_branch
      %15 = sbr.rel target = $region3
    $region8: #{tpu_custom_call.1} parent=1 // loop_exit
      _
    %4666 = vsyncpa [#allocation5], 1
    %s4667 = scalar_lea.sflag [#allocation5], 1
    %4668 = vsyncpa %s4667, 1
    %4669 = vsyncpa [#allocation6], 1
    %s4670 = scalar_lea.sflag [#allocation6], 1
    %4671 = vsyncpa %s4670, 1

</llo_original>
